<compile_context>
chip_gen: v7x
topology: tpu7x:2x2x1
jax: 0.10.0
libtpu: 0.0.40
codegen_flags: <defaults>
</compile_context>

<pallas_src>
import functools
import math

import numpy as np

import jax
import jax.numpy as jnp
from jax.experimental import pallas as pl
from jax.experimental.pallas import tpu as pltpu


# -----------------------------------------------------------------------------
# helpers
# -----------------------------------------------------------------------------
def _divisor_chunk(n, max_chunk):
    """Largest divisor of n that is <= max_chunk (>= 1)."""
    c = max(1, min(n, max_chunk))
    while n % c:
        c -= 1
    return c


def _mosaic(semantics, need_bytes):
    """CompilerParams with vmem_limit sized from the actual buffer footprint."""
    limit = int(min(max(2 * need_bytes + (2 << 20), 32 << 20), 64 << 20))
    return pltpu.CompilerParams(dimension_semantics=semantics,
                                vmem_limit_bytes=limit)


def _choose_mb(t_pad, b_pad):
    """Rows-per-tile for the (T*B, .) projections; multiple of B_pad so the
    sublane dim stays 16-aligned; >=2 M tiles when possible (megacore)."""
    t_rows = _divisor_chunk(t_pad, max(1, 256 // b_pad))
    if t_rows == t_pad and t_pad > 1:
        t_rows = _divisor_chunk(t_pad, max(1, t_pad // 2))
    return t_rows * b_pad


def _pad_time(t):
    """Time chunk + padded length (pad instead of degrading to tiny chunks)."""
    tb = min(t, 16)
    t_pad = ((t + tb - 1) // tb) * tb
    return tb, t_pad


# -----------------------------------------------------------------------------
# Kernel 1a: layer-0 input projection  gx = x @ W_cat + b_cat
# -----------------------------------------------------------------------------
def proj_x_kernel(x_ref, w_ref, b_ref, o_ref):
    o_ref[...] = (jnp.dot(x_ref[...].astype(jnp.bfloat16), w_ref[...],
                          preferred_element_type=jnp.float32)
                  + b_ref[...])


def input_projection_x(x2d, w, b, b_pad, t_pad):
    M, D = x2d.shape
    N = w.shape[1]
    Mb = _choose_mb(t_pad, b_pad)
    Nb = 128 * _divisor_chunk(N // 128, 4)
    need = 2 * (Mb * D * x2d.dtype.itemsize + D * Nb * 2 + Nb * 4 + Mb * Nb * 4)
    return pl.pallas_call(
        proj_x_kernel,
        out_shape=jax.ShapeDtypeStruct((M, N), jnp.float32),
        grid_spec=pltpu.PrefetchScalarGridSpec(
            num_scalar_prefetch=0,
            grid=(M // Mb, N // Nb),
            in_specs=[
                pl.BlockSpec((Mb, D), lambda i, j: (i, 0)),
                pl.BlockSpec((D, Nb), lambda i, j: (0, j)),
                pl.BlockSpec((1, Nb), lambda i, j: (0, j)),
            ],
            out_specs=pl.BlockSpec((Mb, Nb), lambda i, j: (i, j)),
        ),
        compiler_params=_mosaic(("parallel", "parallel"), need),
    )(x2d, w, b)


# -----------------------------------------------------------------------------
# Kernel 1b: layer>=1 input projection from split previous-layer outputs:
#   gx = out_f @ W_top + out_b @ W_bot + b      (no (T,B,2H) concat in HBM)
# -----------------------------------------------------------------------------
def proj_hh_kernel(xf_ref, xb_ref, wt_ref, wb_ref, b_ref, o_ref):
    o_ref[...] = (jnp.dot(xf_ref[...].astype(jnp.bfloat16), wt_ref[...],
                          preferred_element_type=jnp.float32)
                  + jnp.dot(xb_ref[...].astype(jnp.bfloat16), wb_ref[...],
                            preferred_element_type=jnp.float32)
                  + b_ref[...])


def input_projection_hh(xf2d, xb2d, w_top, w_bot, b, b_pad, t_pad):
    M, H = xf2d.shape
    N = w_top.shape[1]
    Mb = _choose_mb(t_pad, b_pad)
    Nb = 128 * _divisor_chunk(N // 128, 4)
    need = 2 * (2 * Mb * H * xf2d.dtype.itemsize + 2 * H * Nb * 2
                + Nb * 4 + Mb * Nb * 4)
    return pl.pallas_call(
        proj_hh_kernel,
        out_shape=jax.ShapeDtypeStruct((M, N), jnp.float32),
        grid_spec=pltpu.PrefetchScalarGridSpec(
            num_scalar_prefetch=0,
            grid=(M // Mb, N // Nb),
            in_specs=[
                pl.BlockSpec((Mb, H), lambda i, j: (i, 0)),
                pl.BlockSpec((Mb, H), lambda i, j: (i, 0)),
                pl.BlockSpec((H, Nb), lambda i, j: (0, j)),
                pl.BlockSpec((H, Nb), lambda i, j: (0, j)),
                pl.BlockSpec((1, Nb), lambda i, j: (0, j)),
            ],
            out_specs=pl.BlockSpec((Mb, Nb), lambda i, j: (i, j)),
        ),
        compiler_params=_mosaic(("parallel", "parallel"), need),
    )(xf2d, xb2d, w_top, w_bot, b)


# -----------------------------------------------------------------------------
# Kernel 2: fused bidirectional recurrent layer, chunked per-direction outputs.
#   gxf_ref : (Tb, B, 4H) forward-gate inputs, chunk tc
#   gxb_ref : (Tb, B, 4H) backward-gate inputs, chunk nc-1-tc
#   whh*    : (H, 4H) bf16 recurrent weights
#   out_f   : (Tb, B, H) block tc        (bf16, pipelined writeback)
#   out_b   : (Tb, B, H) block nc-1-tc
#   scratch : 4 x (B, H) f32 h/c, carried across time chunks
# -----------------------------------------------------------------------------
def bilstm_kernel(gxf_ref, gxb_ref, whhf_ref, whhb_ref, out_f_ref, out_b_ref,
                  hf_scr, cf_scr, hb_scr, cb_scr, *, t_real, t_pad):
    tc = pl.program_id(0)
    Tb, _, H4 = gxf_ref.shape
    H = H4 // 4
    t0 = tc * Tb

    @pl.when(tc == 0)
    def _():  # h0 = c0 = 0, matching torch.zeros in forward()
        hf_scr[...] = jnp.zeros_like(hf_scr)
        cf_scr[...] = jnp.zeros_like(cf_scr)
        hb_scr[...] = jnp.zeros_like(hb_scr)
        cb_scr[...] = jnp.zeros_like(cb_scr)

    whh_f = whhf_ref[...]
    whh_b = whhb_ref[...]

    def cell(gx, h, c, whh):
        # gx already holds x @ Wih + b_ih + b_hh; only h @ Whh is recurrent.
        gates = gx + jnp.dot(h.astype(whh.dtype), whh,
                             preferred_element_type=jnp.float32)   # (B, 4H)
        i_g = jax.nn.sigmoid(gates[:, 0 * H:1 * H])
        f_g = jax.nn.sigmoid(gates[:, 1 * H:2 * H])
        g_g = jnp.tanh(gates[:, 2 * H:3 * H])
        o_g = jax.nn.sigmoid(gates[:, 3 * H:4 * H])
        c_new = f_g * c + i_g * g_g
        h_new = o_g * jnp.tanh(c_new)
        return h_new, c_new

    def step(i, carry):
        h_f, c_f, h_b, c_b = carry
        # forward direction: global time t0 + i
        h_f, c_f = cell(gxf_ref[i], h_f, c_f, whh_f)
        out_f_ref[pl.ds(i, 1), :, :] = h_f[None].astype(out_f_ref.dtype)
        # backward direction: global time t_pad - 1 - (t0 + i)
        if t_pad != t_real:
            # zero-padded tail is processed first by the backward stream;
            # reset the state exactly at its first REAL timestep.
            reset = (t0 + i) == (t_pad - t_real)
            h_b = jnp.where(reset, jnp.zeros_like(h_b), h_b)
            c_b = jnp.where(reset, jnp.zeros_like(c_b), c_b)
        h_b, c_b = cell(gxb_ref[Tb - 1 - i], h_b, c_b, whh_b)
        out_b_ref[pl.ds(Tb - 1 - i, 1), :, :] = h_b[None].astype(out_b_ref.dtype)
        return h_f, c_f, h_b, c_b

    h_f, c_f, h_b, c_b = jax.lax.fori_loop(
        0, Tb, step,
        (hf_scr[...], cf_scr[...], hb_scr[...], cb_scr[...]),
        unroll=True)

    hf_scr[...] = h_f
    cf_scr[...] = c_f
    hb_scr[...] = h_b
    cb_scr[...] = c_b


def bilstm_layer(gx, whh_f, whh_b, t_real, tb, out_dtype=jnp.bfloat16):
    """gx: (T_pad, B, 8H) precomputed x-gates -> (out_f, out_b) each (T_pad,B,H)."""
    Tp, B, H8 = gx.shape
    H = H8 // 8
    nc = Tp // tb
    out_bytes = jnp.dtype(out_dtype).itemsize
    need = (2 * 2 * tb * B * 4 * H * 4        # gx blocks (f32), double-buffered
            + 2 * 2 * H * 4 * H * 2           # whh bf16
            + 2 * 2 * tb * B * H * out_bytes  # output blocks
            + 4 * B * H * 4)                  # h/c scratch
    kernel = functools.partial(bilstm_kernel, t_real=t_real, t_pad=Tp)
    return pl.pallas_call(
        kernel,
        out_shape=(jax.ShapeDtypeStruct((Tp, B, H), out_dtype),
                   jax.ShapeDtypeStruct((Tp, B, H), out_dtype)),
        grid_spec=pltpu.PrefetchScalarGridSpec(
            num_scalar_prefetch=0,
            grid=(nc,),
            in_specs=[
                # forward-direction x-gates: chunk tc, lane block 0 -> [0:4H]
                pl.BlockSpec((tb, B, 4 * H), lambda tc: (tc, 0, 0)),
                # backward-direction x-gates: reversed chunk, lanes [4H:8H]
                pl.BlockSpec((tb, B, 4 * H), lambda tc: (nc - 1 - tc, 0, 1)),
                pl.BlockSpec((H, 4 * H), lambda tc: (0, 0)),
                pl.BlockSpec((H, 4 * H), lambda tc: (0, 0)),
            ],
            out_specs=[
                pl.BlockSpec((tb, B, H), lambda tc: (tc, 0, 0)),
                pl.BlockSpec((tb, B, H), lambda tc: (nc - 1 - tc, 0, 0)),
            ],
            scratch_shapes=[pltpu.VMEM((B, H), jnp.float32)] * 4,
        ),
        compiler_params=_mosaic(("arbitrary",), need),  # time carries state
    )(gx, gx, whh_f, whh_b)


# -----------------------------------------------------------------------------
# Kernel 3: attention scores (VPU/XLU) + softmax over time + pooling, then a
# single small FC matmul on the pooled context (no factor-of-T MXU work).
# -----------------------------------------------------------------------------
def attn_fc_kernel(out_f_ref, out_b_ref, waf_ref, wab_ref, ba_ref,
                   wff_ref, wfb_ref, bf_ref, logits_ref, *, t_real):
    Tp, Bb, H = out_f_ref.shape
    out_f = out_f_ref[...].astype(jnp.float32)
    out_b = out_b_ref[...].astype(jnp.float32)

    # attention score: broadcast-mul (VPU) + lane reduce (XLU); no MXU pass.
    s = (jnp.sum(out_f * waf_ref[...], axis=-1, keepdims=True)
         + jnp.sum(out_b * wab_ref[...], axis=-1, keepdims=True)
         + ba_ref[0, 0])                                    # (Tp, Bb, 1)
    if t_real < Tp:                                         # mask padded steps
        t_idx = jax.lax.broadcasted_iota(jnp.int32, s.shape, 0)
        s = jnp.where(t_idx < t_real, s, -jnp.inf)

    m = jnp.max(s, axis=0, keepdims=True)
    e = jnp.exp(s - m)
    probs = e * pl.reciprocal(jnp.sum(e, axis=0, keepdims=True), approx=True)

    # pool first (VPU), then one small MXU matmul per half.
    ctx_f = jnp.sum(probs * out_f, axis=0)                  # (Bb, H)
    ctx_b = jnp.sum(probs * out_b, axis=0)
    logits_ref[...] = (
        jnp.dot(ctx_f.astype(jnp.bfloat16), wff_ref[...],
                preferred_element_type=jnp.float32)
        + jnp.dot(ctx_b.astype(jnp.bfloat16), wfb_ref[...],
                  preferred_element_type=jnp.float32)
        + bf_ref[...])


def attn_fc(out_f, out_b, w_att_f, w_att_b, b_att, w_fc_f, w_fc_b, b_fc, t_real):
    Tp, B_pad, H = out_f.shape
    C = w_fc_f.shape[1]
    Bb = 16 * _divisor_chunk(B_pad // 16, 8)      # batch tile, multiple of 16
    act = out_f.dtype.itemsize
    need = (2 * (2 * Tp * Bb * H * act + Bb * C * 4)
            + 2 * (2 * H * 4 + 2 * H * C * 2 + C * 4 + 4))
    kernel = functools.partial(attn_fc_kernel, t_real=t_real)
    return pl.pallas_call(
        kernel,
        out_shape=jax.ShapeDtypeStruct((B_pad, C), jnp.float32),
        grid_spec=pltpu.PrefetchScalarGridSpec(
            num_scalar_prefetch=0,
            grid=(B_pad // Bb,),
            in_specs=[
                pl.BlockSpec((Tp, Bb, H), lambda i: (0, i, 0)),
                pl.BlockSpec((Tp, Bb, H), lambda i: (0, i, 0)),
                pl.BlockSpec((1, H), lambda i: (0, 0)),
                pl.BlockSpec((1, H), lambda i: (0, 0)),
                pl.BlockSpec((1, 1), lambda i: (0, 0)),
                pl.BlockSpec((H, C), lambda i: (0, 0)),
                pl.BlockSpec((H, C), lambda i: (0, 0)),
                pl.BlockSpec((1, C), lambda i: (0, 0)),
            ],
            out_specs=pl.BlockSpec((Bb, C), lambda i: (i, 0)),
        ),
        compiler_params=_mosaic(("parallel",), need),
    )(out_f, out_b, w_att_f, w_att_b, b_att, w_fc_f, w_fc_b, b_fc)


# -----------------------------------------------------------------------------
# Parameters: raw f32 init (PyTorch-style uniform) + one-time kernel packing.
# -----------------------------------------------------------------------------
def init_params(key, input_size, hidden_size, num_layers, num_classes):
    params = {"lstm": []}
    k_lstm = 1.0 / math.sqrt(hidden_size)
    in_dim = input_size
    for _ in range(num_layers):
        layer = []
        for _direction in range(2):
            key, k1, k2, k3, k4 = jax.random.split(key, 5)
            wih = jax.random.uniform(k1, (in_dim, 4 * hidden_size),
                                     jnp.float32, -k_lstm, k_lstm)
            whh = jax.random.uniform(k2, (hidden_size, 4 * hidden_size),
                                     jnp.float32, -k_lstm, k_lstm)
            b_ih = jax.random.uniform(k3, (1, 4 * hidden_size),
                                      jnp.float32, -k_lstm, k_lstm)
            b_hh = jax.random.uniform(k4, (1, 4 * hidden_size),
                                      jnp.float32, -k_lstm, k_lstm)
            layer.append((wih, whh, b_ih + b_hh))
        params["lstm"].append(tuple(layer))
        in_dim = 2 * hidden_size

    k_att = 1.0 / math.sqrt(2 * hidden_size)
    key, k1, k2, k3, k4 = jax.random.split(key, 5)
    params["w_att"] = jax.random.uniform(k1, (2 * hidden_size, 1),
                                         jnp.float32, -k_att, k_att)
    params["b_att"] = jax.random.uniform(k2, (1, 1), jnp.float32, -k_att, k_att)
    params["w_fc"] = jax.random.uniform(k3, (2 * hidden_size, num_classes),
                                        jnp.float32, -k_att, k_att)
    params["b_fc"] = jax.random.uniform(k4, (1, num_classes),
                                        jnp.float32, -k_att, k_att)
    return params


def prepare_kernel_params(raw):
    """One-time packing: weight concatenations + bf16 casts (not per-forward)."""
    H = raw["lstm"][0][0][1].shape[0]
    kp = {"lstm": []}
    for li, ((wih_f, whh_f, b_f), (wih_b, whh_b, b_b)) in enumerate(raw["lstm"]):
        w_cat = jnp.concatenate([wih_f, wih_b], axis=1).astype(jnp.bfloat16)
        lp = {"b_cat": jnp.concatenate([b_f, b_b], axis=1),       # (1, 8H) f32
              "whh_f": whh_f.astype(jnp.bfloat16),
              "whh_b": whh_b.astype(jnp.bfloat16)}
        if li == 0:
            lp["w_cat"] = w_cat                                   # (D, 8H)
        else:
            lp["w_top"] = w_cat[:H]                               # (H, 8H)
            lp["w_bot"] = w_cat[H:]                               # (H, 8H)
        kp["lstm"].append(lp)
    kp["w_att_f"] = raw["w_att"][:H, 0].reshape(1, H)
    kp["w_att_b"] = raw["w_att"][H:, 0].reshape(1, H)
    kp["b_att"] = raw["b_att"]
    kp["w_fc_f"] = raw["w_fc"][:H].astype(jnp.bfloat16)
    kp["w_fc_b"] = raw["w_fc"][H:].astype(jnp.bfloat16)
    kp["b_fc"] = raw["b_fc"]
    return kp


# -----------------------------------------------------------------------------
# Full forward pass (mirrors SequenceClassifier.forward, eval mode)
# -----------------------------------------------------------------------------
@functools.partial(jax.jit, static_argnames=("num_layers",))
def sequence_classifier_forward(x, kparams, num_layers):
    B, _, T = x.shape
    H = kparams["lstm"][0]["whh_f"].shape[0]
    assert H % 32 == 0, "hidden_size must be a multiple of 32 (lane blocking)"

    # (B, input_size, T) -> (T, B, input_size); bf16 once (matmul operand).
    h0 = jnp.transpose(x, (2, 0, 1)).astype(jnp.bfloat16)
    B_pad = ((B + 15) // 16) * 16                 # bf16 sublane tiling
    tb, T_pad = _pad_time(T)
    if T_pad != T or B_pad != B:
        h0 = jnp.pad(h0, ((0, T_pad - T), (0, B_pad - B), (0, 0)))

    out_f = out_b = None
    for li in range(num_layers):
        lp = kparams["lstm"][li]
        if li == 0:
            gx = input_projection_x(h0.reshape(T_pad * B_pad, -1),
                                    lp["w_cat"], lp["b_cat"], B_pad, T_pad)
        else:
            gx = input_projection_hh(out_f.reshape(T_pad * B_pad, H),
                                     out_b.reshape(T_pad * B_pad, H),
                                     lp["w_top"], lp["w_bot"], lp["b_cat"],
                                     B_pad, T_pad)
        gx = gx.reshape(T_pad, B_pad, 8 * H)
        out_f, out_b = bilstm_layer(gx, lp["whh_f"], lp["whh_b"],
                                    t_real=T, tb=tb)

    logits = attn_fc(out_f, out_b,
                     kparams["w_att_f"], kparams["w_att_b"], kparams["b_att"],
                     kparams["w_fc_f"], kparams["w_fc_b"], kparams["b_fc"],
                     t_real=T)
    return logits[:B]                              # drop batch padding


# -----------------------------------------------------------------------------
# Pure-JAX f32 reference (matches the PyTorch module in eval mode)
# -----------------------------------------------------------------------------
def reference_forward(x, raw):
    h = jnp.transpose(x, (2, 0, 1)).astype(jnp.float32)     # (T, B, D)

    def run(seq, p):
        wih, whh, b = p
        H = whh.shape[0]
        Bn = seq.shape[1]

        def step(carry, x_t):
            h_, c_ = carry
            g = x_t @ wih + h_ @ whh + b
            i_g = jax.nn.sigmoid(g[:, :H])
            f_g = jax.nn.sigmoid(g[:, H:2 * H])
            g_g = jnp.tanh(g[:, 2 * H:3 * H])
            o_g = jax.nn.sigmoid(g[:, 3 * H:])
            c_n = f_g * c_ + i_g * g_g
            h_n = o_g * jnp.tanh(c_n)
            return (h_n, c_n), h_n

        z = jnp.zeros((Bn, H), jnp.float32)
        _, hs = jax.lax.scan(step, (z, z), seq)
        return hs

    for (p_f, p_b) in raw["lstm"]:
        h_f = run(h, p_f)
        h_b = run(h[::-1], p_b)[::-1]
        h = jnp.concatenate([h_f, h_b], axis=-1)

    s = jnp.einsum("tbh,ho->tb", h, raw["w_att"]) + raw["b_att"][0, 0]
    p = jax.nn.softmax(s, axis=0)
    ctx = jnp.einsum("tb,tbh->bh", p, h)
    return ctx @ raw["w_fc"] + raw["b_fc"]


if __name__ == "__main__":
    B, INPUT_SIZE, T = 2, 16, 8
    HIDDEN, NUM_LAYERS, NUM_CLASSES = 32, 2, 5

    key = jax.random.PRNGKey(0)
    key, pkey, xkey = jax.random.split(key, 3)

    raw_params = init_params(pkey, INPUT_SIZE, HIDDEN, NUM_LAYERS, NUM_CLASSES)
    kparams = prepare_kernel_params(raw_params)
    x = jax.random.normal(xkey, (B, INPUT_SIZE, T), jnp.float32)

    logits = sequence_classifier_forward(x, kparams, num_layers=NUM_LAYERS)
    jax.block_until_ready(logits)
    assert logits.shape == (B, NUM_CLASSES)

    # tolerance-asserted pure-JAX f32 reference (bf16 operands -> loose atol)
    ref = reference_forward(x, raw_params)
    np.testing.assert_allclose(np.asarray(logits), np.asarray(ref),
                               atol=2e-1, rtol=0.0)
    print("KERNEL_OK")
</pallas_src>

<mosaic_0001>
module attributes {stable_mosaic.version = 11 : i64} {
  func.func @proj_x_kernel(%arg0: i32, %arg1: i32, %arg2: memref<64x16xbf16, #tpu.memory_space<vmem>>, %arg3: memref<16x256xbf16, #tpu.memory_space<vmem>>, %arg4: memref<1x256xf32, #tpu.memory_space<vmem>>, %arg5: memref<64x256xf32, #tpu.memory_space<vmem>>) attributes {dimension_semantics = [#tpu.dimension_semantics<parallel>, #tpu.dimension_semantics<parallel>], iteration_bounds = array<i64: 2, 1>, scalar_prefetch = 0 : i64, scratch_operands = 0 : i64, tpu.core_type = #tpu.core_type<tc>, window_params = [{transform_indices = @transform_0, window_bounds = array<i64: 64, 16>}, {transform_indices = @transform_1, window_bounds = array<i64: 16, 256>}, {transform_indices = @transform_2, window_bounds = array<i64: 1, 256>}, {transform_indices = @transform_3, window_bounds = array<i64: 64, 256>}]} {
    %c0 = arith.constant 0 : index
    %c0_0 = arith.constant 0 : index
    %0 = vector.load %arg2[%c0, %c0_0] : memref<64x16xbf16, #tpu.memory_space<vmem>>, vector<64x16xbf16>
    %c0_1 = arith.constant 0 : index
    %c0_2 = arith.constant 0 : index
    %1 = vector.load %arg3[%c0_1, %c0_2] : memref<16x256xbf16, #tpu.memory_space<vmem>>, vector<16x256xbf16>
    %cst = arith.constant dense<0.000000e+00> : vector<64x256xf32>
    %2 = tpu.matmul %0, %1, %cst {dimension_numbers = #tpu.dot_dimension_numbers<[1], [0], [0], [1], [0, 0, 1, 1], [], []>} : vector<64x16xbf16>, vector<16x256xbf16>, vector<64x256xf32> -> vector<64x256xf32>
    %c0_3 = arith.constant 0 : index
    %c0_4 = arith.constant 0 : index
    %3 = vector.load %arg4[%c0_3, %c0_4] : memref<1x256xf32, #tpu.memory_space<vmem>>, vector<1x256xf32>
    %4 = vector.broadcast %3 : vector<1x256xf32> to vector<64x256xf32>
    %5 = arith.addf %2, %4 : vector<64x256xf32>
    %c0_5 = arith.constant 0 : index
    %c0_6 = arith.constant 0 : index
    %6 = vector.load %arg5[%c0_5, %c0_6] : memref<64x256xf32, #tpu.memory_space<vmem>>, vector<64x256xf32>
    tpu.vector_store %arg5[%c0_5, %c0_6], %5 {strides = array<i32>} : memref<64x256xf32, #tpu.memory_space<vmem>>, vector<64x256xf32>,
    return
  }
  func.func @transform_0(%arg0: i32, %arg1: i32) -> (i32, i32) {
    %c0_i32 = arith.constant 0 : i32
    %c0_i32_0 = arith.constant 0 : i32
    return %arg0, %c0_i32 : i32, i32
  }
  func.func @transform_1(%arg0: i32, %arg1: i32) -> (i32, i32) {
    %c0_i32 = arith.constant 0 : i32
    %c0_i32_0 = arith.constant 0 : i32
    return %c0_i32, %arg1 : i32, i32
  }
  func.func @transform_2(%arg0: i32, %arg1: i32) -> (i32, i32) {
    %c0_i32 = arith.constant 0 : i32
    %c0_i32_0 = arith.constant 0 : i32
    return %c0_i32, %arg1 : i32, i32
  }
  func.func @transform_3(%arg0: i32, %arg1: i32) -> (i32, i32) {
    %c0_i32 = arith.constant 0 : i32
    return %arg0, %arg1 : i32, i32
  }
}

module attributes {stable_mosaic.version = 11 : i64} {
  func.func @proj_hh_kernel(%arg0: i32, %arg1: i32, %arg2: memref<64x32xbf16, #tpu.memory_space<vmem>>, %arg3: memref<64x32xbf16, #tpu.memory_space<vmem>>, %arg4: memref<32x256xbf16, #tpu.memory_space<vmem>>, %arg5: memref<32x256xbf16, #tpu.memory_space<vmem>>, %arg6: memref<1x256xf32, #tpu.memory_space<vmem>>, %arg7: memref<64x256xf32, #tpu.memory_space<vmem>>) attributes {dimension_semantics = [#tpu.dimension_semantics<parallel>, #tpu.dimension_semantics<parallel>], iteration_bounds = array<i64: 2, 1>, scalar_prefetch = 0 : i64, scratch_operands = 0 : i64, tpu.core_type = #tpu.core_type<tc>, window_params = [{transform_indices = @transform_0, window_bounds = array<i64: 64, 32>}, {transform_indices = @transform_1, window_bounds = array<i64: 64, 32>}, {transform_indices = @transform_2, window_bounds = array<i64: 32, 256>}, {transform_indices = @transform_3, window_bounds = array<i64: 32, 256>}, {transform_indices = @transform_4, window_bounds = array<i64: 1, 256>}, {transform_indices = @transform_5, window_bounds = array<i64: 64, 256>}]} {
    %c0 = arith.constant 0 : index
    %c0_0 = arith.constant 0 : index
    %0 = vector.load %arg2[%c0, %c0_0] : memref<64x32xbf16, #tpu.memory_space<vmem>>, vector<64x32xbf16>
    %c0_1 = arith.constant 0 : index
    %c0_2 = arith.constant 0 : index
    %1 = vector.load %arg4[%c0_1, %c0_2] : memref<32x256xbf16, #tpu.memory_space<vmem>>, vector<32x256xbf16>
    %cst = arith.constant dense<0.000000e+00> : vector<64x256xf32>
    %2 = tpu.matmul %0, %1, %cst {dimension_numbers = #tpu.dot_dimension_numbers<[1], [0], [0], [1], [0, 0, 1, 1], [], []>} : vector<64x32xbf16>, vector<32x256xbf16>, vector<64x256xf32> -> vector<64x256xf32>
    %c0_3 = arith.constant 0 : index
    %c0_4 = arith.constant 0 : index
    %3 = vector.load %arg3[%c0_3, %c0_4] : memref<64x32xbf16, #tpu.memory_space<vmem>>, vector<64x32xbf16>
    %c0_5 = arith.constant 0 : index
    %c0_6 = arith.constant 0 : index
    %4 = vector.load %arg5[%c0_5, %c0_6] : memref<32x256xbf16, #tpu.memory_space<vmem>>, vector<32x256xbf16>
    %cst_7 = arith.constant dense<0.000000e+00> : vector<64x256xf32>
    %5 = tpu.matmul %3, %4, %cst_7 {dimension_numbers = #tpu.dot_dimension_numbers<[1], [0], [0], [1], [0, 0, 1, 1], [], []>} : vector<64x32xbf16>, vector<32x256xbf16>, vector<64x256xf32> -> vector<64x256xf32>
    %6 = arith.addf %2, %5 : vector<64x256xf32>
    %c0_8 = arith.constant 0 : index
    %c0_9 = arith.constant 0 : index
    %7 = vector.load %arg6[%c0_8, %c0_9] : memref<1x256xf32, #tpu.memory_space<vmem>>, vector<1x256xf32>
    %8 = vector.broadcast %7 : vector<1x256xf32> to vector<64x256xf32>
    %9 = arith.addf %6, %8 : vector<64x256xf32>
    %c0_10 = arith.constant 0 : index
    %c0_11 = arith.constant 0 : index
    %10 = vector.load %arg7[%c0_10, %c0_11] : memref<64x256xf32, #tpu.memory_space<vmem>>, vector<64x256xf32>
    tpu.vector_store %arg7[%c0_10, %c0_11], %9 {strides = array<i32>} : memref<64x256xf32, #tpu.memory_space<vmem>>, vector<64x256xf32>,
    return
  }
  func.func @transform_0(%arg0: i32, %arg1: i32) -> (i32, i32) {
    %c0_i32 = arith.constant 0 : i32
    %c0_i32_0 = arith.constant 0 : i32
    return %arg0, %c0_i32 : i32, i32
  }
  func.func @transform_1(%arg0: i32, %arg1: i32) -> (i32, i32) {
    %c0_i32 = arith.constant 0 : i32
    %c0_i32_0 = arith.constant 0 : i32
    return %arg0, %c0_i32 : i32, i32
  }
  func.func @transform_2(%arg0: i32, %arg1: i32) -> (i32, i32) {
    %c0_i32 = arith.constant 0 : i32
    %c0_i32_0 = arith.constant 0 : i32
    return %c0_i32, %arg1 : i32, i32
  }
  func.func @transform_3(%arg0: i32, %arg1: i32) -> (i32, i32) {
    %c0_i32 = arith.constant 0 : i32
    %c0_i32_0 = arith.constant 0 : i32
    return %c0_i32, %arg1 : i32, i32
  }
  func.func @transform_4(%arg0: i32, %arg1: i32) -> (i32, i32) {
    %c0_i32 = arith.constant 0 : i32
    %c0_i32_0 = arith.constant 0 : i32
    return %c0_i32, %arg1 : i32, i32
  }
  func.func @transform_5(%arg0: i32, %arg1: i32) -> (i32, i32) {
    %c0_i32 = arith.constant 0 : i32
    return %arg0, %arg1 : i32, i32
  }
}

module attributes {stable_mosaic.version = 11 : i64} {
  func.func @attn_fc_kernel(%arg0: i32, %arg1: memref<8x16x32xbf16, #tpu.memory_space<vmem>>, %arg2: memref<8x16x32xbf16, #tpu.memory_space<vmem>>, %arg3: memref<1x32xf32, #tpu.memory_space<vmem>>, %arg4: memref<1x32xf32, #tpu.memory_space<vmem>>, %arg5: memref<1x1xf32, #tpu.memory_space<vmem>>, %arg6: memref<32x5xbf16, #tpu.memory_space<vmem>>, %arg7: memref<32x5xbf16, #tpu.memory_space<vmem>>, %arg8: memref<1x5xf32, #tpu.memory_space<vmem>>, %arg9: memref<16x5xf32, #tpu.memory_space<vmem>>) attributes {dimension_semantics = [#tpu.dimension_semantics<parallel>], iteration_bounds = array<i64: 1>, scalar_prefetch = 0 : i64, scratch_operands = 0 : i64, tpu.core_type = #tpu.core_type<tc>, window_params = [{transform_indices = @transform_0, window_bounds = array<i64: 8, 16, 32>}, {transform_indices = @transform_1, window_bounds = array<i64: 8, 16, 32>}, {pipeline_mode = #tpu.pipeline_mode<synchronous>, transform_indices = @transform_2, window_bounds = array<i64: 1, 32>}, {pipeline_mode = #tpu.pipeline_mode<synchronous>, transform_indices = @transform_3, window_bounds = array<i64: 1, 32>}, {pipeline_mode = #tpu.pipeline_mode<synchronous>, transform_indices = @transform_4, window_bounds = array<i64: 1, 1>}, {pipeline_mode = #tpu.pipeline_mode<synchronous>, transform_indices = @transform_5, window_bounds = array<i64: 32, 5>}, {pipeline_mode = #tpu.pipeline_mode<synchronous>, transform_indices = @transform_6, window_bounds = array<i64: 32, 5>}, {pipeline_mode = #tpu.pipeline_mode<synchronous>, transform_indices = @transform_7, window_bounds = array<i64: 1, 5>}, {transform_indices = @transform_8, window_bounds = array<i64: 16, 5>}]} {
    %c0 = arith.constant 0 : index
    %c0_0 = arith.constant 0 : index
    %c0_1 = arith.constant 0 : index
    %0 = vector.load %arg1[%c0, %c0_0, %c0_1] : memref<8x16x32xbf16, #tpu.memory_space<vmem>>, vector<8x16x32xbf16>
    %1 = arith.extf %0 : vector<8x16x32xbf16> to vector<8x16x32xf32>
    %c0_2 = arith.constant 0 : index
    %c0_3 = arith.constant 0 : index
    %c0_4 = arith.constant 0 : index
    %2 = vector.load %arg2[%c0_2, %c0_3, %c0_4] : memref<8x16x32xbf16, #tpu.memory_space<vmem>>, vector<8x16x32xbf16>
    %3 = arith.extf %2 : vector<8x16x32xbf16> to vector<8x16x32xf32>
    %c0_5 = arith.constant 0 : index
    %c0_6 = arith.constant 0 : index
    %4 = vector.load %arg3[%c0_5, %c0_6] : memref<1x32xf32, #tpu.memory_space<vmem>>, vector<1x32xf32>
    %5 = vector.shape_cast %4 : vector<1x32xf32> to vector<1x1x32xf32>
    %6 = vector.broadcast %5 : vector<1x1x32xf32> to vector<8x16x32xf32>
    %7 = arith.mulf %1, %6 : vector<8x16x32xf32>
    %cst = arith.constant dense<0.000000e+00> : vector<8x16xf32>
    %8 = vector.multi_reduction <add>, %7, %cst [2] : vector<8x16x32xf32> to vector<8x16xf32>
    %9 = vector.shape_cast %8 : vector<8x16xf32> to vector<8x16x1xf32>
    %c0_7 = arith.constant 0 : index
    %c0_8 = arith.constant 0 : index
    %10 = vector.load %arg4[%c0_7, %c0_8] : memref<1x32xf32, #tpu.memory_space<vmem>>, vector<1x32xf32>
    %11 = vector.shape_cast %10 : vector<1x32xf32> to vector<1x1x32xf32>
    %12 = vector.broadcast %11 : vector<1x1x32xf32> to vector<8x16x32xf32>
    %13 = arith.mulf %3, %12 : vector<8x16x32xf32>
    %cst_9 = arith.constant dense<0.000000e+00> : vector<8x16xf32>
    %14 = vector.multi_reduction <add>, %13, %cst_9 [2] : vector<8x16x32xf32> to vector<8x16xf32>
    %15 = vector.shape_cast %14 : vector<8x16xf32> to vector<8x16x1xf32>
    %16 = arith.addf %9, %15 : vector<8x16x1xf32>
    %c0_10 = arith.constant 0 : index
    %c0_11 = arith.constant 0 : index
    %17 = vector.load %arg5[%c0_10, %c0_11] : memref<1x1xf32, #tpu.memory_space<vmem>>, vector<1x1xf32>
    %18 = vector.extract %17[0, 0] : f32 from vector<1x1xf32>
    %19 = vector.broadcast %18 : f32 to vector<8x16x1xf32>
    %20 = arith.addf %16, %19 : vector<8x16x1xf32>
    %cst_12 = arith.constant dense<0xFF800000> : vector<16x1xf32>
    %21 = vector.multi_reduction <maximumf>, %20, %cst_12 [0] : vector<8x16x1xf32> to vector<16x1xf32>
    %22 = vector.shape_cast %21 : vector<16x1xf32> to vector<1x16x1xf32>
    %23 = vector.broadcast %22 : vector<1x16x1xf32> to vector<8x16x1xf32>
    %24 = arith.subf %20, %23 : vector<8x16x1xf32>
    %25 = math.exp %24 : vector<8x16x1xf32>
    %cst_13 = arith.constant dense<0.000000e+00> : vector<16x1xf32>
    %26 = vector.multi_reduction <add>, %25, %cst_13 [0] : vector<8x16x1xf32> to vector<16x1xf32>
    %27 = vector.shape_cast %26 : vector<16x1xf32> to vector<1x16x1xf32>
    %28 = tpu.reciprocal %27 {approx = true} : vector<1x16x1xf32> -> vector<1x16x1xf32>
    %29 = vector.broadcast %28 : vector<1x16x1xf32> to vector<8x16x1xf32>
    %30 = arith.mulf %25, %29 : vector<8x16x1xf32>
    %31 = vector.broadcast %30 : vector<8x16x1xf32> to vector<8x16x32xf32>
    %32 = arith.mulf %31, %1 : vector<8x16x32xf32>
    %cst_14 = arith.constant dense<0.000000e+00> : vector<16x32xf32>
    %33 = vector.multi_reduction <add>, %32, %cst_14 [0] : vector<8x16x32xf32> to vector<16x32xf32>
    %34 = vector.broadcast %30 : vector<8x16x1xf32> to vector<8x16x32xf32>
    %35 = arith.mulf %34, %3 : vector<8x16x32xf32>
    %cst_15 = arith.constant dense<0.000000e+00> : vector<16x32xf32>
    %36 = vector.multi_reduction <add>, %35, %cst_15 [0] : vector<8x16x32xf32> to vector<16x32xf32>
    %37 = arith.truncf %33 : vector<16x32xf32> to vector<16x32xbf16>
    %c0_16 = arith.constant 0 : index
    %c0_17 = arith.constant 0 : index
    %38 = vector.load %arg6[%c0_16, %c0_17] : memref<32x5xbf16, #tpu.memory_space<vmem>>, vector<32x5xbf16>
    %cst_18 = arith.constant dense<0.000000e+00> : vector<16x5xf32>
    %39 = tpu.matmul %37, %38, %cst_18 {dimension_numbers = #tpu.dot_dimension_numbers<[1], [0], [0], [1], [0, 0, 1, 1], [], []>} : vector<16x32xbf16>, vector<32x5xbf16>, vector<16x5xf32> -> vector<16x5xf32>
    %40 = arith.truncf %36 : vector<16x32xf32> to vector<16x32xbf16>
    %c0_19 = arith.constant 0 : index
    %c0_20 = arith.constant 0 : index
    %41 = vector.load %arg7[%c0_19, %c0_20] : memref<32x5xbf16, #tpu.memory_space<vmem>>, vector<32x5xbf16>
    %cst_21 = arith.constant dense<0.000000e+00> : vector<16x5xf32>
    %42 = tpu.matmul %40, %41, %cst_21 {dimension_numbers = #tpu.dot_dimension_numbers<[1], [0], [0], [1], [0, 0, 1, 1], [], []>} : vector<16x32xbf16>, vector<32x5xbf16>, vector<16x5xf32> -> vector<16x5xf32>
    %43 = arith.addf %39, %42 : vector<16x5xf32>
    %c0_22 = arith.constant 0 : index
    %c0_23 = arith.constant 0 : index
    %44 = vector.load %arg8[%c0_22, %c0_23] : memref<1x5xf32, #tpu.memory_space<vmem>>, vector<1x5xf32>
    %45 = vector.broadcast %44 : vector<1x5xf32> to vector<16x5xf32>
    %46 = arith.addf %43, %45 : vector<16x5xf32>
    %c0_24 = arith.constant 0 : index
    %c0_25 = arith.constant 0 : index
    %47 = vector.load %arg9[%c0_24, %c0_25] : memref<16x5xf32, #tpu.memory_space<vmem>>, vector<16x5xf32>
    tpu.vector_store %arg9[%c0_24, %c0_25], %46 {strides = array<i32>} : memref<16x5xf32, #tpu.memory_space<vmem>>, vector<16x5xf32>,
    return
  }
  func.func @transform_0(%arg0: i32) -> (i32, i32, i32) {
    %c0_i32 = arith.constant 0 : i32
    %c0_i32_0 = arith.constant 0 : i32
    %c0_i32_1 = arith.constant 0 : i32
    return %c0_i32, %arg0, %c0_i32_0 : i32, i32, i32
  }
  func.func @transform_1(%arg0: i32) -> (i32, i32, i32) {
    %c0_i32 = arith.constant 0 : i32
    %c0_i32_0 = arith.constant 0 : i32
    %c0_i32_1 = arith.constant 0 : i32
    return %c0_i32, %arg0, %c0_i32_0 : i32, i32, i32
  }
  func.func @transform_2(%arg0: i32) -> (i32, i32) {
    %c0_i32 = arith.constant 0 : i32
    %c0_i32_0 = arith.constant 0 : i32
    %c0_i32_1 = arith.constant 0 : i32
    return %c0_i32, %c0_i32_0 : i32, i32
  }
  func.func @transform_3(%arg0: i32) -> (i32, i32) {
    %c0_i32 = arith.constant 0 : i32
    %c0_i32_0 = arith.constant 0 : i32
    %c0_i32_1 = arith.constant 0 : i32
    return %c0_i32, %c0_i32_0 : i32, i32
  }
  func.func @transform_4(%arg0: i32) -> (i32, i32) {
    %c0_i32 = arith.constant 0 : i32
    %c0_i32_0 = arith.constant 0 : i32
    %c0_i32_1 = arith.constant 0 : i32
    return %c0_i32, %c0_i32_0 : i32, i32
  }
  func.func @transform_5(%arg0: i32) -> (i32, i32) {
    %c0_i32 = arith.constant 0 : i32
    %c0_i32_0 = arith.constant 0 : i32
    %c0_i32_1 = arith.constant 0 : i32
    return %c0_i32, %c0_i32_0 : i32, i32
  }
  func.func @transform_6(%arg0: i32) -> (i32, i32) {
    %c0_i32 = arith.constant 0 : i32
    %c0_i32_0 = arith.constant 0 : i32
    %c0_i32_1 = arith.constant 0 : i32
    return %c0_i32, %c0_i32_0 : i32, i32
  }
  func.func @transform_7(%arg0: i32) -> (i32, i32) {
    %c0_i32 = arith.constant 0 : i32
    %c0_i32_0 = arith.constant 0 : i32
    %c0_i32_1 = arith.constant 0 : i32
    return %c0_i32, %c0_i32_0 : i32, i32
  }
  func.func @transform_8(%arg0: i32) -> (i32, i32) {
    %c0_i32 = arith.constant 0 : i32
    %c0_i32_0 = arith.constant 0 : i32
    return %arg0, %c0_i32 : i32, i32
  }
}

module attributes {stable_mosaic.version = 11 : i64} {
  func.func @bilstm_kernel(%arg0: i32, %arg1: memref<8x16x128xf32, #tpu.memory_space<vmem>>, %arg2: memref<8x16x128xf32, #tpu.memory_space<vmem>>, %arg3: memref<32x128xbf16, #tpu.memory_space<vmem>>, %arg4: memref<32x128xbf16, #tpu.memory_space<vmem>>, %arg5: memref<8x16x32xbf16, #tpu.memory_space<vmem>>, %arg6: memref<8x16x32xbf16, #tpu.memory_space<vmem>>, %arg7: memref<16x32xf32, #tpu.memory_space<vmem>>, %arg8: memref<16x32xf32, #tpu.memory_space<vmem>>, %arg9: memref<16x32xf32, #tpu.memory_space<vmem>>, %arg10: memref<16x32xf32, #tpu.memory_space<vmem>>) attributes {dimension_semantics = [#tpu.dimension_semantics<arbitrary>], iteration_bounds = array<i64: 1>, scalar_prefetch = 0 : i64, scratch_operands = 4 : i64, tpu.core_type = #tpu.core_type<tc>, window_params = [{transform_indices = @transform_0, window_bounds = array<i64: 8, 16, 128>}, {transform_indices = @transform_1, window_bounds = array<i64: 8, 16, 128>}, {pipeline_mode = #tpu.pipeline_mode<synchronous>, transform_indices = @transform_2, window_bounds = array<i64: 32, 128>}, {pipeline_mode = #tpu.pipeline_mode<synchronous>, transform_indices = @transform_3, window_bounds = array<i64: 32, 128>}, {transform_indices = @transform_4, window_bounds = array<i64: 8, 16, 32>}, {transform_indices = @transform_5, window_bounds = array<i64: 8, 16, 32>}]} {
    %c0_i32 = arith.constant 0 : i32
    %0 = arith.cmpi eq, %arg0, %c0_i32 : i32
    %1 = arith.extui %0 : i1 to i32
    %c0_i32_0 = arith.constant 0 : i32
    %2 = arith.cmpi ne, %1, %c0_i32_0 : i32
    scf.if %2 {
      %cst_164 = arith.constant 0.000000e+00 : f32
      %589 = vector.broadcast %cst_164 : f32 to vector<16x32xf32>
      %c0_165 = arith.constant 0 : index
      %c0_166 = arith.constant 0 : index
      %590 = vector.load %arg7[%c0_165, %c0_166] : memref<16x32xf32, #tpu.memory_space<vmem>>, vector<16x32xf32>
      tpu.vector_store %arg7[%c0_165, %c0_166], %589 {strides = array<i32>} : memref<16x32xf32, #tpu.memory_space<vmem>>, vector<16x32xf32>,
      %cst_167 = arith.constant 0.000000e+00 : f32
      %591 = vector.broadcast %cst_167 : f32 to vector<16x32xf32>
      %c0_168 = arith.constant 0 : index
      %c0_169 = arith.constant 0 : index
      %592 = vector.load %arg8[%c0_168, %c0_169] : memref<16x32xf32, #tpu.memory_space<vmem>>, vector<16x32xf32>
      tpu.vector_store %arg8[%c0_168, %c0_169], %591 {strides = array<i32>} : memref<16x32xf32, #tpu.memory_space<vmem>>, vector<16x32xf32>,
      %cst_170 = arith.constant 0.000000e+00 : f32
      %593 = vector.broadcast %cst_170 : f32 to vector<16x32xf32>
      %c0_171 = arith.constant 0 : index
      %c0_172 = arith.constant 0 : index
      %594 = vector.load %arg9[%c0_171, %c0_172] : memref<16x32xf32, #tpu.memory_space<vmem>>, vector<16x32xf32>
      tpu.vector_store %arg9[%c0_171, %c0_172], %593 {strides = array<i32>} : memref<16x32xf32, #tpu.memory_space<vmem>>, vector<16x32xf32>,
      %cst_173 = arith.constant 0.000000e+00 : f32
      %595 = vector.broadcast %cst_173 : f32 to vector<16x32xf32>
      %c0_174 = arith.constant 0 : index
      %c0_175 = arith.constant 0 : index
      %596 = vector.load %arg10[%c0_174, %c0_175] : memref<16x32xf32, #tpu.memory_space<vmem>>, vector<16x32xf32>
      tpu.vector_store %arg10[%c0_174, %c0_175], %595 {strides = array<i32>} : memref<16x32xf32, #tpu.memory_space<vmem>>, vector<16x32xf32>,
    } else {
    }
    %c0 = arith.constant 0 : index
    %c0_1 = arith.constant 0 : index
    %3 = vector.load %arg3[%c0, %c0_1] : memref<32x128xbf16, #tpu.memory_space<vmem>>, vector<32x128xbf16>
    %c0_2 = arith.constant 0 : index
    %c0_3 = arith.constant 0 : index
    %4 = vector.load %arg4[%c0_2, %c0_3] : memref<32x128xbf16, #tpu.memory_space<vmem>>, vector<32x128xbf16>
    %c0_4 = arith.constant 0 : index
    %c0_5 = arith.constant 0 : index
    %5 = vector.load %arg7[%c0_4, %c0_5] : memref<16x32xf32, #tpu.memory_space<vmem>>, vector<16x32xf32>
    %c0_6 = arith.constant 0 : index
    %c0_7 = arith.constant 0 : index
    %6 = vector.load %arg8[%c0_6, %c0_7] : memref<16x32xf32, #tpu.memory_space<vmem>>, vector<16x32xf32>
    %c0_8 = arith.constant 0 : index
    %c0_9 = arith.constant 0 : index
    %7 = vector.load %arg9[%c0_8, %c0_9] : memref<16x32xf32, #tpu.memory_space<vmem>>, vector<16x32xf32>
    %c0_10 = arith.constant 0 : index
    %c0_11 = arith.constant 0 : index
    %8 = vector.load %arg10[%c0_10, %c0_11] : memref<16x32xf32, #tpu.memory_space<vmem>>, vector<16x32xf32>
    %c0_i32_12 = arith.constant 0 : i32
    %9 = arith.index_cast %c0_i32_12 : i32 to index
    %c0_13 = arith.constant 0 : index
    %c0_14 = arith.constant 0 : index
    %10 = vector.load %arg1[%9, %c0_13, %c0_14] : memref<8x16x128xf32, #tpu.memory_space<vmem>>, vector<1x16x128xf32>
    %11 = vector.shape_cast %10 : vector<1x16x128xf32> to vector<16x128xf32>
    %12 = arith.truncf %5 : vector<16x32xf32> to vector<16x32xbf16>
    %cst = arith.constant dense<0.000000e+00> : vector<16x128xf32>
    %13 = tpu.matmul %12, %3, %cst {dimension_numbers = #tpu.dot_dimension_numbers<[1], [0], [0], [1], [0, 0, 1, 1], [], []>} : vector<16x32xbf16>, vector<32x128xbf16>, vector<16x128xf32> -> vector<16x128xf32>
    %14 = arith.addf %11, %13 : vector<16x128xf32>
    %15 = vector.extract_strided_slice %14 {offsets = [0, 0], sizes = [16, 32], strides = [1, 1]} : vector<16x128xf32> to vector<16x32xf32>
    %16 = arith.negf %15 : vector<16x32xf32>
    %17 = math.exp %16 : vector<16x32xf32>
    %cst_15 = arith.constant 1.000000e+00 : f32
    %18 = vector.broadcast %cst_15 : f32 to vector<16x32xf32>
    %19 = arith.addf %18, %17 : vector<16x32xf32>
    %20 = arith.divf %18, %19 : vector<16x32xf32>
    %21 = vector.extract_strided_slice %14 {offsets = [0, 32], sizes = [16, 32], strides = [1, 1]} : vector<16x128xf32> to vector<16x32xf32>
    %22 = arith.negf %21 : vector<16x32xf32>
    %23 = math.exp %22 : vector<16x32xf32>
    %cst_16 = arith.constant 1.000000e+00 : f32
    %24 = vector.broadcast %cst_16 : f32 to vector<16x32xf32>
    %25 = arith.addf %24, %23 : vector<16x32xf32>
    %26 = arith.divf %24, %25 : vector<16x32xf32>
    %27 = vector.extract_strided_slice %14 {offsets = [0, 64], sizes = [16, 32], strides = [1, 1]} : vector<16x128xf32> to vector<16x32xf32>
    %28 = math.tanh %27 : vector<16x32xf32>
    %29 = vector.extract_strided_slice %14 {offsets = [0, 96], sizes = [16, 32], strides = [1, 1]} : vector<16x128xf32> to vector<16x32xf32>
    %30 = arith.negf %29 : vector<16x32xf32>
    %31 = math.exp %30 : vector<16x32xf32>
    %cst_17 = arith.constant 1.000000e+00 : f32
    %32 = vector.broadcast %cst_17 : f32 to vector<16x32xf32>
    %33 = arith.addf %32, %31 : vector<16x32xf32>
    %34 = arith.divf %32, %33 : vector<16x32xf32>
    %35 = arith.mulf %26, %6 : vector<16x32xf32>
    %36 = arith.mulf %20, %28 : vector<16x32xf32>
    %37 = arith.addf %35, %36 : vector<16x32xf32>
    %38 = math.tanh %37 : vector<16x32xf32>
    %39 = arith.mulf %34, %38 : vector<16x32xf32>
    %40 = vector.shape_cast %39 : vector<16x32xf32> to vector<1x16x32xf32>
    %41 = arith.truncf %40 : vector<1x16x32xf32> to vector<1x16x32xbf16>
    %42 = arith.index_cast %c0_i32_12 : i32 to index
    %c0_18 = arith.constant 0 : index
    %c0_19 = arith.constant 0 : index
    %43 = vector.load %arg5[%42, %c0_18, %c0_19] : memref<8x16x32xbf16, #tpu.memory_space<vmem>>, vector<1x16x32xbf16>
    tpu.vector_store %arg5[%42, %c0_18, %c0_19], %41 {strides = array<i32>} : memref<8x16x32xbf16, #tpu.memory_space<vmem>>, vector<1x16x32xbf16>,
    %c7_i32 = arith.constant 7 : i32
    %44 = arith.subi %c7_i32, %c0_i32_12 : i32
    %45 = arith.index_cast %44 : i32 to index
    %c0_20 = arith.constant 0 : index
    %c0_21 = arith.constant 0 : index
    %46 = vector.load %arg2[%45, %c0_20, %c0_21] : memref<8x16x128xf32, #tpu.memory_space<vmem>>, vector<1x16x128xf32>
    %47 = vector.shape_cast %46 : vector<1x16x128xf32> to vector<16x128xf32>
    %48 = arith.truncf %7 : vector<16x32xf32> to vector<16x32xbf16>
    %cst_22 = arith.constant dense<0.000000e+00> : vector<16x128xf32>
    %49 = tpu.matmul %48, %4, %cst_22 {dimension_numbers = #tpu.dot_dimension_numbers<[1], [0], [0], [1], [0, 0, 1, 1], [], []>} : vector<16x32xbf16>, vector<32x128xbf16>, vector<16x128xf32> -> vector<16x128xf32>
    %50 = arith.addf %47, %49 : vector<16x128xf32>
    %51 = vector.extract_strided_slice %50 {offsets = [0, 0], sizes = [16, 32], strides = [1, 1]} : vector<16x128xf32> to vector<16x32xf32>
    %52 = arith.negf %51 : vector<16x32xf32>
    %53 = math.exp %52 : vector<16x32xf32>
    %cst_23 = arith.constant 1.000000e+00 : f32
    %54 = vector.broadcast %cst_23 : f32 to vector<16x32xf32>
    %55 = arith.addf %54, %53 : vector<16x32xf32>
    %56 = arith.divf %54, %55 : vector<16x32xf32>
    %57 = vector.extract_strided_slice %50 {offsets = [0, 32], sizes = [16, 32], strides = [1, 1]} : vector<16x128xf32> to vector<16x32xf32>
    %58 = arith.negf %57 : vector<16x32xf32>
    %59 = math.exp %58 : vector<16x32xf32>
    %cst_24 = arith.constant 1.000000e+00 : f32
    %60 = vector.broadcast %cst_24 : f32 to vector<16x32xf32>
    %61 = arith.addf %60, %59 : vector<16x32xf32>
    %62 = arith.divf %60, %61 : vector<16x32xf32>
    %63 = vector.extract_strided_slice %50 {offsets = [0, 64], sizes = [16, 32], strides = [1, 1]} : vector<16x128xf32> to vector<16x32xf32>
    %64 = math.tanh %63 : vector<16x32xf32>
    %65 = vector.extract_strided_slice %50 {offsets = [0, 96], sizes = [16, 32], strides = [1, 1]} : vector<16x128xf32> to vector<16x32xf32>
    %66 = arith.negf %65 : vector<16x32xf32>
    %67 = math.exp %66 : vector<16x32xf32>
    %cst_25 = arith.constant 1.000000e+00 : f32
    %68 = vector.broadcast %cst_25 : f32 to vector<16x32xf32>
    %69 = arith.addf %68, %67 : vector<16x32xf32>
    %70 = arith.divf %68, %69 : vector<16x32xf32>
    %71 = arith.mulf %62, %8 : vector<16x32xf32>
    %72 = arith.mulf %56, %64 : vector<16x32xf32>
    %73 = arith.addf %71, %72 : vector<16x32xf32>
    %74 = math.tanh %73 : vector<16x32xf32>
    %75 = arith.mulf %70, %74 : vector<16x32xf32>
    %76 = vector.shape_cast %75 : vector<16x32xf32> to vector<1x16x32xf32>
    %77 = arith.truncf %76 : vector<1x16x32xf32> to vector<1x16x32xbf16>
    %c7_i32_26 = arith.constant 7 : i32
    %78 = arith.subi %c7_i32_26, %c0_i32_12 : i32
    %79 = arith.index_cast %78 : i32 to index
    %c0_27 = arith.constant 0 : index
    %c0_28 = arith.constant 0 : index
    %80 = vector.load %arg6[%79, %c0_27, %c0_28] : memref<8x16x32xbf16, #tpu.memory_space<vmem>>, vector<1x16x32xbf16>
    tpu.vector_store %arg6[%79, %c0_27, %c0_28], %77 {strides = array<i32>} : memref<8x16x32xbf16, #tpu.memory_space<vmem>>, vector<1x16x32xbf16>,
    %c1_i32 = arith.constant 1 : i32
    %81 = arith.index_cast %c1_i32 : i32 to index
    %c0_29 = arith.constant 0 : index
    %c0_30 = arith.constant 0 : index
    %82 = vector.load %arg1[%81, %c0_29, %c0_30] : memref<8x16x128xf32, #tpu.memory_space<vmem>>, vector<1x16x128xf32>
    %83 = vector.shape_cast %82 : vector<1x16x128xf32> to vector<16x128xf32>
    %84 = arith.truncf %39 : vector<16x32xf32> to vector<16x32xbf16>
    %cst_31 = arith.constant dense<0.000000e+00> : vector<16x128xf32>
    %85 = tpu.matmul %84, %3, %cst_31 {dimension_numbers = #tpu.dot_dimension_numbers<[1], [0], [0], [1], [0, 0, 1, 1], [], []>} : vector<16x32xbf16>, vector<32x128xbf16>, vector<16x128xf32> -> vector<16x128xf32>
    %86 = arith.addf %83, %85 : vector<16x128xf32>
    %87 = vector.extract_strided_slice %86 {offsets = [0, 0], sizes = [16, 32], strides = [1, 1]} : vector<16x128xf32> to vector<16x32xf32>
    %88 = arith.negf %87 : vector<16x32xf32>
    %89 = math.exp %88 : vector<16x32xf32>
    %cst_32 = arith.constant 1.000000e+00 : f32
    %90 = vector.broadcast %cst_32 : f32 to vector<16x32xf32>
    %91 = arith.addf %90, %89 : vector<16x32xf32>
    %92 = arith.divf %90, %91 : vector<16x32xf32>
    %93 = vector.extract_strided_slice %86 {offsets = [0, 32], sizes = [16, 32], strides = [1, 1]} : vector<16x128xf32> to vector<16x32xf32>
    %94 = arith.negf %93 : vector<16x32xf32>
    %95 = math.exp %94 : vector<16x32xf32>
    %cst_33 = arith.constant 1.000000e+00 : f32
    %96 = vector.broadcast %cst_33 : f32 to vector<16x32xf32>
    %97 = arith.addf %96, %95 : vector<16x32xf32>
    %98 = arith.divf %96, %97 : vector<16x32xf32>
    %99 = vector.extract_strided_slice %86 {offsets = [0, 64], sizes = [16, 32], strides = [1, 1]} : vector<16x128xf32> to vector<16x32xf32>
    %100 = math.tanh %99 : vector<16x32xf32>
    %101 = vector.extract_strided_slice %86 {offsets = [0, 96], sizes = [16, 32], strides = [1, 1]} : vector<16x128xf32> to vector<16x32xf32>
    %102 = arith.negf %101 : vector<16x32xf32>
    %103 = math.exp %102 : vector<16x32xf32>
    %cst_34 = arith.constant 1.000000e+00 : f32
    %104 = vector.broadcast %cst_34 : f32 to vector<16x32xf32>
    %105 = arith.addf %104, %103 : vector<16x32xf32>
    %106 = arith.divf %104, %105 : vector<16x32xf32>
    %107 = arith.mulf %98, %37 : vector<16x32xf32>
    %108 = arith.mulf %92, %100 : vector<16x32xf32>
    %109 = arith.addf %107, %108 : vector<16x32xf32>
    %110 = math.tanh %109 : vector<16x32xf32>
    %111 = arith.mulf %106, %110 : vector<16x32xf32>
    %112 = vector.shape_cast %111 : vector<16x32xf32> to vector<1x16x32xf32>
    %113 = arith.truncf %112 : vector<1x16x32xf32> to vector<1x16x32xbf16>
    %114 = arith.index_cast %c1_i32 : i32 to index
    %c0_35 = arith.constant 0 : index
    %c0_36 = arith.constant 0 : index
    %115 = vector.load %arg5[%114, %c0_35, %c0_36] : memref<8x16x32xbf16, #tpu.memory_space<vmem>>, vector<1x16x32xbf16>
    tpu.vector_store %arg5[%114, %c0_35, %c0_36], %113 {strides = array<i32>} : memref<8x16x32xbf16, #tpu.memory_space<vmem>>, vector<1x16x32xbf16>,
    %c7_i32_37 = arith.constant 7 : i32
    %116 = arith.subi %c7_i32_37, %c1_i32 : i32
    %117 = arith.index_cast %116 : i32 to index
    %c0_38 = arith.constant 0 : index
    %c0_39 = arith.constant 0 : index
    %118 = vector.load %arg2[%117, %c0_38, %c0_39] : memref<8x16x128xf32, #tpu.memory_space<vmem>>, vector<1x16x128xf32>
    %119 = vector.shape_cast %118 : vector<1x16x128xf32> to vector<16x128xf32>
    %120 = arith.truncf %75 : vector<16x32xf32> to vector<16x32xbf16>
    %cst_40 = arith.constant dense<0.000000e+00> : vector<16x128xf32>
    %121 = tpu.matmul %120, %4, %cst_40 {dimension_numbers = #tpu.dot_dimension_numbers<[1], [0], [0], [1], [0, 0, 1, 1], [], []>} : vector<16x32xbf16>, vector<32x128xbf16>, vector<16x128xf32> -> vector<16x128xf32>
    %122 = arith.addf %119, %121 : vector<16x128xf32>
    %123 = vector.extract_strided_slice %122 {offsets = [0, 0], sizes = [16, 32], strides = [1, 1]} : vector<16x128xf32> to vector<16x32xf32>
    %124 = arith.negf %123 : vector<16x32xf32>
    %125 = math.exp %124 : vector<16x32xf32>
    %cst_41 = arith.constant 1.000000e+00 : f32
    %126 = vector.broadcast %cst_41 : f32 to vector<16x32xf32>
    %127 = arith.addf %126, %125 : vector<16x32xf32>
    %128 = arith.divf %126, %127 : vector<16x32xf32>
    %129 = vector.extract_strided_slice %122 {offsets = [0, 32], sizes = [16, 32], strides = [1, 1]} : vector<16x128xf32> to vector<16x32xf32>
    %130 = arith.negf %129 : vector<16x32xf32>
    %131 = math.exp %130 : vector<16x32xf32>
    %cst_42 = arith.constant 1.000000e+00 : f32
    %132 = vector.broadcast %cst_42 : f32 to vector<16x32xf32>
    %133 = arith.addf %132, %131 : vector<16x32xf32>
    %134 = arith.divf %132, %133 : vector<16x32xf32>
    %135 = vector.extract_strided_slice %122 {offsets = [0, 64], sizes = [16, 32], strides = [1, 1]} : vector<16x128xf32> to vector<16x32xf32>
    %136 = math.tanh %135 : vector<16x32xf32>
    %137 = vector.extract_strided_slice %122 {offsets = [0, 96], sizes = [16, 32], strides = [1, 1]} : vector<16x128xf32> to vector<16x32xf32>
    %138 = arith.negf %137 : vector<16x32xf32>
    %139 = math.exp %138 : vector<16x32xf32>
    %cst_43 = arith.constant 1.000000e+00 : f32
    %140 = vector.broadcast %cst_43 : f32 to vector<16x32xf32>
    %141 = arith.addf %140, %139 : vector<16x32xf32>
    %142 = arith.divf %140, %141 : vector<16x32xf32>
    %143 = arith.mulf %134, %73 : vector<16x32xf32>
    %144 = arith.mulf %128, %136 : vector<16x32xf32>
    %145 = arith.addf %143, %144 : vector<16x32xf32>
    %146 = math.tanh %145 : vector<16x32xf32>
    %147 = arith.mulf %142, %146 : vector<16x32xf32>
    %148 = vector.shape_cast %147 : vector<16x32xf32> to vector<1x16x32xf32>
    %149 = arith.truncf %148 : vector<1x16x32xf32> to vector<1x16x32xbf16>
    %c7_i32_44 = arith.constant 7 : i32
    %150 = arith.subi %c7_i32_44, %c1_i32 : i32
    %151 = arith.index_cast %150 : i32 to index
    %c0_45 = arith.constant 0 : index
    %c0_46 = arith.constant 0 : index
    %152 = vector.load %arg6[%151, %c0_45, %c0_46] : memref<8x16x32xbf16, #tpu.memory_space<vmem>>, vector<1x16x32xbf16>
    tpu.vector_store %arg6[%151, %c0_45, %c0_46], %149 {strides = array<i32>} : memref<8x16x32xbf16, #tpu.memory_space<vmem>>, vector<1x16x32xbf16>,
    %c2_i32 = arith.constant 2 : i32
    %153 = arith.index_cast %c2_i32 : i32 to index
    %c0_47 = arith.constant 0 : index
    %c0_48 = arith.constant 0 : index
    %154 = vector.load %arg1[%153, %c0_47, %c0_48] : memref<8x16x128xf32, #tpu.memory_space<vmem>>, vector<1x16x128xf32>
    %155 = vector.shape_cast %154 : vector<1x16x128xf32> to vector<16x128xf32>
    %156 = arith.truncf %111 : vector<16x32xf32> to vector<16x32xbf16>
    %cst_49 = arith.constant dense<0.000000e+00> : vector<16x128xf32>
    %157 = tpu.matmul %156, %3, %cst_49 {dimension_numbers = #tpu.dot_dimension_numbers<[1], [0], [0], [1], [0, 0, 1, 1], [], []>} : vector<16x32xbf16>, vector<32x128xbf16>, vector<16x128xf32> -> vector<16x128xf32>
    %158 = arith.addf %155, %157 : vector<16x128xf32>
    %159 = vector.extract_strided_slice %158 {offsets = [0, 0], sizes = [16, 32], strides = [1, 1]} : vector<16x128xf32> to vector<16x32xf32>
    %160 = arith.negf %159 : vector<16x32xf32>
    %161 = math.exp %160 : vector<16x32xf32>
    %cst_50 = arith.constant 1.000000e+00 : f32
    %162 = vector.broadcast %cst_50 : f32 to vector<16x32xf32>
    %163 = arith.addf %162, %161 : vector<16x32xf32>
    %164 = arith.divf %162, %163 : vector<16x32xf32>
    %165 = vector.extract_strided_slice %158 {offsets = [0, 32], sizes = [16, 32], strides = [1, 1]} : vector<16x128xf32> to vector<16x32xf32>
    %166 = arith.negf %165 : vector<16x32xf32>
    %167 = math.exp %166 : vector<16x32xf32>
    %cst_51 = arith.constant 1.000000e+00 : f32
    %168 = vector.broadcast %cst_51 : f32 to vector<16x32xf32>
    %169 = arith.addf %168, %167 : vector<16x32xf32>
    %170 = arith.divf %168, %169 : vector<16x32xf32>
    %171 = vector.extract_strided_slice %158 {offsets = [0, 64], sizes = [16, 32], strides = [1, 1]} : vector<16x128xf32> to vector<16x32xf32>
    %172 = math.tanh %171 : vector<16x32xf32>
    %173 = vector.extract_strided_slice %158 {offsets = [0, 96], sizes = [16, 32], strides = [1, 1]} : vector<16x128xf32> to vector<16x32xf32>
    %174 = arith.negf %173 : vector<16x32xf32>
    %175 = math.exp %174 : vector<16x32xf32>
    %cst_52 = arith.constant 1.000000e+00 : f32
    %176 = vector.broadcast %cst_52 : f32 to vector<16x32xf32>
    %177 = arith.addf %176, %175 : vector<16x32xf32>
    %178 = arith.divf %176, %177 : vector<16x32xf32>
    %179 = arith.mulf %170, %109 : vector<16x32xf32>
    %180 = arith.mulf %164, %172 : vector<16x32xf32>
    %181 = arith.addf %179, %180 : vector<16x32xf32>
    %182 = math.tanh %181 : vector<16x32xf32>
    %183 = arith.mulf %178, %182 : vector<16x32xf32>
    %184 = vector.shape_cast %183 : vector<16x32xf32> to vector<1x16x32xf32>
    %185 = arith.truncf %184 : vector<1x16x32xf32> to vector<1x16x32xbf16>
    %186 = arith.index_cast %c2_i32 : i32 to index
    %c0_53 = arith.constant 0 : index
    %c0_54 = arith.constant 0 : index
    %187 = vector.load %arg5[%186, %c0_53, %c0_54] : memref<8x16x32xbf16, #tpu.memory_space<vmem>>, vector<1x16x32xbf16>
    tpu.vector_store %arg5[%186, %c0_53, %c0_54], %185 {strides = array<i32>} : memref<8x16x32xbf16, #tpu.memory_space<vmem>>, vector<1x16x32xbf16>,
    %c7_i32_55 = arith.constant 7 : i32
    %188 = arith.subi %c7_i32_55, %c2_i32 : i32
    %189 = arith.index_cast %188 : i32 to index
    %c0_56 = arith.constant 0 : index
    %c0_57 = arith.constant 0 : index
    %190 = vector.load %arg2[%189, %c0_56, %c0_57] : memref<8x16x128xf32, #tpu.memory_space<vmem>>, vector<1x16x128xf32>
    %191 = vector.shape_cast %190 : vector<1x16x128xf32> to vector<16x128xf32>
    %192 = arith.truncf %147 : vector<16x32xf32> to vector<16x32xbf16>
    %cst_58 = arith.constant dense<0.000000e+00> : vector<16x128xf32>
    %193 = tpu.matmul %192, %4, %cst_58 {dimension_numbers = #tpu.dot_dimension_numbers<[1], [0], [0], [1], [0, 0, 1, 1], [], []>} : vector<16x32xbf16>, vector<32x128xbf16>, vector<16x128xf32> -> vector<16x128xf32>
    %194 = arith.addf %191, %193 : vector<16x128xf32>
    %195 = vector.extract_strided_slice %194 {offsets = [0, 0], sizes = [16, 32], strides = [1, 1]} : vector<16x128xf32> to vector<16x32xf32>
    %196 = arith.negf %195 : vector<16x32xf32>
    %197 = math.exp %196 : vector<16x32xf32>
    %cst_59 = arith.constant 1.000000e+00 : f32
    %198 = vector.broadcast %cst_59 : f32 to vector<16x32xf32>
    %199 = arith.addf %198, %197 : vector<16x32xf32>
    %200 = arith.divf %198, %199 : vector<16x32xf32>
    %201 = vector.extract_strided_slice %194 {offsets = [0, 32], sizes = [16, 32], strides = [1, 1]} : vector<16x128xf32> to vector<16x32xf32>
    %202 = arith.negf %201 : vector<16x32xf32>
    %203 = math.exp %202 : vector<16x32xf32>
    %cst_60 = arith.constant 1.000000e+00 : f32
    %204 = vector.broadcast %cst_60 : f32 to vector<16x32xf32>
    %205 = arith.addf %204, %203 : vector<16x32xf32>
    %206 = arith.divf %204, %205 : vector<16x32xf32>
    %207 = vector.extract_strided_slice %194 {offsets = [0, 64], sizes = [16, 32], strides = [1, 1]} : vector<16x128xf32> to vector<16x32xf32>
    %208 = math.tanh %207 : vector<16x32xf32>
    %209 = vector.extract_strided_slice %194 {offsets = [0, 96], sizes = [16, 32], strides = [1, 1]} : vector<16x128xf32> to vector<16x32xf32>
    %210 = arith.negf %209 : vector<16x32xf32>
    %211 = math.exp %210 : vector<16x32xf32>
    %cst_61 = arith.constant 1.000000e+00 : f32
    %212 = vector.broadcast %cst_61 : f32 to vector<16x32xf32>
    %213 = arith.addf %212, %211 : vector<16x32xf32>
    %214 = arith.divf %212, %213 : vector<16x32xf32>
    %215 = arith.mulf %206, %145 : vector<16x32xf32>
    %216 = arith.mulf %200, %208 : vector<16x32xf32>
    %217 = arith.addf %215, %216 : vector<16x32xf32>
    %218 = math.tanh %217 : vector<16x32xf32>
    %219 = arith.mulf %214, %218 : vector<16x32xf32>
    %220 = vector.shape_cast %219 : vector<16x32xf32> to vector<1x16x32xf32>
    %221 = arith.truncf %220 : vector<1x16x32xf32> to vector<1x16x32xbf16>
    %c7_i32_62 = arith.constant 7 : i32
    %222 = arith.subi %c7_i32_62, %c2_i32 : i32
    %223 = arith.index_cast %222 : i32 to index
    %c0_63 = arith.constant 0 : index
    %c0_64 = arith.constant 0 : index
    %224 = vector.load %arg6[%223, %c0_63, %c0_64] : memref<8x16x32xbf16, #tpu.memory_space<vmem>>, vector<1x16x32xbf16>
    tpu.vector_store %arg6[%223, %c0_63, %c0_64], %221 {strides = array<i32>} : memref<8x16x32xbf16, #tpu.memory_space<vmem>>, vector<1x16x32xbf16>,
    %c3_i32 = arith.constant 3 : i32
    %225 = arith.index_cast %c3_i32 : i32 to index
    %c0_65 = arith.constant 0 : index
    %c0_66 = arith.constant 0 : index
    %226 = vector.load %arg1[%225, %c0_65, %c0_66] : memref<8x16x128xf32, #tpu.memory_space<vmem>>, vector<1x16x128xf32>
    %227 = vector.shape_cast %226 : vector<1x16x128xf32> to vector<16x128xf32>
    %228 = arith.truncf %183 : vector<16x32xf32> to vector<16x32xbf16>
    %cst_67 = arith.constant dense<0.000000e+00> : vector<16x128xf32>
    %229 = tpu.matmul %228, %3, %cst_67 {dimension_numbers = #tpu.dot_dimension_numbers<[1], [0], [0], [1], [0, 0, 1, 1], [], []>} : vector<16x32xbf16>, vector<32x128xbf16>, vector<16x128xf32> -> vector<16x128xf32>
    %230 = arith.addf %227, %229 : vector<16x128xf32>
    %231 = vector.extract_strided_slice %230 {offsets = [0, 0], sizes = [16, 32], strides = [1, 1]} : vector<16x128xf32> to vector<16x32xf32>
    %232 = arith.negf %231 : vector<16x32xf32>
    %233 = math.exp %232 : vector<16x32xf32>
    %cst_68 = arith.constant 1.000000e+00 : f32
    %234 = vector.broadcast %cst_68 : f32 to vector<16x32xf32>
    %235 = arith.addf %234, %233 : vector<16x32xf32>
    %236 = arith.divf %234, %235 : vector<16x32xf32>
    %237 = vector.extract_strided_slice %230 {offsets = [0, 32], sizes = [16, 32], strides = [1, 1]} : vector<16x128xf32> to vector<16x32xf32>
    %238 = arith.negf %237 : vector<16x32xf32>
    %239 = math.exp %238 : vector<16x32xf32>
    %cst_69 = arith.constant 1.000000e+00 : f32
    %240 = vector.broadcast %cst_69 : f32 to vector<16x32xf32>
    %241 = arith.addf %240, %239 : vector<16x32xf32>
    %242 = arith.divf %240, %241 : vector<16x32xf32>
    %243 = vector.extract_strided_slice %230 {offsets = [0, 64], sizes = [16, 32], strides = [1, 1]} : vector<16x128xf32> to vector<16x32xf32>
    %244 = math.tanh %243 : vector<16x32xf32>
    %245 = vector.extract_strided_slice %230 {offsets = [0, 96], sizes = [16, 32], strides = [1, 1]} : vector<16x128xf32> to vector<16x32xf32>
    %246 = arith.negf %245 : vector<16x32xf32>
    %247 = math.exp %246 : vector<16x32xf32>
    %cst_70 = arith.constant 1.000000e+00 : f32
    %248 = vector.broadcast %cst_70 : f32 to vector<16x32xf32>
    %249 = arith.addf %248, %247 : vector<16x32xf32>
    %250 = arith.divf %248, %249 : vector<16x32xf32>
    %251 = arith.mulf %242, %181 : vector<16x32xf32>
    %252 = arith.mulf %236, %244 : vector<16x32xf32>
    %253 = arith.addf %251, %252 : vector<16x32xf32>
    %254 = math.tanh %253 : vector<16x32xf32>
    %255 = arith.mulf %250, %254 : vector<16x32xf32>
    %256 = vector.shape_cast %255 : vector<16x32xf32> to vector<1x16x32xf32>
    %257 = arith.truncf %256 : vector<1x16x32xf32> to vector<1x16x32xbf16>
    %258 = arith.index_cast %c3_i32 : i32 to index
    %c0_71 = arith.constant 0 : index
    %c0_72 = arith.constant 0 : index
    %259 = vector.load %arg5[%258, %c0_71, %c0_72] : memref<8x16x32xbf16, #tpu.memory_space<vmem>>, vector<1x16x32xbf16>
    tpu.vector_store %arg5[%258, %c0_71, %c0_72], %257 {strides = array<i32>} : memref<8x16x32xbf16, #tpu.memory_space<vmem>>, vector<1x16x32xbf16>,
    %c7_i32_73 = arith.constant 7 : i32
    %260 = arith.subi %c7_i32_73, %c3_i32 : i32
    %261 = arith.index_cast %260 : i32 to index
    %c0_74 = arith.constant 0 : index
    %c0_75 = arith.constant 0 : index
    %262 = vector.load %arg2[%261, %c0_74, %c0_75] : memref<8x16x128xf32, #tpu.memory_space<vmem>>, vector<1x16x128xf32>
    %263 = vector.shape_cast %262 : vector<1x16x128xf32> to vector<16x128xf32>
    %264 = arith.truncf %219 : vector<16x32xf32> to vector<16x32xbf16>
    %cst_76 = arith.constant dense<0.000000e+00> : vector<16x128xf32>
    %265 = tpu.matmul %264, %4, %cst_76 {dimension_numbers = #tpu.dot_dimension_numbers<[1], [0], [0], [1], [0, 0, 1, 1], [], []>} : vector<16x32xbf16>, vector<32x128xbf16>, vector<16x128xf32> -> vector<16x128xf32>
    %266 = arith.addf %263, %265 : vector<16x128xf32>
    %267 = vector.extract_strided_slice %266 {offsets = [0, 0], sizes = [16, 32], strides = [1, 1]} : vector<16x128xf32> to vector<16x32xf32>
    %268 = arith.negf %267 : vector<16x32xf32>
    %269 = math.exp %268 : vector<16x32xf32>
    %cst_77 = arith.constant 1.000000e+00 : f32
    %270 = vector.broadcast %cst_77 : f32 to vector<16x32xf32>
    %271 = arith.addf %270, %269 : vector<16x32xf32>
    %272 = arith.divf %270, %271 : vector<16x32xf32>
    %273 = vector.extract_strided_slice %266 {offsets = [0, 32], sizes = [16, 32], strides = [1, 1]} : vector<16x128xf32> to vector<16x32xf32>
    %274 = arith.negf %273 : vector<16x32xf32>
    %275 = math.exp %274 : vector<16x32xf32>
    %cst_78 = arith.constant 1.000000e+00 : f32
    %276 = vector.broadcast %cst_78 : f32 to vector<16x32xf32>
    %277 = arith.addf %276, %275 : vector<16x32xf32>
    %278 = arith.divf %276, %277 : vector<16x32xf32>
    %279 = vector.extract_strided_slice %266 {offsets = [0, 64], sizes = [16, 32], strides = [1, 1]} : vector<16x128xf32> to vector<16x32xf32>
    %280 = math.tanh %279 : vector<16x32xf32>
    %281 = vector.extract_strided_slice %266 {offsets = [0, 96], sizes = [16, 32], strides = [1, 1]} : vector<16x128xf32> to vector<16x32xf32>
    %282 = arith.negf %281 : vector<16x32xf32>
    %283 = math.exp %282 : vector<16x32xf32>
    %cst_79 = arith.constant 1.000000e+00 : f32
    %284 = vector.broadcast %cst_79 : f32 to vector<16x32xf32>
    %285 = arith.addf %284, %283 : vector<16x32xf32>
    %286 = arith.divf %284, %285 : vector<16x32xf32>
    %287 = arith.mulf %278, %217 : vector<16x32xf32>
    %288 = arith.mulf %272, %280 : vector<16x32xf32>
    %289 = arith.addf %287, %288 : vector<16x32xf32>
    %290 = math.tanh %289 : vector<16x32xf32>
    %291 = arith.mulf %286, %290 : vector<16x32xf32>
    %292 = vector.shape_cast %291 : vector<16x32xf32> to vector<1x16x32xf32>
    %293 = arith.truncf %292 : vector<1x16x32xf32> to vector<1x16x32xbf16>
    %c7_i32_80 = arith.constant 7 : i32
    %294 = arith.subi %c7_i32_80, %c3_i32 : i32
    %295 = arith.index_cast %294 : i32 to index
    %c0_81 = arith.constant 0 : index
    %c0_82 = arith.constant 0 : index
    %296 = vector.load %arg6[%295, %c0_81, %c0_82] : memref<8x16x32xbf16, #tpu.memory_space<vmem>>, vector<1x16x32xbf16>
    tpu.vector_store %arg6[%295, %c0_81, %c0_82], %293 {strides = array<i32>} : memref<8x16x32xbf16, #tpu.memory_space<vmem>>, vector<1x16x32xbf16>,
    %c4_i32 = arith.constant 4 : i32
    %297 = arith.index_cast %c4_i32 : i32 to index
    %c0_83 = arith.constant 0 : index
    %c0_84 = arith.constant 0 : index
    %298 = vector.load %arg1[%297, %c0_83, %c0_84] : memref<8x16x128xf32, #tpu.memory_space<vmem>>, vector<1x16x128xf32>
    %299 = vector.shape_cast %298 : vector<1x16x128xf32> to vector<16x128xf32>
    %300 = arith.truncf %255 : vector<16x32xf32> to vector<16x32xbf16>
    %cst_85 = arith.constant dense<0.000000e+00> : vector<16x128xf32>
    %301 = tpu.matmul %300, %3, %cst_85 {dimension_numbers = #tpu.dot_dimension_numbers<[1], [0], [0], [1], [0, 0, 1, 1], [], []>} : vector<16x32xbf16>, vector<32x128xbf16>, vector<16x128xf32> -> vector<16x128xf32>
    %302 = arith.addf %299, %301 : vector<16x128xf32>
    %303 = vector.extract_strided_slice %302 {offsets = [0, 0], sizes = [16, 32], strides = [1, 1]} : vector<16x128xf32> to vector<16x32xf32>
    %304 = arith.negf %303 : vector<16x32xf32>
    %305 = math.exp %304 : vector<16x32xf32>
    %cst_86 = arith.constant 1.000000e+00 : f32
    %306 = vector.broadcast %cst_86 : f32 to vector<16x32xf32>
    %307 = arith.addf %306, %305 : vector<16x32xf32>
    %308 = arith.divf %306, %307 : vector<16x32xf32>
    %309 = vector.extract_strided_slice %302 {offsets = [0, 32], sizes = [16, 32], strides = [1, 1]} : vector<16x128xf32> to vector<16x32xf32>
    %310 = arith.negf %309 : vector<16x32xf32>
    %311 = math.exp %310 : vector<16x32xf32>
    %cst_87 = arith.constant 1.000000e+00 : f32
    %312 = vector.broadcast %cst_87 : f32 to vector<16x32xf32>
    %313 = arith.addf %312, %311 : vector<16x32xf32>
    %314 = arith.divf %312, %313 : vector<16x32xf32>
    %315 = vector.extract_strided_slice %302 {offsets = [0, 64], sizes = [16, 32], strides = [1, 1]} : vector<16x128xf32> to vector<16x32xf32>
    %316 = math.tanh %315 : vector<16x32xf32>
    %317 = vector.extract_strided_slice %302 {offsets = [0, 96], sizes = [16, 32], strides = [1, 1]} : vector<16x128xf32> to vector<16x32xf32>
    %318 = arith.negf %317 : vector<16x32xf32>
    %319 = math.exp %318 : vector<16x32xf32>
    %cst_88 = arith.constant 1.000000e+00 : f32
    %320 = vector.broadcast %cst_88 : f32 to vector<16x32xf32>
    %321 = arith.addf %320, %319 : vector<16x32xf32>
    %322 = arith.divf %320, %321 : vector<16x32xf32>
    %323 = arith.mulf %314, %253 : vector<16x32xf32>
    %324 = arith.mulf %308, %316 : vector<16x32xf32>
    %325 = arith.addf %323, %324 : vector<16x32xf32>
    %326 = math.tanh %325 : vector<16x32xf32>
    %327 = arith.mulf %322, %326 : vector<16x32xf32>
    %328 = vector.shape_cast %327 : vector<16x32xf32> to vector<1x16x32xf32>
    %329 = arith.truncf %328 : vector<1x16x32xf32> to vector<1x16x32xbf16>
    %330 = arith.index_cast %c4_i32 : i32 to index
    %c0_89 = arith.constant 0 : index
    %c0_90 = arith.constant 0 : index
    %331 = vector.load %arg5[%330, %c0_89, %c0_90] : memref<8x16x32xbf16, #tpu.memory_space<vmem>>, vector<1x16x32xbf16>
    tpu.vector_store %arg5[%330, %c0_89, %c0_90], %329 {strides = array<i32>} : memref<8x16x32xbf16, #tpu.memory_space<vmem>>, vector<1x16x32xbf16>,
    %c7_i32_91 = arith.constant 7 : i32
    %332 = arith.subi %c7_i32_91, %c4_i32 : i32
    %333 = arith.index_cast %332 : i32 to index
    %c0_92 = arith.constant 0 : index
    %c0_93 = arith.constant 0 : index
    %334 = vector.load %arg2[%333, %c0_92, %c0_93] : memref<8x16x128xf32, #tpu.memory_space<vmem>>, vector<1x16x128xf32>
    %335 = vector.shape_cast %334 : vector<1x16x128xf32> to vector<16x128xf32>
    %336 = arith.truncf %291 : vector<16x32xf32> to vector<16x32xbf16>
    %cst_94 = arith.constant dense<0.000000e+00> : vector<16x128xf32>
    %337 = tpu.matmul %336, %4, %cst_94 {dimension_numbers = #tpu.dot_dimension_numbers<[1], [0], [0], [1], [0, 0, 1, 1], [], []>} : vector<16x32xbf16>, vector<32x128xbf16>, vector<16x128xf32> -> vector<16x128xf32>
    %338 = arith.addf %335, %337 : vector<16x128xf32>
    %339 = vector.extract_strided_slice %338 {offsets = [0, 0], sizes = [16, 32], strides = [1, 1]} : vector<16x128xf32> to vector<16x32xf32>
    %340 = arith.negf %339 : vector<16x32xf32>
    %341 = math.exp %340 : vector<16x32xf32>
    %cst_95 = arith.constant 1.000000e+00 : f32
    %342 = vector.broadcast %cst_95 : f32 to vector<16x32xf32>
    %343 = arith.addf %342, %341 : vector<16x32xf32>
    %344 = arith.divf %342, %343 : vector<16x32xf32>
    %345 = vector.extract_strided_slice %338 {offsets = [0, 32], sizes = [16, 32], strides = [1, 1]} : vector<16x128xf32> to vector<16x32xf32>
    %346 = arith.negf %345 : vector<16x32xf32>
    %347 = math.exp %346 : vector<16x32xf32>
    %cst_96 = arith.constant 1.000000e+00 : f32
    %348 = vector.broadcast %cst_96 : f32 to vector<16x32xf32>
    %349 = arith.addf %348, %347 : vector<16x32xf32>
    %350 = arith.divf %348, %349 : vector<16x32xf32>
    %351 = vector.extract_strided_slice %338 {offsets = [0, 64], sizes = [16, 32], strides = [1, 1]} : vector<16x128xf32> to vector<16x32xf32>
    %352 = math.tanh %351 : vector<16x32xf32>
    %353 = vector.extract_strided_slice %338 {offsets = [0, 96], sizes = [16, 32], strides = [1, 1]} : vector<16x128xf32> to vector<16x32xf32>
    %354 = arith.negf %353 : vector<16x32xf32>
    %355 = math.exp %354 : vector<16x32xf32>
    %cst_97 = arith.constant 1.000000e+00 : f32
    %356 = vector.broadcast %cst_97 : f32 to vector<16x32xf32>
    %357 = arith.addf %356, %355 : vector<16x32xf32>
    %358 = arith.divf %356, %357 : vector<16x32xf32>
    %359 = arith.mulf %350, %289 : vector<16x32xf32>
    %360 = arith.mulf %344, %352 : vector<16x32xf32>
    %361 = arith.addf %359, %360 : vector<16x32xf32>
    %362 = math.tanh %361 : vector<16x32xf32>
    %363 = arith.mulf %358, %362 : vector<16x32xf32>
    %364 = vector.shape_cast %363 : vector<16x32xf32> to vector<1x16x32xf32>
    %365 = arith.truncf %364 : vector<1x16x32xf32> to vector<1x16x32xbf16>
    %c7_i32_98 = arith.constant 7 : i32
    %366 = arith.subi %c7_i32_98, %c4_i32 : i32
    %367 = arith.index_cast %366 : i32 to index
    %c0_99 = arith.constant 0 : index
    %c0_100 = arith.constant 0 : index
    %368 = vector.load %arg6[%367, %c0_99, %c0_100] : memref<8x16x32xbf16, #tpu.memory_space<vmem>>, vector<1x16x32xbf16>
    tpu.vector_store %arg6[%367, %c0_99, %c0_100], %365 {strides = array<i32>} : memref<8x16x32xbf16, #tpu.memory_space<vmem>>, vector<1x16x32xbf16>,
    %c5_i32 = arith.constant 5 : i32
    %369 = arith.index_cast %c5_i32 : i32 to index
    %c0_101 = arith.constant 0 : index
    %c0_102 = arith.constant 0 : index
    %370 = vector.load %arg1[%369, %c0_101, %c0_102] : memref<8x16x128xf32, #tpu.memory_space<vmem>>, vector<1x16x128xf32>
    %371 = vector.shape_cast %370 : vector<1x16x128xf32> to vector<16x128xf32>
    %372 = arith.truncf %327 : vector<16x32xf32> to vector<16x32xbf16>
    %cst_103 = arith.constant dense<0.000000e+00> : vector<16x128xf32>
    %373 = tpu.matmul %372, %3, %cst_103 {dimension_numbers = #tpu.dot_dimension_numbers<[1], [0], [0], [1], [0, 0, 1, 1], [], []>} : vector<16x32xbf16>, vector<32x128xbf16>, vector<16x128xf32> -> vector<16x128xf32>
    %374 = arith.addf %371, %373 : vector<16x128xf32>
    %375 = vector.extract_strided_slice %374 {offsets = [0, 0], sizes = [16, 32], strides = [1, 1]} : vector<16x128xf32> to vector<16x32xf32>
    %376 = arith.negf %375 : vector<16x32xf32>
    %377 = math.exp %376 : vector<16x32xf32>
    %cst_104 = arith.constant 1.000000e+00 : f32
    %378 = vector.broadcast %cst_104 : f32 to vector<16x32xf32>
    %379 = arith.addf %378, %377 : vector<16x32xf32>
    %380 = arith.divf %378, %379 : vector<16x32xf32>
    %381 = vector.extract_strided_slice %374 {offsets = [0, 32], sizes = [16, 32], strides = [1, 1]} : vector<16x128xf32> to vector<16x32xf32>
    %382 = arith.negf %381 : vector<16x32xf32>
    %383 = math.exp %382 : vector<16x32xf32>
    %cst_105 = arith.constant 1.000000e+00 : f32
    %384 = vector.broadcast %cst_105 : f32 to vector<16x32xf32>
    %385 = arith.addf %384, %383 : vector<16x32xf32>
    %386 = arith.divf %384, %385 : vector<16x32xf32>
    %387 = vector.extract_strided_slice %374 {offsets = [0, 64], sizes = [16, 32], strides = [1, 1]} : vector<16x128xf32> to vector<16x32xf32>
    %388 = math.tanh %387 : vector<16x32xf32>
    %389 = vector.extract_strided_slice %374 {offsets = [0, 96], sizes = [16, 32], strides = [1, 1]} : vector<16x128xf32> to vector<16x32xf32>
    %390 = arith.negf %389 : vector<16x32xf32>
    %391 = math.exp %390 : vector<16x32xf32>
    %cst_106 = arith.constant 1.000000e+00 : f32
    %392 = vector.broadcast %cst_106 : f32 to vector<16x32xf32>
    %393 = arith.addf %392, %391 : vector<16x32xf32>
    %394 = arith.divf %392, %393 : vector<16x32xf32>
    %395 = arith.mulf %386, %325 : vector<16x32xf32>
    %396 = arith.mulf %380, %388 : vector<16x32xf32>
    %397 = arith.addf %395, %396 : vector<16x32xf32>
    %398 = math.tanh %397 : vector<16x32xf32>
    %399 = arith.mulf %394, %398 : vector<16x32xf32>
    %400 = vector.shape_cast %399 : vector<16x32xf32> to vector<1x16x32xf32>
    %401 = arith.truncf %400 : vector<1x16x32xf32> to vector<1x16x32xbf16>
    %402 = arith.index_cast %c5_i32 : i32 to index
    %c0_107 = arith.constant 0 : index
    %c0_108 = arith.constant 0 : index
    %403 = vector.load %arg5[%402, %c0_107, %c0_108] : memref<8x16x32xbf16, #tpu.memory_space<vmem>>, vector<1x16x32xbf16>
    tpu.vector_store %arg5[%402, %c0_107, %c0_108], %401 {strides = array<i32>} : memref<8x16x32xbf16, #tpu.memory_space<vmem>>, vector<1x16x32xbf16>,
    %c7_i32_109 = arith.constant 7 : i32
    %404 = arith.subi %c7_i32_109, %c5_i32 : i32
    %405 = arith.index_cast %404 : i32 to index
    %c0_110 = arith.constant 0 : index
    %c0_111 = arith.constant 0 : index
    %406 = vector.load %arg2[%405, %c0_110, %c0_111] : memref<8x16x128xf32, #tpu.memory_space<vmem>>, vector<1x16x128xf32>
    %407 = vector.shape_cast %406 : vector<1x16x128xf32> to vector<16x128xf32>
    %408 = arith.truncf %363 : vector<16x32xf32> to vector<16x32xbf16>
    %cst_112 = arith.constant dense<0.000000e+00> : vector<16x128xf32>
    %409 = tpu.matmul %408, %4, %cst_112 {dimension_numbers = #tpu.dot_dimension_numbers<[1], [0], [0], [1], [0, 0, 1, 1], [], []>} : vector<16x32xbf16>, vector<32x128xbf16>, vector<16x128xf32> -> vector<16x128xf32>
    %410 = arith.addf %407, %409 : vector<16x128xf32>
    %411 = vector.extract_strided_slice %410 {offsets = [0, 0], sizes = [16, 32], strides = [1, 1]} : vector<16x128xf32> to vector<16x32xf32>
    %412 = arith.negf %411 : vector<16x32xf32>
    %413 = math.exp %412 : vector<16x32xf32>
    %cst_113 = arith.constant 1.000000e+00 : f32
    %414 = vector.broadcast %cst_113 : f32 to vector<16x32xf32>
    %415 = arith.addf %414, %413 : vector<16x32xf32>
    %416 = arith.divf %414, %415 : vector<16x32xf32>
    %417 = vector.extract_strided_slice %410 {offsets = [0, 32], sizes = [16, 32], strides = [1, 1]} : vector<16x128xf32> to vector<16x32xf32>
    %418 = arith.negf %417 : vector<16x32xf32>
    %419 = math.exp %418 : vector<16x32xf32>
    %cst_114 = arith.constant 1.000000e+00 : f32
    %420 = vector.broadcast %cst_114 : f32 to vector<16x32xf32>
    %421 = arith.addf %420, %419 : vector<16x32xf32>
    %422 = arith.divf %420, %421 : vector<16x32xf32>
    %423 = vector.extract_strided_slice %410 {offsets = [0, 64], sizes = [16, 32], strides = [1, 1]} : vector<16x128xf32> to vector<16x32xf32>
    %424 = math.tanh %423 : vector<16x32xf32>
    %425 = vector.extract_strided_slice %410 {offsets = [0, 96], sizes = [16, 32], strides = [1, 1]} : vector<16x128xf32> to vector<16x32xf32>
    %426 = arith.negf %425 : vector<16x32xf32>
    %427 = math.exp %426 : vector<16x32xf32>
    %cst_115 = arith.constant 1.000000e+00 : f32
    %428 = vector.broadcast %cst_115 : f32 to vector<16x32xf32>
    %429 = arith.addf %428, %427 : vector<16x32xf32>
    %430 = arith.divf %428, %429 : vector<16x32xf32>
    %431 = arith.mulf %422, %361 : vector<16x32xf32>
    %432 = arith.mulf %416, %424 : vector<16x32xf32>
    %433 = arith.addf %431, %432 : vector<16x32xf32>
    %434 = math.tanh %433 : vector<16x32xf32>
    %435 = arith.mulf %430, %434 : vector<16x32xf32>
    %436 = vector.shape_cast %435 : vector<16x32xf32> to vector<1x16x32xf32>
    %437 = arith.truncf %436 : vector<1x16x32xf32> to vector<1x16x32xbf16>
    %c7_i32_116 = arith.constant 7 : i32
    %438 = arith.subi %c7_i32_116, %c5_i32 : i32
    %439 = arith.index_cast %438 : i32 to index
    %c0_117 = arith.constant 0 : index
    %c0_118 = arith.constant 0 : index
    %440 = vector.load %arg6[%439, %c0_117, %c0_118] : memref<8x16x32xbf16, #tpu.memory_space<vmem>>, vector<1x16x32xbf16>
    tpu.vector_store %arg6[%439, %c0_117, %c0_118], %437 {strides = array<i32>} : memref<8x16x32xbf16, #tpu.memory_space<vmem>>, vector<1x16x32xbf16>,
    %c6_i32 = arith.constant 6 : i32
    %441 = arith.index_cast %c6_i32 : i32 to index
    %c0_119 = arith.constant 0 : index
    %c0_120 = arith.constant 0 : index
    %442 = vector.load %arg1[%441, %c0_119, %c0_120] : memref<8x16x128xf32, #tpu.memory_space<vmem>>, vector<1x16x128xf32>
    %443 = vector.shape_cast %442 : vector<1x16x128xf32> to vector<16x128xf32>
    %444 = arith.truncf %399 : vector<16x32xf32> to vector<16x32xbf16>
    %cst_121 = arith.constant dense<0.000000e+00> : vector<16x128xf32>
    %445 = tpu.matmul %444, %3, %cst_121 {dimension_numbers = #tpu.dot_dimension_numbers<[1], [0], [0], [1], [0, 0, 1, 1], [], []>} : vector<16x32xbf16>, vector<32x128xbf16>, vector<16x128xf32> -> vector<16x128xf32>
    %446 = arith.addf %443, %445 : vector<16x128xf32>
    %447 = vector.extract_strided_slice %446 {offsets = [0, 0], sizes = [16, 32], strides = [1, 1]} : vector<16x128xf32> to vector<16x32xf32>
    %448 = arith.negf %447 : vector<16x32xf32>
    %449 = math.exp %448 : vector<16x32xf32>
    %cst_122 = arith.constant 1.000000e+00 : f32
    %450 = vector.broadcast %cst_122 : f32 to vector<16x32xf32>
    %451 = arith.addf %450, %449 : vector<16x32xf32>
    %452 = arith.divf %450, %451 : vector<16x32xf32>
    %453 = vector.extract_strided_slice %446 {offsets = [0, 32], sizes = [16, 32], strides = [1, 1]} : vector<16x128xf32> to vector<16x32xf32>
    %454 = arith.negf %453 : vector<16x32xf32>
    %455 = math.exp %454 : vector<16x32xf32>
    %cst_123 = arith.constant 1.000000e+00 : f32
    %456 = vector.broadcast %cst_123 : f32 to vector<16x32xf32>
    %457 = arith.addf %456, %455 : vector<16x32xf32>
    %458 = arith.divf %456, %457 : vector<16x32xf32>
    %459 = vector.extract_strided_slice %446 {offsets = [0, 64], sizes = [16, 32], strides = [1, 1]} : vector<16x128xf32> to vector<16x32xf32>
    %460 = math.tanh %459 : vector<16x32xf32>
    %461 = vector.extract_strided_slice %446 {offsets = [0, 96], sizes = [16, 32], strides = [1, 1]} : vector<16x128xf32> to vector<16x32xf32>
    %462 = arith.negf %461 : vector<16x32xf32>
    %463 = math.exp %462 : vector<16x32xf32>
    %cst_124 = arith.constant 1.000000e+00 : f32
    %464 = vector.broadcast %cst_124 : f32 to vector<16x32xf32>
    %465 = arith.addf %464, %463 : vector<16x32xf32>
    %466 = arith.divf %464, %465 : vector<16x32xf32>
    %467 = arith.mulf %458, %397 : vector<16x32xf32>
    %468 = arith.mulf %452, %460 : vector<16x32xf32>
    %469 = arith.addf %467, %468 : vector<16x32xf32>
    %470 = math.tanh %469 : vector<16x32xf32>
    %471 = arith.mulf %466, %470 : vector<16x32xf32>
    %472 = vector.shape_cast %471 : vector<16x32xf32> to vector<1x16x32xf32>
    %473 = arith.truncf %472 : vector<1x16x32xf32> to vector<1x16x32xbf16>
    %474 = arith.index_cast %c6_i32 : i32 to index
    %c0_125 = arith.constant 0 : index
    %c0_126 = arith.constant 0 : index
    %475 = vector.load %arg5[%474, %c0_125, %c0_126] : memref<8x16x32xbf16, #tpu.memory_space<vmem>>, vector<1x16x32xbf16>
    tpu.vector_store %arg5[%474, %c0_125, %c0_126], %473 {strides = array<i32>} : memref<8x16x32xbf16, #tpu.memory_space<vmem>>, vector<1x16x32xbf16>,
    %c7_i32_127 = arith.constant 7 : i32
    %476 = arith.subi %c7_i32_127, %c6_i32 : i32
    %477 = arith.index_cast %476 : i32 to index
    %c0_128 = arith.constant 0 : index
    %c0_129 = arith.constant 0 : index
    %478 = vector.load %arg2[%477, %c0_128, %c0_129] : memref<8x16x128xf32, #tpu.memory_space<vmem>>, vector<1x16x128xf32>
    %479 = vector.shape_cast %478 : vector<1x16x128xf32> to vector<16x128xf32>
    %480 = arith.truncf %435 : vector<16x32xf32> to vector<16x32xbf16>
    %cst_130 = arith.constant dense<0.000000e+00> : vector<16x128xf32>
    %481 = tpu.matmul %480, %4, %cst_130 {dimension_numbers = #tpu.dot_dimension_numbers<[1], [0], [0], [1], [0, 0, 1, 1], [], []>} : vector<16x32xbf16>, vector<32x128xbf16>, vector<16x128xf32> -> vector<16x128xf32>
    %482 = arith.addf %479, %481 : vector<16x128xf32>
    %483 = vector.extract_strided_slice %482 {offsets = [0, 0], sizes = [16, 32], strides = [1, 1]} : vector<16x128xf32> to vector<16x32xf32>
    %484 = arith.negf %483 : vector<16x32xf32>
    %485 = math.exp %484 : vector<16x32xf32>
    %cst_131 = arith.constant 1.000000e+00 : f32
    %486 = vector.broadcast %cst_131 : f32 to vector<16x32xf32>
    %487 = arith.addf %486, %485 : vector<16x32xf32>
    %488 = arith.divf %486, %487 : vector<16x32xf32>
    %489 = vector.extract_strided_slice %482 {offsets = [0, 32], sizes = [16, 32], strides = [1, 1]} : vector<16x128xf32> to vector<16x32xf32>
    %490 = arith.negf %489 : vector<16x32xf32>
    %491 = math.exp %490 : vector<16x32xf32>
    %cst_132 = arith.constant 1.000000e+00 : f32
    %492 = vector.broadcast %cst_132 : f32 to vector<16x32xf32>
    %493 = arith.addf %492, %491 : vector<16x32xf32>
    %494 = arith.divf %492, %493 : vector<16x32xf32>
    %495 = vector.extract_strided_slice %482 {offsets = [0, 64], sizes = [16, 32], strides = [1, 1]} : vector<16x128xf32> to vector<16x32xf32>
    %496 = math.tanh %495 : vector<16x32xf32>
    %497 = vector.extract_strided_slice %482 {offsets = [0, 96], sizes = [16, 32], strides = [1, 1]} : vector<16x128xf32> to vector<16x32xf32>
    %498 = arith.negf %497 : vector<16x32xf32>
    %499 = math.exp %498 : vector<16x32xf32>
    %cst_133 = arith.constant 1.000000e+00 : f32
    %500 = vector.broadcast %cst_133 : f32 to vector<16x32xf32>
    %501 = arith.addf %500, %499 : vector<16x32xf32>
    %502 = arith.divf %500, %501 : vector<16x32xf32>
    %503 = arith.mulf %494, %433 : vector<16x32xf32>
    %504 = arith.mulf %488, %496 : vector<16x32xf32>
    %505 = arith.addf %503, %504 : vector<16x32xf32>
    %506 = math.tanh %505 : vector<16x32xf32>
    %507 = arith.mulf %502, %506 : vector<16x32xf32>
    %508 = vector.shape_cast %507 : vector<16x32xf32> to vector<1x16x32xf32>
    %509 = arith.truncf %508 : vector<1x16x32xf32> to vector<1x16x32xbf16>
    %c7_i32_134 = arith.constant 7 : i32
    %510 = arith.subi %c7_i32_134, %c6_i32 : i32
    %511 = arith.index_cast %510 : i32 to index
    %c0_135 = arith.constant 0 : index
    %c0_136 = arith.constant 0 : index
    %512 = vector.load %arg6[%511, %c0_135, %c0_136] : memref<8x16x32xbf16, #tpu.memory_space<vmem>>, vector<1x16x32xbf16>
    tpu.vector_store %arg6[%511, %c0_135, %c0_136], %509 {strides = array<i32>} : memref<8x16x32xbf16, #tpu.memory_space<vmem>>, vector<1x16x32xbf16>,
    %c7_i32_137 = arith.constant 7 : i32
    %513 = arith.index_cast %c7_i32_137 : i32 to index
    %c0_138 = arith.constant 0 : index
    %c0_139 = arith.constant 0 : index
    %514 = vector.load %arg1[%513, %c0_138, %c0_139] : memref<8x16x128xf32, #tpu.memory_space<vmem>>, vector<1x16x128xf32>
    %515 = vector.shape_cast %514 : vector<1x16x128xf32> to vector<16x128xf32>
    %516 = arith.truncf %471 : vector<16x32xf32> to vector<16x32xbf16>
    %cst_140 = arith.constant dense<0.000000e+00> : vector<16x128xf32>
    %517 = tpu.matmul %516, %3, %cst_140 {dimension_numbers = #tpu.dot_dimension_numbers<[1], [0], [0], [1], [0, 0, 1, 1], [], []>} : vector<16x32xbf16>, vector<32x128xbf16>, vector<16x128xf32> -> vector<16x128xf32>
    %518 = arith.addf %515, %517 : vector<16x128xf32>
    %519 = vector.extract_strided_slice %518 {offsets = [0, 0], sizes = [16, 32], strides = [1, 1]} : vector<16x128xf32> to vector<16x32xf32>
    %520 = arith.negf %519 : vector<16x32xf32>
    %521 = math.exp %520 : vector<16x32xf32>
    %cst_141 = arith.constant 1.000000e+00 : f32
    %522 = vector.broadcast %cst_141 : f32 to vector<16x32xf32>
    %523 = arith.addf %522, %521 : vector<16x32xf32>
    %524 = arith.divf %522, %523 : vector<16x32xf32>
    %525 = vector.extract_strided_slice %518 {offsets = [0, 32], sizes = [16, 32], strides = [1, 1]} : vector<16x128xf32> to vector<16x32xf32>
    %526 = arith.negf %525 : vector<16x32xf32>
    %527 = math.exp %526 : vector<16x32xf32>
    %cst_142 = arith.constant 1.000000e+00 : f32
    %528 = vector.broadcast %cst_142 : f32 to vector<16x32xf32>
    %529 = arith.addf %528, %527 : vector<16x32xf32>
    %530 = arith.divf %528, %529 : vector<16x32xf32>
    %531 = vector.extract_strided_slice %518 {offsets = [0, 64], sizes = [16, 32], strides = [1, 1]} : vector<16x128xf32> to vector<16x32xf32>
    %532 = math.tanh %531 : vector<16x32xf32>
    %533 = vector.extract_strided_slice %518 {offsets = [0, 96], sizes = [16, 32], strides = [1, 1]} : vector<16x128xf32> to vector<16x32xf32>
    %534 = arith.negf %533 : vector<16x32xf32>
    %535 = math.exp %534 : vector<16x32xf32>
    %cst_143 = arith.constant 1.000000e+00 : f32
    %536 = vector.broadcast %cst_143 : f32 to vector<16x32xf32>
    %537 = arith.addf %536, %535 : vector<16x32xf32>
    %538 = arith.divf %536, %537 : vector<16x32xf32>
    %539 = arith.mulf %530, %469 : vector<16x32xf32>
    %540 = arith.mulf %524, %532 : vector<16x32xf32>
    %541 = arith.addf %539, %540 : vector<16x32xf32>
    %542 = math.tanh %541 : vector<16x32xf32>
    %543 = arith.mulf %538, %542 : vector<16x32xf32>
    %544 = vector.shape_cast %543 : vector<16x32xf32> to vector<1x16x32xf32>
    %545 = arith.truncf %544 : vector<1x16x32xf32> to vector<1x16x32xbf16>
    %546 = arith.index_cast %c7_i32_137 : i32 to index
    %c0_144 = arith.constant 0 : index
    %c0_145 = arith.constant 0 : index
    %547 = vector.load %arg5[%546, %c0_144, %c0_145] : memref<8x16x32xbf16, #tpu.memory_space<vmem>>, vector<1x16x32xbf16>
    tpu.vector_store %arg5[%546, %c0_144, %c0_145], %545 {strides = array<i32>} : memref<8x16x32xbf16, #tpu.memory_space<vmem>>, vector<1x16x32xbf16>,
    %c7_i32_146 = arith.constant 7 : i32
    %548 = arith.subi %c7_i32_146, %c7_i32_137 : i32
    %549 = arith.index_cast %548 : i32 to index
    %c0_147 = arith.constant 0 : index
    %c0_148 = arith.constant 0 : index
    %550 = vector.load %arg2[%549, %c0_147, %c0_148] : memref<8x16x128xf32, #tpu.memory_space<vmem>>, vector<1x16x128xf32>
    %551 = vector.shape_cast %550 : vector<1x16x128xf32> to vector<16x128xf32>
    %552 = arith.truncf %507 : vector<16x32xf32> to vector<16x32xbf16>
    %cst_149 = arith.constant dense<0.000000e+00> : vector<16x128xf32>
    %553 = tpu.matmul %552, %4, %cst_149 {dimension_numbers = #tpu.dot_dimension_numbers<[1], [0], [0], [1], [0, 0, 1, 1], [], []>} : vector<16x32xbf16>, vector<32x128xbf16>, vector<16x128xf32> -> vector<16x128xf32>
    %554 = arith.addf %551, %553 : vector<16x128xf32>
    %555 = vector.extract_strided_slice %554 {offsets = [0, 0], sizes = [16, 32], strides = [1, 1]} : vector<16x128xf32> to vector<16x32xf32>
    %556 = arith.negf %555 : vector<16x32xf32>
    %557 = math.exp %556 : vector<16x32xf32>
    %cst_150 = arith.constant 1.000000e+00 : f32
    %558 = vector.broadcast %cst_150 : f32 to vector<16x32xf32>
    %559 = arith.addf %558, %557 : vector<16x32xf32>
    %560 = arith.divf %558, %559 : vector<16x32xf32>
    %561 = vector.extract_strided_slice %554 {offsets = [0, 32], sizes = [16, 32], strides = [1, 1]} : vector<16x128xf32> to vector<16x32xf32>
    %562 = arith.negf %561 : vector<16x32xf32>
    %563 = math.exp %562 : vector<16x32xf32>
    %cst_151 = arith.constant 1.000000e+00 : f32
    %564 = vector.broadcast %cst_151 : f32 to vector<16x32xf32>
    %565 = arith.addf %564, %563 : vector<16x32xf32>
    %566 = arith.divf %564, %565 : vector<16x32xf32>
    %567 = vector.extract_strided_slice %554 {offsets = [0, 64], sizes = [16, 32], strides = [1, 1]} : vector<16x128xf32> to vector<16x32xf32>
    %568 = math.tanh %567 : vector<16x32xf32>
    %569 = vector.extract_strided_slice %554 {offsets = [0, 96], sizes = [16, 32], strides = [1, 1]} : vector<16x128xf32> to vector<16x32xf32>
    %570 = arith.negf %569 : vector<16x32xf32>
    %571 = math.exp %570 : vector<16x32xf32>
    %cst_152 = arith.constant 1.000000e+00 : f32
    %572 = vector.broadcast %cst_152 : f32 to vector<16x32xf32>
    %573 = arith.addf %572, %571 : vector<16x32xf32>
    %574 = arith.divf %572, %573 : vector<16x32xf32>
    %575 = arith.mulf %566, %505 : vector<16x32xf32>
    %576 = arith.mulf %560, %568 : vector<16x32xf32>
    %577 = arith.addf %575, %576 : vector<16x32xf32>
    %578 = math.tanh %577 : vector<16x32xf32>
    %579 = arith.mulf %574, %578 : vector<16x32xf32>
    %580 = vector.shape_cast %579 : vector<16x32xf32> to vector<1x16x32xf32>
    %581 = arith.truncf %580 : vector<1x16x32xf32> to vector<1x16x32xbf16>
    %c7_i32_153 = arith.constant 7 : i32
    %582 = arith.subi %c7_i32_153, %c7_i32_137 : i32
    %583 = arith.index_cast %582 : i32 to index
    %c0_154 = arith.constant 0 : index
    %c0_155 = arith.constant 0 : index
    %584 = vector.load %arg6[%583, %c0_154, %c0_155] : memref<8x16x32xbf16, #tpu.memory_space<vmem>>, vector<1x16x32xbf16>
    tpu.vector_store %arg6[%583, %c0_154, %c0_155], %581 {strides = array<i32>} : memref<8x16x32xbf16, #tpu.memory_space<vmem>>, vector<1x16x32xbf16>,
    %c8_i32 = arith.constant 8 : i32
    %c0_156 = arith.constant 0 : index
    %c0_157 = arith.constant 0 : index
    %585 = vector.load %arg7[%c0_156, %c0_157] : memref<16x32xf32, #tpu.memory_space<vmem>>, vector<16x32xf32>
    tpu.vector_store %arg7[%c0_156, %c0_157], %543 {strides = array<i32>} : memref<16x32xf32, #tpu.memory_space<vmem>>, vector<16x32xf32>,
    %c0_158 = arith.constant 0 : index
    %c0_159 = arith.constant 0 : index
    %586 = vector.load %arg8[%c0_158, %c0_159] : memref<16x32xf32, #tpu.memory_space<vmem>>, vector<16x32xf32>
    tpu.vector_store %arg8[%c0_158, %c0_159], %541 {strides = array<i32>} : memref<16x32xf32, #tpu.memory_space<vmem>>, vector<16x32xf32>,
    %c0_160 = arith.constant 0 : index
    %c0_161 = arith.constant 0 : index
    %587 = vector.load %arg9[%c0_160, %c0_161] : memref<16x32xf32, #tpu.memory_space<vmem>>, vector<16x32xf32>
    tpu.vector_store %arg9[%c0_160, %c0_161], %579 {strides = array<i32>} : memref<16x32xf32, #tpu.memory_space<vmem>>, vector<16x32xf32>,
    %c0_162 = arith.constant 0 : index
    %c0_163 = arith.constant 0 : index
    %588 = vector.load %arg10[%c0_162, %c0_163] : memref<16x32xf32, #tpu.memory_space<vmem>>, vector<16x32xf32>
    tpu.vector_store %arg10[%c0_162, %c0_163], %577 {strides = array<i32>} : memref<16x32xf32, #tpu.memory_space<vmem>>, vector<16x32xf32>,
    return
  }
  func.func @transform_0(%arg0: i32) -> (i32, i32, i32) {
    %c0_i32 = arith.constant 0 : i32
    %c0_i32_0 = arith.constant 0 : i32
    %c0_i32_1 = arith.constant 0 : i32
    return %arg0, %c0_i32, %c0_i32_0 : i32, i32, i32
  }
  func.func @transform_1(%arg0: i32) -> (i32, i32, i32) {
    %c0_i32 = arith.constant 0 : i32
    %0 = arith.subi %c0_i32, %arg0 : i32
    %c0_i32_0 = arith.constant 0 : i32
    %c1_i32 = arith.constant 1 : i32
    %c0_i32_1 = arith.constant 0 : i32
    return %0, %c0_i32_0, %c1_i32 : i32, i32, i32
  }
  func.func @transform_2(%arg0: i32) -> (i32, i32) {
    %c0_i32 = arith.constant 0 : i32
    %c0_i32_0 = arith.constant 0 : i32
    %c0_i32_1 = arith.constant 0 : i32
    return %c0_i32, %c0_i32_0 : i32, i32
  }
  func.func @transform_3(%arg0: i32) -> (i32, i32) {
    %c0_i32 = arith.constant 0 : i32
    %c0_i32_0 = arith.constant 0 : i32
    %c0_i32_1 = arith.constant 0 : i32
    return %c0_i32, %c0_i32_0 : i32, i32
  }
  func.func @transform_4(%arg0: i32) -> (i32, i32, i32) {
    %c0_i32 = arith.constant 0 : i32
    %c0_i32_0 = arith.constant 0 : i32
    %c0_i32_1 = arith.constant 0 : i32
    return %arg0, %c0_i32, %c0_i32_0 : i32, i32, i32
  }
  func.func @transform_5(%arg0: i32) -> (i32, i32, i32) {
    %c0_i32 = arith.constant 0 : i32
    %0 = arith.subi %c0_i32, %arg0 : i32
    %c0_i32_0 = arith.constant 0 : i32
    %c0_i32_1 = arith.constant 0 : i32
    %c0_i32_2 = arith.constant 0 : i32
    return %0, %c0_i32_0, %c0_i32_1 : i32, i32, i32
  }
}

</mosaic_0001>

<llo_original>
// kernel: sequence_classifier_forward.5
$region0: #{sequence_classifier_forward.5}
  #allocation0 [shape = 'u32[]', space=smem, size = 0x4, offset = 0x4, fixed_abs, tag = 'smem constant byte address 0x4 - core index']
  #allocation1 [shape = 'u32[144,128]{1,0:T(1,128)}', space=vmem, size = 0x12000, scoped, tag = 'internal scratch']
  %s0 = inlined_call_operand.vmem [shape: bf16[128,16], index: 0, kind: input, shape index: {}]
  %s1 = inlined_call_operand.vmem [shape: bf16[16,256], index: 1, kind: input, shape index: {}]
  %s2 = inlined_call_operand.vmem [shape: f32[1,256], index: 2, kind: input, shape index: {}]
  %s3 = inlined_call_operand.vmem [shape: f32[128,256], index: 3, kind: output, shape index: {}]
  %s4 = sld [smem:[#allocation0]]
  $region45: #{sequence_classifier_forward.5} parent=0
    _
  %s6 = ssub.s32 1, %s4
  %s7 = scalar_select 0, %s6, %s4
  loop: start=0, step=1, limit=4
  $region2: #{sequence_classifier_forward.5} parent=0 // loop_pre_header
    _
  $region3: #{sequence_classifier_forward.5} parent=0 // loop_header
    %s9 = sphi 0, %s13
    %p10 = scmp.ge.s32.totalorder %s9, 4
    %s16 = sphi 0, %s28
    %s17 = sphi 0, %s24
    %s18 = sphi 0, %s16
    %s19 = sphi 0, %s17
    %s20 = sphi 0, %s18
    %s21 = sphi 0, %s19
    %s31 = sphi 0, %s33
    %s34 = sphi 0, %s31
    %s35 = sphi 0, %s34
    %s51 = sphi 0, %s35
    %s57 = sphi 0, %s59
    %s60 = sphi 0, %s57
    %s61 = sphi 0, %s60
    %s77 = sphi 0, %s61
    %s83 = sphi 0, %s85
    %s86 = sphi 0, %s83
    %s87 = sphi 0, %s86
    %s103 = sphi 0, %s87
    %s111 = sphi 0, %s113
    %s114 = sphi 0, %s111
    %s115 = sphi 0, %s114
    %s131 = sphi 0, %s115
  $region4: #{sequence_classifier_forward.5} parent=0 // loop_header_branch
    %12 = sbr.rel (%p10) target = $region8
  $region5: #{sequence_classifier_forward.5} parent=0 // loop_body
    %s14 = ssub.s32 %s9, 1
    %s15 = ssub.s32 %s9, 2
    %s22 = sadd.s32 1, %s17
    %p23 = scmp.ge.s32.totalorder %s22, 1
    %s24 = scalar_select %p23, 0, %s22
    %s25 = sadd.s32 1, %s16
    %s26 = scalar_select %p23, %s25, %s16
    %p27 = scmp.ge.s32.totalorder %s26, 2
    %s28 = scalar_select %p27, 0, %s26
    %s29 = ssub.s32 %s16, %s28
    %p30 = scmp.eq.s32.totalorder %s29, 0
    %s32 = sadd.s32 %s31, 1
    %s33 = scalar_select %p30, %s31, %s32
    %p36 = pneg %p30
    %p37 = scmp.eq.s32.totalorder %s9, 1
    %p38 = por %p36, %p37
    %p39 = scmp.ne.s32.totalorder %s31, %s34
    %p40 = scmp.eq.s32.totalorder %s9, 0
    %p41 = por %p39, %p40
    %p42 = scmp.ne.s32.totalorder %s31, %s34
    %p43 = scmp.eq.s32.totalorder %s14, 1
    %p44 = por %p42, %p43
    %p45 = scmp.ne.s32.totalorder %s34, %s35
    %p46 = scmp.eq.s32.totalorder %s14, 0
    %p47 = por %p45, %p46
    %p48 = scmp.ne.s32.totalorder %s34, %s35
    %p49 = scmp.eq.s32.totalorder %s15, 1
    %p50 = por %p48, %p49
    %p52 = scmp.ne.s32.totalorder %s35, %s51
    %p53 = scmp.eq.s32.totalorder %s15, 0
    %p54 = por %p52, %p53
    %s55 = ssub.s32 %s17, %s24
    %p56 = scmp.eq.s32.totalorder %s55, 0
    %s58 = sadd.s32 %s57, 1
    %s59 = scalar_select %p56, %s57, %s58
    %p62 = pneg %p56
    %p63 = scmp.eq.s32.totalorder %s9, 1
    %p64 = por %p62, %p63
    %p65 = scmp.ne.s32.totalorder %s57, %s60
    %p66 = scmp.eq.s32.totalorder %s9, 0
    %p67 = por %p65, %p66
    %p68 = scmp.ne.s32.totalorder %s57, %s60
    %p69 = scmp.eq.s32.totalorder %s14, 1
    %p70 = por %p68, %p69
    %p71 = scmp.ne.s32.totalorder %s60, %s61
    %p72 = scmp.eq.s32.totalorder %s14, 0
    %p73 = por %p71, %p72
    %p74 = scmp.ne.s32.totalorder %s60, %s61
    %p75 = scmp.eq.s32.totalorder %s15, 1
    %p76 = por %p74, %p75
    %p78 = scmp.ne.s32.totalorder %s61, %s77
    %p79 = scmp.eq.s32.totalorder %s15, 0
    %p80 = por %p78, %p79
    %s81 = ssub.s32 %s17, %s24
    %p82 = scmp.eq.s32.totalorder %s81, 0
    %s84 = sadd.s32 %s83, 1
    %s85 = scalar_select %p82, %s83, %s84
    %p88 = pneg %p82
    %p89 = scmp.eq.s32.totalorder %s9, 1
    %p90 = por %p88, %p89
    %p91 = scmp.ne.s32.totalorder %s83, %s86
    %p92 = scmp.eq.s32.totalorder %s9, 0
    %p93 = por %p91, %p92
    %p94 = scmp.ne.s32.totalorder %s83, %s86
    %p95 = scmp.eq.s32.totalorder %s14, 1
    %p96 = por %p94, %p95
    %p97 = scmp.ne.s32.totalorder %s86, %s87
    %p98 = scmp.eq.s32.totalorder %s14, 0
    %p99 = por %p97, %p98
    %p100 = scmp.ne.s32.totalorder %s86, %s87
    %p101 = scmp.eq.s32.totalorder %s15, 1
    %p102 = por %p100, %p101
    %p104 = scmp.ne.s32.totalorder %s87, %s103
    %p105 = scmp.eq.s32.totalorder %s15, 0
    %p106 = por %p104, %p105
    %s107 = ssub.s32 %s16, %s28
    %s108 = ssub.s32 %s17, %s24
    %s109 = sor.u32 %s107, %s108
    %p110 = scmp.eq.s32.totalorder %s109, 0
    %s112 = sadd.s32 %s111, 1
    %s113 = scalar_select %p110, %s111, %s112
    %p116 = pneg %p110
    %p117 = scmp.eq.s32.totalorder %s9, 1
    %p118 = por %p116, %p117
    %p119 = scmp.ne.s32.totalorder %s111, %s114
    %p120 = scmp.eq.s32.totalorder %s9, 0
    %p121 = por %p119, %p120
    %p122 = scmp.ne.s32.totalorder %s111, %s114
    %p123 = scmp.eq.s32.totalorder %s14, 1
    %p124 = por %p122, %p123
    %p125 = scmp.ne.s32.totalorder %s114, %s115
    %p126 = scmp.eq.s32.totalorder %s14, 0
    %p127 = por %p125, %p126
    %p128 = scmp.ne.s32.totalorder %s114, %s115
    %p129 = scmp.eq.s32.totalorder %s15, 1
    %p130 = por %p128, %p129
    %p132 = scmp.ne.s32.totalorder %s115, %s131
    %p133 = scmp.eq.s32.totalorder %s15, 0
    %p134 = por %p132, %p133
    %p135 = scmp.le.s32.totalorder 1, %s9
    %p136 = scmp.lt.s32.totalorder %s9, 3
    %p137 = pnand %p135, %p136
    %p138 = pneg %p137
    // Predicated region
    $region9: #{sequence_classifier_forward.5} parent=5 // pred_check
      _
    $region10: #{sequence_classifier_forward.5} parent=5 // pred_check_branch
      %140 = sbr.rel (%p137) target = $region12
    $region11: #{sequence_classifier_forward.5} parent=5 // pred_region
      %s141 = ssub.s32 %s9, 1
      // Predicated region
      $region13: #{sequence_classifier_forward.5} parent=11 // pred_check
        %p142 = pneg %p73
      $region14: #{sequence_classifier_forward.5} parent=11 // pred_check_branch
        %144 = sbr.rel (%p142) target = $region16
      $region15: #{sequence_classifier_forward.5} parent=11 // pred_region
        %s145 = smul.u32 2, %s19
        %p146 = scmp.lt.s32.totalorder %s145, 1
        %s147 = scalar_select %p146, %s145, 1
        %s148 = smul.addr %s147, 4
        %s149 = scalar_lea.vmem %s1, %s148
        %s150 = smul.u32 2, %s19
      $region16: #{sequence_classifier_forward.5} parent=11 // pred_fallthru
        _
      // Predicated region
      $region17: #{sequence_classifier_forward.5} parent=11 // pred_check
        %p151 = pneg %p99
      $region18: #{sequence_classifier_forward.5} parent=11 // pred_check_branch
        %153 = sbr.rel (%p151) target = $region20
      $region19: #{sequence_classifier_forward.5} parent=11 // pred_region
        %s154 = smul.u32 2, %s19
        %p155 = scmp.lt.s32.totalorder %s154, 1
        %s156 = scalar_select %p155, %s154, 1
        %s157 = scalar_lea.vmem %s2, %s156
        %s158 = smul.u32 2, %s19
      $region20: #{sequence_classifier_forward.5} parent=11 // pred_fallthru
        _
    $region12: #{sequence_classifier_forward.5} parent=5 // pred_fallthru
      _
    %p159 = scmp.lt.s32.totalorder %s9, 2
    // Predicated region
    $region21: #{sequence_classifier_forward.5} parent=5 // pred_check
      %p160 = pneg %p159
    $region22: #{sequence_classifier_forward.5} parent=5 // pred_check_branch
      %162 = sbr.rel (%p160) target = $region24
    $region23: #{sequence_classifier_forward.5} parent=5 // pred_region
      // Predicated region
      $region25: #{sequence_classifier_forward.5} parent=23 // pred_check
        %p163 = pneg %p41
      $region26: #{sequence_classifier_forward.5} parent=23 // pred_check_branch
        %165 = sbr.rel (%p163) target = $region28
      $region27: #{sequence_classifier_forward.5} parent=23 // pred_region
        %s166 = smul.u32 8, %s16
        %p167 = scmp.lt.s32.totalorder %s166, 15
        %s168 = scalar_select %p167, %s166, 15
        %s169 = smul.addr %s168, 4
        %s170 = scalar_lea.vmem %s0, %s169
        %s171 = smul.u32 8, %s16
      $region28: #{sequence_classifier_forward.5} parent=23 // pred_fallthru
        _
    $region24: #{sequence_classifier_forward.5} parent=5 // pred_fallthru
      _
    %p172 = scmp.le.s32.totalorder 1, %s9
    %p173 = scmp.lt.s32.totalorder %s9, 3
    %p174 = pnand %p172, %p173
    %p175 = pneg %p174
    // Predicated region
    $region29: #{sequence_classifier_forward.5} parent=5 // pred_check
      _
    $region30: #{sequence_classifier_forward.5} parent=5 // pred_check_branch
      %177 = sbr.rel (%p174) target = $region32
    $region31: #{sequence_classifier_forward.5} parent=5 // pred_region
      %s178 = ssub.s32 %s9, 1
      %s179 = smul.u32 8, %s18
      %p180 = scmp.lt.s32.totalorder %s179, 15
      %s181 = scalar_select %p180, %s179, 15
      %s182 = smul.addr %s181, 4
      %s183 = scalar_lea.vmem %s0, %s182
      %p184 = pneg %p47
      %p185 = pneg %p44
      %s186 = smul.u32 2, %s19
      %p187 = scmp.lt.s32.totalorder %s186, 1
      %s188 = scalar_select %p187, %s186, 1
      %s189 = smul.addr %s188, 4
      %s190 = scalar_lea.vmem %s1, %s189
      %p191 = pneg %p73
      %p192 = pneg %p70
      %s193 = smul.u32 2, %s19
      %p194 = scmp.lt.s32.totalorder %s193, 1
      %s195 = scalar_select %p194, %s193, 1
      %s196 = scalar_lea.vmem %s2, %s195
      %p197 = pneg %p99
      %p198 = pneg %p96
      %p199 = pneg %p127
      %p200 = pneg %p124
      %s201 = smul.u32 8, %s18
      %s202 = smul.u32 2, %s19
      %p203 = scmp.lt.s32.totalorder %s201, 15
      %s204 = scalar_select %p203, %s201, 15
      %p205 = scmp.lt.s32.totalorder %s202, 1
      %s206 = scalar_select %p205, %s202, 1
      %s207 = smul.addr %s204, 2
      %s208 = sadd.s32 %s206, %s207
      %s209 = smul.addr %s208, 8
      %s210 = scalar_lea.vmem %s3, %s209
      %s211 = smul.u32 8, %s18
      %p212 = scmp.lt.s32.totalorder %s211, 15
      %s213 = scalar_select %p212, %s211, 15
      %s214 = smul.addr %s213, 4
      %s215 = scalar_lea.vmem %s0, %s214
      %s216 = smul.u32 8, %s18
      %s217 = smul.u32 2, %s19
      %p218 = scmp.lt.s32.totalorder %s217, 1
      %s219 = scalar_select %p218, %s217, 1
      %s220 = smul.addr %s219, 4
      %s221 = scalar_lea.vmem %s1, %s220
      %s222 = smul.u32 2, %s19
      %s223 = smul.u32 2, %s19
      %p224 = scmp.lt.s32.totalorder %s223, 1
      %s225 = scalar_select %p224, %s223, 1
      %s226 = scalar_lea.vmem %s2, %s225
      %s227 = smul.u32 2, %s19
      %s228 = smul.u32 8, %s18
      %s229 = smul.u32 2, %s19
      %p230 = scmp.lt.s32.totalorder %s228, 15
      %s231 = scalar_select %p230, %s228, 15
      %p232 = scmp.lt.s32.totalorder %s229, 1
      %s233 = scalar_select %p232, %s229, 1
      %s234 = smul.addr %s231, 2
      %s235 = sadd.s32 %s233, %s234
      %s236 = smul.addr %s235, 8
      %s237 = scalar_lea.vmem %s3, %s236
      %s238 = smul.u32 8, %s18
      %s239 = smul.u32 2, %s19
      %v241 = vld [vmem:[%s215] sm:$0xf]
      %v242 = vld [vmem:[%s215 + $0x4] sm:$0xf]
      %v243 = vld [vmem:[%s215 + $0x8] sm:$0xf]
      %v244 = vld [vmem:[%s215 + $0xc] sm:$0xf]
      %v245 = vld [vmem:[%s215 + $0x10] sm:$0xf]
      %v246 = vld [vmem:[%s215 + $0x14] sm:$0xf]
      %v247 = vld [vmem:[%s215 + $0x18] sm:$0xf]
      %v248 = vld [vmem:[%s215 + $0x1c] sm:$0xf]
      %v249 = vld [vmem:[%s221] sm:$0xff]
      %v250 = vld [vmem:[%s221 + $0x8] sm:$0xff]
      %v251 = vld [vmem:[%s226] sm:$0x3]
      %v253 = vlaneseq
      %v254 = vshrl.u32 %v253, 7
      %v255 = vsub.s32 0, %v254
      %v256 = vrot.slane %v251, %v255
      %v257 = vlaneseq
      %v258 = vshrl.u32 %v257, 7
      %v259 = vsub.s32 1, %v258
      %v260 = vrot.slane %v251, %v259
      %v271 = vunpack.c.l.b16 %v241
      %v272 = vunpack.c.l.b16 %v242
      %v273 = vunpack.c.l.b16 %v243
      %v274 = vunpack.c.l.b16 %v244
      %v275 = vunpack.c.l.b16 %v245
      %v276 = vunpack.c.l.b16 %v246
      %v277 = vunpack.c.l.b16 %v247
      %v278 = vunpack.c.l.b16 %v248
      %v279 = vpack.c.b16 %v272, %v271
      %v280 = vpack.c.b16 %v274, %v273
      %v281 = vpack.c.b16 %v276, %v275
      %v282 = vpack.c.b16 %v278, %v277
      %v285 = vunpack.c.l.b16 %v249
      %v286 = vunpack.c.h.b16 %v249
      %v287 = vunpack.c.l.b16 %v250
      %v288 = vunpack.c.h.b16 %v250
      %v289 = vpack.c.b16 %v287, %v285
      %v290 = vpack.c.b16 %v288, %v286
      %vm293 = vcmask 130048
      %v295 = vsel %vm293, %v279, 0
      %v298 = vsel %vm293, %v280, 0
      %v301 = vsel %vm293, %v281, 0
      %v304 = vsel %vm293, %v282, 0
      %306 = vmatprep.subr.bf16.mxu0 %v290
      %307 = vmatpush1.bf16.msra.mxu0 %v289
      %308 = vmatprep.subr.bf16.mxu0 0
      %309 = vmatpush1.bf16.msra.mxu0 0
      %310 = vmatprep.subr.bf16.mxu0 0
      %311 = vmatpush1.bf16.msra.mxu0 0
      %312 = vmatprep.subr.bf16.mxu0 0
      %313 = vmatpush1.bf16.msra.mxu0 0
      %314 = vmatprep.subr.bf16.mxu0 0
      %315 = vmatpush1.bf16.msra.mxu0 0
      %316 = vmatprep.subr.bf16.mxu0 0
      %317 = vmatpush1.bf16.msra.mxu0 0
      %318 = vmatprep.subr.bf16.mxu0 0
      %319 = vmatpush1.bf16.msra.mxu0 0
      %320 = vmatprep.subr.bf16.mxu0 0
      %321 = vmatpush1.bf16.msra.mxu0 0
      %322 = vmatprep.subr.bf16.mxu0 0
      %323 = vmatpush1.bf16.msra.mxu0 0
      %324 = vmatprep.subr.bf16.mxu0 0
      %325 = vmatpush1.bf16.msra.mxu0 0
      %326 = vmatprep.subr.bf16.mxu0 0
      %327 = vmatpush1.bf16.msra.mxu0 0
      %328 = vmatprep.subr.bf16.mxu0 0
      %329 = vmatpush1.bf16.msra.mxu0 0
      %330 = vmatprep.subr.bf16.mxu0 0
      %331 = vmatpush1.bf16.msra.mxu0 0
      %332 = vmatprep.subr.bf16.mxu0 0
      %333 = vmatpush1.bf16.msra.mxu0 0
      %334 = vmatprep.subr.bf16.mxu0 0
      %335 = vmatpush1.bf16.msra.mxu0 0
      %336 = vmatprep.subr.bf16.mxu0 0
      %337 = vmatpush1.bf16.msra.mxu0 0
      %338 = vmatprep.mubr.bf16.mxu0 0
      %339 = vmatmul.mubr.bf16.gmra.mrb[0].mxu0 %v295
      %v340 = vpop.f32.mrb[0].mxu0
      %v341 = vadd.f32 %v256, %v340
      %v342 = vpop.f32.mrb[0].mxu0
      %v343 = vadd.f32 %v260, %v342
      %v344 = vpop.f32.mrb[0].mxu0
      %v345 = vadd.f32 %v256, %v344
      %v346 = vpop.f32.mrb[0].mxu0
      %v347 = vadd.f32 %v260, %v346
      %348 = vmatprep.mubr.bf16.mxu0 0
      %349 = vmatmul.mubr.bf16.gmra.mrb[0].mxu0 %v298
      %v350 = vpop.f32.mrb[0].mxu0
      %v351 = vadd.f32 %v256, %v350
      %v352 = vpop.f32.mrb[0].mxu0
      %v353 = vadd.f32 %v260, %v352
      %v354 = vpop.f32.mrb[0].mxu0
      %v355 = vadd.f32 %v256, %v354
      %v356 = vpop.f32.mrb[0].mxu0
      %v357 = vadd.f32 %v260, %v356
      %358 = vmatprep.mubr.bf16.mxu0 0
      %359 = vmatmul.mubr.bf16.gmra.mrb[0].mxu0 %v301
      %v360 = vpop.f32.mrb[0].mxu0
      %v361 = vadd.f32 %v256, %v360
      %v362 = vpop.f32.mrb[0].mxu0
      %v363 = vadd.f32 %v260, %v362
      %v364 = vpop.f32.mrb[0].mxu0
      %v365 = vadd.f32 %v256, %v364
      %v366 = vpop.f32.mrb[0].mxu0
      %v367 = vadd.f32 %v260, %v366
      %368 = vmatprep.mubr.bf16.mxu0 0
      %369 = vmatmul.mubr.bf16.gmra.mrb[0].mxu0 %v304
      %v370 = vpop.f32.mrb[0].mxu0
      %v371 = vadd.f32 %v256, %v370
      %v372 = vpop.f32.mrb[0].mxu0
      %v373 = vadd.f32 %v260, %v372
      %v374 = vpop.f32.mrb[0].mxu0
      %v375 = vadd.f32 %v256, %v374
      %v376 = vpop.f32.mrb[0].mxu0
      %v377 = vadd.f32 %v260, %v376
      %378 = vdwg.mxu0
      %379 = vst [vmem:[%s237] sm:$0xff] %v341
      %380 = vst [vmem:[%s237 + $0x8] sm:$0xff] %v343
      %381 = vst [vmem:[%s237 + $0x10] sm:$0xff] %v345
      %382 = vst [vmem:[%s237 + $0x18] sm:$0xff] %v347
      %383 = vst [vmem:[%s237 + $0x20] sm:$0xff] %v351
      %384 = vst [vmem:[%s237 + $0x28] sm:$0xff] %v353
      %385 = vst [vmem:[%s237 + $0x30] sm:$0xff] %v355
      %386 = vst [vmem:[%s237 + $0x38] sm:$0xff] %v357
      %387 = vst [vmem:[%s237 + $0x40] sm:$0xff] %v361
      %388 = vst [vmem:[%s237 + $0x48] sm:$0xff] %v363
      %389 = vst [vmem:[%s237 + $0x50] sm:$0xff] %v365
      %390 = vst [vmem:[%s237 + $0x58] sm:$0xff] %v367
      %391 = vst [vmem:[%s237 + $0x60] sm:$0xff] %v371
      %392 = vst [vmem:[%s237 + $0x68] sm:$0xff] %v373
      %393 = vst [vmem:[%s237 + $0x70] sm:$0xff] %v375
      %394 = vst [vmem:[%s237 + $0x78] sm:$0xff] %v377
      %s395 = smul.u32 8, %s18
      %s396 = smul.u32 2, %s19
      %p397 = scmp.lt.s32.totalorder %s395, 15
      %s398 = scalar_select %p397, %s395, 15
      %p399 = scmp.lt.s32.totalorder %s396, 1
      %s400 = scalar_select %p399, %s396, 1
      %s401 = smul.addr %s398, 2
      %s402 = sadd.s32 %s400, %s401
      %s403 = smul.addr %s402, 8
      %s404 = scalar_lea.vmem %s3, %s403
      // Predicated region
      $region33: #{sequence_classifier_forward.5} parent=31 // pred_check
        %p405 = pneg %p124
      $region34: #{sequence_classifier_forward.5} parent=31 // pred_check_branch
        %407 = sbr.rel (%p405) target = $region36
      $region35: #{sequence_classifier_forward.5} parent=31 // pred_region
        %s408 = smul.u32 8, %s18
        %s409 = smul.u32 2, %s19
      $region36: #{sequence_classifier_forward.5} parent=31 // pred_fallthru
        _
    $region32: #{sequence_classifier_forward.5} parent=5 // pred_fallthru
      _
    %p410 = scmp.le.s32.totalorder 2, %s9
    // Predicated region
    $region37: #{sequence_classifier_forward.5} parent=5 // pred_check
      %p411 = pneg %p410
    $region38: #{sequence_classifier_forward.5} parent=5 // pred_check_branch
      %413 = sbr.rel (%p411) target = $region40
    $region39: #{sequence_classifier_forward.5} parent=5 // pred_region
      %s414 = ssub.s32 %s9, 2
      // Predicated region
      $region41: #{sequence_classifier_forward.5} parent=39 // pred_check
        %p415 = pneg %p130
      $region42: #{sequence_classifier_forward.5} parent=39 // pred_check_branch
        %417 = sbr.rel (%p415) target = $region44
      $region43: #{sequence_classifier_forward.5} parent=39 // pred_region
        %s418 = smul.u32 8, %s20
        %s419 = smul.u32 2, %s21
        %p420 = scmp.lt.s32.totalorder %s418, 15
        %s421 = scalar_select %p420, %s418, 15
        %p422 = scmp.lt.s32.totalorder %s419, 1
        %s423 = scalar_select %p422, %s419, 1
        %s424 = smul.addr %s421, 2
        %s425 = sadd.s32 %s423, %s424
        %s426 = smul.addr %s425, 8
        %s427 = scalar_lea.vmem %s3, %s426
      $region44: #{sequence_classifier_forward.5} parent=39 // pred_fallthru
        _
    $region40: #{sequence_classifier_forward.5} parent=5 // pred_fallthru
      _
  $region6: #{sequence_classifier_forward.5} parent=0 // loop_footer
    %s13 = sadd.s32 1, %s9
  $region7: #{sequence_classifier_forward.5} parent=0 // loop_footer_branch
    %8 = sbr.rel target = $region3
  $region8: #{sequence_classifier_forward.5} parent=0 // loop_exit
    _

// kernel: sequence_classifier_forward.7
$region0: #{sequence_classifier_forward.7}
  #allocation0 [shape = 'u32[]', space=smem, size = 0x4, offset = 0x4, fixed_abs, tag = 'smem constant byte address 0x4 - core index']
  #allocation1 [shape = 'u32[144,128]{1,0:T(1,128)}', space=vmem, size = 0x12000, scoped, tag = 'internal scratch']
  %s0 = inlined_call_operand.vmem [shape: bf16[128,32], index: 0, kind: input, shape index: {}]
  %s1 = inlined_call_operand.vmem [shape: bf16[128,32], index: 1, kind: input, shape index: {}]
  %s2 = inlined_call_operand.vmem [shape: bf16[32,256], index: 2, kind: input, shape index: {}]
  %s3 = inlined_call_operand.vmem [shape: bf16[32,256], index: 3, kind: input, shape index: {}]
  %s4 = inlined_call_operand.vmem [shape: f32[1,256], index: 4, kind: input, shape index: {}]
  %s5 = inlined_call_operand.vmem [shape: f32[128,256], index: 5, kind: output, shape index: {}]
  %s6 = sld [smem:[#allocation0]]
  $region53: #{sequence_classifier_forward.7} parent=0
    _
  %s8 = ssub.s32 1, %s6
  %s9 = scalar_select 0, %s8, %s6
  loop: start=0, step=1, limit=4
  $region2: #{sequence_classifier_forward.7} parent=0 // loop_pre_header
    _
  $region3: #{sequence_classifier_forward.7} parent=0 // loop_header
    %s11 = sphi 0, %s15
    %p12 = scmp.ge.s32.totalorder %s11, 4
    %s18 = sphi 0, %s30
    %s19 = sphi 0, %s26
    %s20 = sphi 0, %s18
    %s21 = sphi 0, %s19
    %s22 = sphi 0, %s20
    %s23 = sphi 0, %s21
    %s33 = sphi 0, %s35
    %s36 = sphi 0, %s33
    %s37 = sphi 0, %s36
    %s53 = sphi 0, %s37
    %s59 = sphi 0, %s61
    %s62 = sphi 0, %s59
    %s63 = sphi 0, %s62
    %s79 = sphi 0, %s63
    %s85 = sphi 0, %s87
    %s88 = sphi 0, %s85
    %s89 = sphi 0, %s88
    %s105 = sphi 0, %s89
    %s111 = sphi 0, %s113
    %s114 = sphi 0, %s111
    %s115 = sphi 0, %s114
    %s131 = sphi 0, %s115
    %s137 = sphi 0, %s139
    %s140 = sphi 0, %s137
    %s141 = sphi 0, %s140
    %s157 = sphi 0, %s141
    %s165 = sphi 0, %s167
    %s168 = sphi 0, %s165
    %s169 = sphi 0, %s168
    %s185 = sphi 0, %s169
  $region4: #{sequence_classifier_forward.7} parent=0 // loop_header_branch
    %14 = sbr.rel (%p12) target = $region8
  $region5: #{sequence_classifier_forward.7} parent=0 // loop_body
    %s16 = ssub.s32 %s11, 1
    %s17 = ssub.s32 %s11, 2
    %s24 = sadd.s32 1, %s19
    %p25 = scmp.ge.s32.totalorder %s24, 1
    %s26 = scalar_select %p25, 0, %s24
    %s27 = sadd.s32 1, %s18
    %s28 = scalar_select %p25, %s27, %s18
    %p29 = scmp.ge.s32.totalorder %s28, 2
    %s30 = scalar_select %p29, 0, %s28
    %s31 = ssub.s32 %s18, %s30
    %p32 = scmp.eq.s32.totalorder %s31, 0
    %s34 = sadd.s32 %s33, 1
    %s35 = scalar_select %p32, %s33, %s34
    %p38 = pneg %p32
    %p39 = scmp.eq.s32.totalorder %s11, 1
    %p40 = por %p38, %p39
    %p41 = scmp.ne.s32.totalorder %s33, %s36
    %p42 = scmp.eq.s32.totalorder %s11, 0
    %p43 = por %p41, %p42
    %p44 = scmp.ne.s32.totalorder %s33, %s36
    %p45 = scmp.eq.s32.totalorder %s16, 1
    %p46 = por %p44, %p45
    %p47 = scmp.ne.s32.totalorder %s36, %s37
    %p48 = scmp.eq.s32.totalorder %s16, 0
    %p49 = por %p47, %p48
    %p50 = scmp.ne.s32.totalorder %s36, %s37
    %p51 = scmp.eq.s32.totalorder %s17, 1
    %p52 = por %p50, %p51
    %p54 = scmp.ne.s32.totalorder %s37, %s53
    %p55 = scmp.eq.s32.totalorder %s17, 0
    %p56 = por %p54, %p55
    %s57 = ssub.s32 %s18, %s30
    %p58 = scmp.eq.s32.totalorder %s57, 0
    %s60 = sadd.s32 %s59, 1
    %s61 = scalar_select %p58, %s59, %s60
    %p64 = pneg %p58
    %p65 = scmp.eq.s32.totalorder %s11, 1
    %p66 = por %p64, %p65
    %p67 = scmp.ne.s32.totalorder %s59, %s62
    %p68 = scmp.eq.s32.totalorder %s11, 0
    %p69 = por %p67, %p68
    %p70 = scmp.ne.s32.totalorder %s59, %s62
    %p71 = scmp.eq.s32.totalorder %s16, 1
    %p72 = por %p70, %p71
    %p73 = scmp.ne.s32.totalorder %s62, %s63
    %p74 = scmp.eq.s32.totalorder %s16, 0
    %p75 = por %p73, %p74
    %p76 = scmp.ne.s32.totalorder %s62, %s63
    %p77 = scmp.eq.s32.totalorder %s17, 1
    %p78 = por %p76, %p77
    %p80 = scmp.ne.s32.totalorder %s63, %s79
    %p81 = scmp.eq.s32.totalorder %s17, 0
    %p82 = por %p80, %p81
    %s83 = ssub.s32 %s19, %s26
    %p84 = scmp.eq.s32.totalorder %s83, 0
    %s86 = sadd.s32 %s85, 1
    %s87 = scalar_select %p84, %s85, %s86
    %p90 = pneg %p84
    %p91 = scmp.eq.s32.totalorder %s11, 1
    %p92 = por %p90, %p91
    %p93 = scmp.ne.s32.totalorder %s85, %s88
    %p94 = scmp.eq.s32.totalorder %s11, 0
    %p95 = por %p93, %p94
    %p96 = scmp.ne.s32.totalorder %s85, %s88
    %p97 = scmp.eq.s32.totalorder %s16, 1
    %p98 = por %p96, %p97
    %p99 = scmp.ne.s32.totalorder %s88, %s89
    %p100 = scmp.eq.s32.totalorder %s16, 0
    %p101 = por %p99, %p100
    %p102 = scmp.ne.s32.totalorder %s88, %s89
    %p103 = scmp.eq.s32.totalorder %s17, 1
    %p104 = por %p102, %p103
    %p106 = scmp.ne.s32.totalorder %s89, %s105
    %p107 = scmp.eq.s32.totalorder %s17, 0
    %p108 = por %p106, %p107
    %s109 = ssub.s32 %s19, %s26
    %p110 = scmp.eq.s32.totalorder %s109, 0
    %s112 = sadd.s32 %s111, 1
    %s113 = scalar_select %p110, %s111, %s112
    %p116 = pneg %p110
    %p117 = scmp.eq.s32.totalorder %s11, 1
    %p118 = por %p116, %p117
    %p119 = scmp.ne.s32.totalorder %s111, %s114
    %p120 = scmp.eq.s32.totalorder %s11, 0
    %p121 = por %p119, %p120
    %p122 = scmp.ne.s32.totalorder %s111, %s114
    %p123 = scmp.eq.s32.totalorder %s16, 1
    %p124 = por %p122, %p123
    %p125 = scmp.ne.s32.totalorder %s114, %s115
    %p126 = scmp.eq.s32.totalorder %s16, 0
    %p127 = por %p125, %p126
    %p128 = scmp.ne.s32.totalorder %s114, %s115
    %p129 = scmp.eq.s32.totalorder %s17, 1
    %p130 = por %p128, %p129
    %p132 = scmp.ne.s32.totalorder %s115, %s131
    %p133 = scmp.eq.s32.totalorder %s17, 0
    %p134 = por %p132, %p133
    %s135 = ssub.s32 %s19, %s26
    %p136 = scmp.eq.s32.totalorder %s135, 0
    %s138 = sadd.s32 %s137, 1
    %s139 = scalar_select %p136, %s137, %s138
    %p142 = pneg %p136
    %p143 = scmp.eq.s32.totalorder %s11, 1
    %p144 = por %p142, %p143
    %p145 = scmp.ne.s32.totalorder %s137, %s140
    %p146 = scmp.eq.s32.totalorder %s11, 0
    %p147 = por %p145, %p146
    %p148 = scmp.ne.s32.totalorder %s137, %s140
    %p149 = scmp.eq.s32.totalorder %s16, 1
    %p150 = por %p148, %p149
    %p151 = scmp.ne.s32.totalorder %s140, %s141
    %p152 = scmp.eq.s32.totalorder %s16, 0
    %p153 = por %p151, %p152
    %p154 = scmp.ne.s32.totalorder %s140, %s141
    %p155 = scmp.eq.s32.totalorder %s17, 1
    %p156 = por %p154, %p155
    %p158 = scmp.ne.s32.totalorder %s141, %s157
    %p159 = scmp.eq.s32.totalorder %s17, 0
    %p160 = por %p158, %p159
    %s161 = ssub.s32 %s18, %s30
    %s162 = ssub.s32 %s19, %s26
    %s163 = sor.u32 %s161, %s162
    %p164 = scmp.eq.s32.totalorder %s163, 0
    %s166 = sadd.s32 %s165, 1
    %s167 = scalar_select %p164, %s165, %s166
    %p170 = pneg %p164
    %p171 = scmp.eq.s32.totalorder %s11, 1
    %p172 = por %p170, %p171
    %p173 = scmp.ne.s32.totalorder %s165, %s168
    %p174 = scmp.eq.s32.totalorder %s11, 0
    %p175 = por %p173, %p174
    %p176 = scmp.ne.s32.totalorder %s165, %s168
    %p177 = scmp.eq.s32.totalorder %s16, 1
    %p178 = por %p176, %p177
    %p179 = scmp.ne.s32.totalorder %s168, %s169
    %p180 = scmp.eq.s32.totalorder %s16, 0
    %p181 = por %p179, %p180
    %p182 = scmp.ne.s32.totalorder %s168, %s169
    %p183 = scmp.eq.s32.totalorder %s17, 1
    %p184 = por %p182, %p183
    %p186 = scmp.ne.s32.totalorder %s169, %s185
    %p187 = scmp.eq.s32.totalorder %s17, 0
    %p188 = por %p186, %p187
    %p189 = scmp.le.s32.totalorder 1, %s11
    %p190 = scmp.lt.s32.totalorder %s11, 3
    %p191 = pnand %p189, %p190
    %p192 = pneg %p191
    // Predicated region
    $region9: #{sequence_classifier_forward.7} parent=5 // pred_check
      _
    $region10: #{sequence_classifier_forward.7} parent=5 // pred_check_branch
      %194 = sbr.rel (%p191) target = $region12
    $region11: #{sequence_classifier_forward.7} parent=5 // pred_region
      %s195 = ssub.s32 %s11, 1
      // Predicated region
      $region13: #{sequence_classifier_forward.7} parent=11 // pred_check
        %p196 = pneg %p101
      $region14: #{sequence_classifier_forward.7} parent=11 // pred_check_branch
        %198 = sbr.rel (%p196) target = $region16
      $region15: #{sequence_classifier_forward.7} parent=11 // pred_region
        %s199 = smul.u32 2, %s21
        %p200 = scmp.lt.s32.totalorder %s199, 1
        %s201 = scalar_select %p200, %s199, 1
        %s202 = smul.addr %s201, 4
        %s203 = scalar_lea.vmem %s2, %s202
        %s204 = smul.u32 2, %s21
      $region16: #{sequence_classifier_forward.7} parent=11 // pred_fallthru
        _
      // Predicated region
      $region17: #{sequence_classifier_forward.7} parent=11 // pred_check
        %p205 = pneg %p127
      $region18: #{sequence_classifier_forward.7} parent=11 // pred_check_branch
        %207 = sbr.rel (%p205) target = $region20
      $region19: #{sequence_classifier_forward.7} parent=11 // pred_region
        %s208 = smul.u32 2, %s21
        %p209 = scmp.lt.s32.totalorder %s208, 1
        %s210 = scalar_select %p209, %s208, 1
        %s211 = smul.addr %s210, 4
        %s212 = scalar_lea.vmem %s3, %s211
        %s213 = smul.u32 2, %s21
      $region20: #{sequence_classifier_forward.7} parent=11 // pred_fallthru
        _
      // Predicated region
      $region21: #{sequence_classifier_forward.7} parent=11 // pred_check
        %p214 = pneg %p153
      $region22: #{sequence_classifier_forward.7} parent=11 // pred_check_branch
        %216 = sbr.rel (%p214) target = $region24
      $region23: #{sequence_classifier_forward.7} parent=11 // pred_region
        %s217 = smul.u32 2, %s21
        %p218 = scmp.lt.s32.totalorder %s217, 1
        %s219 = scalar_select %p218, %s217, 1
        %s220 = scalar_lea.vmem %s4, %s219
        %s221 = smul.u32 2, %s21
      $region24: #{sequence_classifier_forward.7} parent=11 // pred_fallthru
        _
    $region12: #{sequence_classifier_forward.7} parent=5 // pred_fallthru
      _
    %p222 = scmp.lt.s32.totalorder %s11, 2
    // Predicated region
    $region25: #{sequence_classifier_forward.7} parent=5 // pred_check
      %p223 = pneg %p222
    $region26: #{sequence_classifier_forward.7} parent=5 // pred_check_branch
      %225 = sbr.rel (%p223) target = $region28
    $region27: #{sequence_classifier_forward.7} parent=5 // pred_region
      // Predicated region
      $region29: #{sequence_classifier_forward.7} parent=27 // pred_check
        %p226 = pneg %p43
      $region30: #{sequence_classifier_forward.7} parent=27 // pred_check_branch
        %228 = sbr.rel (%p226) target = $region32
      $region31: #{sequence_classifier_forward.7} parent=27 // pred_region
        %s229 = smul.u32 8, %s18
        %p230 = scmp.lt.s32.totalorder %s229, 15
        %s231 = scalar_select %p230, %s229, 15
        %s232 = smul.addr %s231, 4
        %s233 = scalar_lea.vmem %s0, %s232
        %s234 = smul.u32 8, %s18
      $region32: #{sequence_classifier_forward.7} parent=27 // pred_fallthru
        _
      // Predicated region
      $region33: #{sequence_classifier_forward.7} parent=27 // pred_check
        %p235 = pneg %p69
      $region34: #{sequence_classifier_forward.7} parent=27 // pred_check_branch
        %237 = sbr.rel (%p235) target = $region36
      $region35: #{sequence_classifier_forward.7} parent=27 // pred_region
        %s238 = smul.u32 8, %s18
        %p239 = scmp.lt.s32.totalorder %s238, 15
        %s240 = scalar_select %p239, %s238, 15
        %s241 = smul.addr %s240, 4
        %s242 = scalar_lea.vmem %s1, %s241
        %s243 = smul.u32 8, %s18
      $region36: #{sequence_classifier_forward.7} parent=27 // pred_fallthru
        _
    $region28: #{sequence_classifier_forward.7} parent=5 // pred_fallthru
      _
    %p244 = scmp.le.s32.totalorder 1, %s11
    %p245 = scmp.lt.s32.totalorder %s11, 3
    %p246 = pnand %p244, %p245
    %p247 = pneg %p246
    // Predicated region
    $region37: #{sequence_classifier_forward.7} parent=5 // pred_check
      _
    $region38: #{sequence_classifier_forward.7} parent=5 // pred_check_branch
      %249 = sbr.rel (%p246) target = $region40
    $region39: #{sequence_classifier_forward.7} parent=5 // pred_region
      %s250 = ssub.s32 %s11, 1
      %s251 = smul.u32 8, %s20
      %p252 = scmp.lt.s32.totalorder %s251, 15
      %s253 = scalar_select %p252, %s251, 15
      %s254 = smul.addr %s253, 4
      %s255 = scalar_lea.vmem %s0, %s254
      %p256 = pneg %p49
      %p257 = pneg %p46
      %s258 = smul.u32 8, %s20
      %p259 = scmp.lt.s32.totalorder %s258, 15
      %s260 = scalar_select %p259, %s258, 15
      %s261 = smul.addr %s260, 4
      %s262 = scalar_lea.vmem %s1, %s261
      %p263 = pneg %p75
      %p264 = pneg %p72
      %s265 = smul.u32 2, %s21
      %p266 = scmp.lt.s32.totalorder %s265, 1
      %s267 = scalar_select %p266, %s265, 1
      %s268 = smul.addr %s267, 4
      %s269 = scalar_lea.vmem %s2, %s268
      %p270 = pneg %p101
      %p271 = pneg %p98
      %s272 = smul.u32 2, %s21
      %p273 = scmp.lt.s32.totalorder %s272, 1
      %s274 = scalar_select %p273, %s272, 1
      %s275 = smul.addr %s274, 4
      %s276 = scalar_lea.vmem %s3, %s275
      %p277 = pneg %p127
      %p278 = pneg %p124
      %s279 = smul.u32 2, %s21
      %p280 = scmp.lt.s32.totalorder %s279, 1
      %s281 = scalar_select %p280, %s279, 1
      %s282 = scalar_lea.vmem %s4, %s281
      %p283 = pneg %p153
      %p284 = pneg %p150
      %p285 = pneg %p181
      %p286 = pneg %p178
      %s287 = smul.u32 8, %s20
      %s288 = smul.u32 2, %s21
      %p289 = scmp.lt.s32.totalorder %s287, 15
      %s290 = scalar_select %p289, %s287, 15
      %p291 = scmp.lt.s32.totalorder %s288, 1
      %s292 = scalar_select %p291, %s288, 1
      %s293 = smul.addr %s290, 2
      %s294 = sadd.s32 %s292, %s293
      %s295 = smul.addr %s294, 8
      %s296 = scalar_lea.vmem %s5, %s295
      %s297 = smul.u32 8, %s20
      %p298 = scmp.lt.s32.totalorder %s297, 15
      %s299 = scalar_select %p298, %s297, 15
      %s300 = smul.addr %s299, 4
      %s301 = scalar_lea.vmem %s0, %s300
      %s302 = smul.u32 8, %s20
      %s303 = smul.u32 8, %s20
      %p304 = scmp.lt.s32.totalorder %s303, 15
      %s305 = scalar_select %p304, %s303, 15
      %s306 = smul.addr %s305, 4
      %s307 = scalar_lea.vmem %s1, %s306
      %s308 = smul.u32 8, %s20
      %s309 = smul.u32 2, %s21
      %p310 = scmp.lt.s32.totalorder %s309, 1
      %s311 = scalar_select %p310, %s309, 1
      %s312 = smul.addr %s311, 4
      %s313 = scalar_lea.vmem %s2, %s312
      %s314 = smul.u32 2, %s21
      %s315 = smul.u32 2, %s21
      %p316 = scmp.lt.s32.totalorder %s315, 1
      %s317 = scalar_select %p316, %s315, 1
      %s318 = smul.addr %s317, 4
      %s319 = scalar_lea.vmem %s3, %s318
      %s320 = smul.u32 2, %s21
      %s321 = smul.u32 2, %s21
      %p322 = scmp.lt.s32.totalorder %s321, 1
      %s323 = scalar_select %p322, %s321, 1
      %s324 = scalar_lea.vmem %s4, %s323
      %s325 = smul.u32 2, %s21
      %s326 = smul.u32 8, %s20
      %s327 = smul.u32 2, %s21
      %p328 = scmp.lt.s32.totalorder %s326, 15
      %s329 = scalar_select %p328, %s326, 15
      %p330 = scmp.lt.s32.totalorder %s327, 1
      %s331 = scalar_select %p330, %s327, 1
      %s332 = smul.addr %s329, 2
      %s333 = sadd.s32 %s331, %s332
      %s334 = smul.addr %s333, 8
      %s335 = scalar_lea.vmem %s5, %s334
      %s336 = smul.u32 8, %s20
      %s337 = smul.u32 2, %s21
      %v339 = vld [vmem:[%s301] sm:$0xf]
      %v340 = vld [vmem:[%s301 + $0x4] sm:$0xf]
      %v341 = vld [vmem:[%s301 + $0x8] sm:$0xf]
      %v342 = vld [vmem:[%s301 + $0xc] sm:$0xf]
      %v343 = vld [vmem:[%s301 + $0x10] sm:$0xf]
      %v344 = vld [vmem:[%s301 + $0x14] sm:$0xf]
      %v345 = vld [vmem:[%s301 + $0x18] sm:$0xf]
      %v346 = vld [vmem:[%s301 + $0x1c] sm:$0xf]
      %v347 = vld [vmem:[%s313] sm:$0xff]
      %v348 = vld [vmem:[%s313 + $0x8] sm:$0xff]
      %v349 = vld [vmem:[%s313 + $0x10] sm:$0xff]
      %v350 = vld [vmem:[%s313 + $0x18] sm:$0xff]
      %v351 = vld [vmem:[%s307] sm:$0xf]
      %v352 = vld [vmem:[%s307 + $0x4] sm:$0xf]
      %v353 = vld [vmem:[%s307 + $0x8] sm:$0xf]
      %v354 = vld [vmem:[%s307 + $0xc] sm:$0xf]
      %v355 = vld [vmem:[%s307 + $0x10] sm:$0xf]
      %v356 = vld [vmem:[%s307 + $0x14] sm:$0xf]
      %v357 = vld [vmem:[%s307 + $0x18] sm:$0xf]
      %v358 = vld [vmem:[%s307 + $0x1c] sm:$0xf]
      %v359 = vld [vmem:[%s319] sm:$0xff]
      %v360 = vld [vmem:[%s319 + $0x8] sm:$0xff]
      %v361 = vld [vmem:[%s319 + $0x10] sm:$0xff]
      %v362 = vld [vmem:[%s319 + $0x18] sm:$0xff]
      %v371 = vunpack.c.l.b16 %v351
      %v372 = vunpack.c.l.b16 %v352
      %v373 = vunpack.c.l.b16 %v353
      %v374 = vunpack.c.l.b16 %v354
      %v375 = vunpack.c.l.b16 %v355
      %v376 = vunpack.c.l.b16 %v356
      %v377 = vunpack.c.l.b16 %v357
      %v378 = vunpack.c.l.b16 %v358
      %v379 = vpack.c.b16 %v372, %v371
      %v380 = vpack.c.b16 %v374, %v373
      %v381 = vpack.c.b16 %v376, %v375
      %v382 = vpack.c.b16 %v378, %v377
      %v387 = vunpack.c.l.b16 %v359
      %v388 = vunpack.c.h.b16 %v359
      %v389 = vunpack.c.l.b16 %v360
      %v390 = vunpack.c.h.b16 %v360
      %v391 = vunpack.c.l.b16 %v361
      %v392 = vunpack.c.h.b16 %v361
      %v393 = vunpack.c.l.b16 %v362
      %v394 = vunpack.c.h.b16 %v362
      %v395 = vpack.c.b16 %v389, %v387
      %v396 = vpack.c.b16 %v390, %v388
      %v397 = vpack.c.b16 %v393, %v391
      %v398 = vpack.c.b16 %v394, %v392
      %vm403 = vcmask 261120
      %v405 = vsel %vm403, %v379, 0
      %v408 = vsel %vm403, %v380, 0
      %v411 = vsel %vm403, %v381, 0
      %v414 = vsel %vm403, %v382, 0
      %416 = vmatprep.subr.bf16.mxu0 %v396
      %417 = vmatpush1.bf16.msra.mxu0 %v395
      %418 = vmatprep.subr.bf16.mxu0 %v398
      %419 = vmatpush1.bf16.msra.mxu0 %v397
      %420 = vmatprep.subr.bf16.mxu0 0
      %421 = vmatpush1.bf16.msra.mxu0 0
      %422 = vmatprep.subr.bf16.mxu0 0
      %423 = vmatpush1.bf16.msra.mxu0 0
      %424 = vmatprep.subr.bf16.mxu0 0
      %425 = vmatpush1.bf16.msra.mxu0 0
      %426 = vmatprep.subr.bf16.mxu0 0
      %427 = vmatpush1.bf16.msra.mxu0 0
      %428 = vmatprep.subr.bf16.mxu0 0
      %429 = vmatpush1.bf16.msra.mxu0 0
      %430 = vmatprep.subr.bf16.mxu0 0
      %431 = vmatpush1.bf16.msra.mxu0 0
      %432 = vmatprep.subr.bf16.mxu0 0
      %433 = vmatpush1.bf16.msra.mxu0 0
      %434 = vmatprep.subr.bf16.mxu0 0
      %435 = vmatpush1.bf16.msra.mxu0 0
      %436 = vmatprep.subr.bf16.mxu0 0
      %437 = vmatpush1.bf16.msra.mxu0 0
      %438 = vmatprep.subr.bf16.mxu0 0
      %439 = vmatpush1.bf16.msra.mxu0 0
      %440 = vmatprep.subr.bf16.mxu0 0
      %441 = vmatpush1.bf16.msra.mxu0 0
      %442 = vmatprep.subr.bf16.mxu0 0
      %443 = vmatpush1.bf16.msra.mxu0 0
      %444 = vmatprep.subr.bf16.mxu0 0
      %445 = vmatpush1.bf16.msra.mxu0 0
      %446 = vmatprep.subr.bf16.mxu0 0
      %447 = vmatpush1.bf16.msra.mxu0 0
      %448 = vmatprep.mubr.bf16.mxu0 0
      %449 = vmatmul.mubr.bf16.gmra.mrb[0].mxu0 %v405
      %v450 = vpop.f32.mrb[0].mxu0
      %v451 = vadd.f32 0.0, %v450
      %v452 = vpop.f32.mrb[0].mxu0
      %v453 = vadd.f32 0.0, %v452
      %v454 = vpop.f32.mrb[0].mxu0
      %v455 = vadd.f32 0.0, %v454
      %v456 = vpop.f32.mrb[0].mxu0
      %v457 = vadd.f32 0.0, %v456
      %458 = vmatprep.mubr.bf16.mxu0 0
      %459 = vmatmul.mubr.bf16.gmra.mrb[0].mxu0 %v408
      %v460 = vpop.f32.mrb[0].mxu0
      %v461 = vadd.f32 0.0, %v460
      %v462 = vpop.f32.mrb[0].mxu0
      %v463 = vadd.f32 0.0, %v462
      %v464 = vpop.f32.mrb[0].mxu0
      %v465 = vadd.f32 0.0, %v464
      %v466 = vpop.f32.mrb[0].mxu0
      %v467 = vadd.f32 0.0, %v466
      %468 = vmatprep.mubr.bf16.mxu0 0
      %469 = vmatmul.mubr.bf16.gmra.mrb[0].mxu0 %v411
      %v470 = vpop.f32.mrb[0].mxu0
      %v471 = vadd.f32 0.0, %v470
      %v472 = vpop.f32.mrb[0].mxu0
      %v473 = vadd.f32 0.0, %v472
      %v474 = vpop.f32.mrb[0].mxu0
      %v475 = vadd.f32 0.0, %v474
      %v476 = vpop.f32.mrb[0].mxu0
      %v477 = vadd.f32 0.0, %v476
      %478 = vmatprep.mubr.bf16.mxu0 0
      %479 = vmatmul.mubr.bf16.gmra.mrb[0].mxu0 %v414
      %v480 = vpop.f32.mrb[0].mxu0
      %v481 = vadd.f32 0.0, %v480
      %v482 = vpop.f32.mrb[0].mxu0
      %v483 = vadd.f32 0.0, %v482
      %v484 = vpop.f32.mrb[0].mxu0
      %v485 = vadd.f32 0.0, %v484
      %v486 = vpop.f32.mrb[0].mxu0
      %v487 = vadd.f32 0.0, %v486
      %488 = vdwg.mxu0
      %v497 = vunpack.c.l.b16 %v339
      %v498 = vunpack.c.l.b16 %v340
      %v499 = vunpack.c.l.b16 %v341
      %v500 = vunpack.c.l.b16 %v342
      %v501 = vunpack.c.l.b16 %v343
      %v502 = vunpack.c.l.b16 %v344
      %v503 = vunpack.c.l.b16 %v345
      %v504 = vunpack.c.l.b16 %v346
      %v505 = vpack.c.b16 %v498, %v497
      %v506 = vpack.c.b16 %v500, %v499
      %v507 = vpack.c.b16 %v502, %v501
      %v508 = vpack.c.b16 %v504, %v503
      %v513 = vunpack.c.l.b16 %v347
      %v514 = vunpack.c.h.b16 %v347
      %v515 = vunpack.c.l.b16 %v348
      %v516 = vunpack.c.h.b16 %v348
      %v517 = vunpack.c.l.b16 %v349
      %v518 = vunpack.c.h.b16 %v349
      %v519 = vunpack.c.l.b16 %v350
      %v520 = vunpack.c.h.b16 %v350
      %v521 = vpack.c.b16 %v515, %v513
      %v522 = vpack.c.b16 %v516, %v514
      %v523 = vpack.c.b16 %v519, %v517
      %v524 = vpack.c.b16 %v520, %v518
      %v530 = vsel %vm403, %v505, 0
      %v533 = vsel %vm403, %v506, 0
      %v536 = vsel %vm403, %v507, 0
      %v539 = vsel %vm403, %v508, 0
      %541 = vmatprep.subr.bf16.mxu0 %v522
      %542 = vmatpush1.bf16.msra.mxu0 %v521
      %543 = vmatprep.subr.bf16.mxu0 %v524
      %544 = vmatpush1.bf16.msra.mxu0 %v523
      %545 = vmatprep.subr.bf16.mxu0 0
      %546 = vmatpush1.bf16.msra.mxu0 0
      %547 = vmatprep.subr.bf16.mxu0 0
      %548 = vmatpush1.bf16.msra.mxu0 0
      %549 = vmatprep.subr.bf16.mxu0 0
      %550 = vmatpush1.bf16.msra.mxu0 0
      %551 = vmatprep.subr.bf16.mxu0 0
      %552 = vmatpush1.bf16.msra.mxu0 0
      %553 = vmatprep.subr.bf16.mxu0 0
      %554 = vmatpush1.bf16.msra.mxu0 0
      %555 = vmatprep.subr.bf16.mxu0 0
      %556 = vmatpush1.bf16.msra.mxu0 0
      %557 = vmatprep.subr.bf16.mxu0 0
      %558 = vmatpush1.bf16.msra.mxu0 0
      %559 = vmatprep.subr.bf16.mxu0 0
      %560 = vmatpush1.bf16.msra.mxu0 0
      %561 = vmatprep.subr.bf16.mxu0 0
      %562 = vmatpush1.bf16.msra.mxu0 0
      %563 = vmatprep.subr.bf16.mxu0 0
      %564 = vmatpush1.bf16.msra.mxu0 0
      %565 = vmatprep.subr.bf16.mxu0 0
      %566 = vmatpush1.bf16.msra.mxu0 0
      %567 = vmatprep.subr.bf16.mxu0 0
      %568 = vmatpush1.bf16.msra.mxu0 0
      %569 = vmatprep.subr.bf16.mxu0 0
      %570 = vmatpush1.bf16.msra.mxu0 0
      %571 = vmatprep.subr.bf16.mxu0 0
      %572 = vmatpush1.bf16.msra.mxu0 0
      %573 = vmatprep.mubr.bf16.mxu0 0
      %574 = vmatmul.mubr.bf16.gmra.mrb[0].mxu0 %v530
      %v575 = vpop.f32.mrb[0].mxu0
      %v576 = vadd.f32 %v451, %v575
      %v577 = vpop.f32.mrb[0].mxu0
      %v578 = vadd.f32 %v453, %v577
      %v579 = vpop.f32.mrb[0].mxu0
      %v580 = vadd.f32 %v455, %v579
      %v581 = vpop.f32.mrb[0].mxu0
      %v582 = vadd.f32 %v457, %v581
      %583 = vmatprep.mubr.bf16.mxu0 0
      %584 = vmatmul.mubr.bf16.gmra.mrb[0].mxu0 %v533
      %v585 = vpop.f32.mrb[0].mxu0
      %v586 = vadd.f32 %v461, %v585
      %v587 = vpop.f32.mrb[0].mxu0
      %v588 = vadd.f32 %v463, %v587
      %v589 = vpop.f32.mrb[0].mxu0
      %v590 = vadd.f32 %v465, %v589
      %v591 = vpop.f32.mrb[0].mxu0
      %v592 = vadd.f32 %v467, %v591
      %593 = vmatprep.mubr.bf16.mxu0 0
      %594 = vmatmul.mubr.bf16.gmra.mrb[0].mxu0 %v536
      %v595 = vpop.f32.mrb[0].mxu0
      %v596 = vadd.f32 %v471, %v595
      %v597 = vpop.f32.mrb[0].mxu0
      %v598 = vadd.f32 %v473, %v597
      %v599 = vpop.f32.mrb[0].mxu0
      %v600 = vadd.f32 %v475, %v599
      %v601 = vpop.f32.mrb[0].mxu0
      %v602 = vadd.f32 %v477, %v601
      %603 = vmatprep.mubr.bf16.mxu0 0
      %604 = vmatmul.mubr.bf16.gmra.mrb[0].mxu0 %v539
      %v605 = vpop.f32.mrb[0].mxu0
      %v606 = vadd.f32 %v481, %v605
      %v607 = vpop.f32.mrb[0].mxu0
      %v608 = vadd.f32 %v483, %v607
      %v609 = vpop.f32.mrb[0].mxu0
      %v610 = vadd.f32 %v485, %v609
      %v611 = vpop.f32.mrb[0].mxu0
      %v612 = vadd.f32 %v487, %v611
      %613 = vdwg.mxu0
      %v614 = vld [vmem:[%s324] sm:$0x3]
      %v616 = vlaneseq
      %v617 = vshrl.u32 %v616, 7
      %v618 = vsub.s32 0, %v617
      %v619 = vrot.slane %v614, %v618
      %v620 = vlaneseq
      %v621 = vshrl.u32 %v620, 7
      %v622 = vsub.s32 1, %v621
      %v623 = vrot.slane %v614, %v622
      %v626 = vadd.f32 %v576, %v619
      %v627 = vadd.f32 %v578, %v623
      %v628 = vadd.f32 %v580, %v619
      %v629 = vadd.f32 %v582, %v623
      %v630 = vadd.f32 %v586, %v619
      %v631 = vadd.f32 %v588, %v623
      %v632 = vadd.f32 %v590, %v619
      %v633 = vadd.f32 %v592, %v623
      %v634 = vadd.f32 %v596, %v619
      %v635 = vadd.f32 %v598, %v623
      %v636 = vadd.f32 %v600, %v619
      %v637 = vadd.f32 %v602, %v623
      %v638 = vadd.f32 %v606, %v619
      %v639 = vadd.f32 %v608, %v623
      %v640 = vadd.f32 %v610, %v619
      %v641 = vadd.f32 %v612, %v623
      %642 = vst [vmem:[%s335] sm:$0xff] %v626
      %643 = vst [vmem:[%s335 + $0x8] sm:$0xff] %v627
      %644 = vst [vmem:[%s335 + $0x10] sm:$0xff] %v628
      %645 = vst [vmem:[%s335 + $0x18] sm:$0xff] %v629
      %646 = vst [vmem:[%s335 + $0x20] sm:$0xff] %v630
      %647 = vst [vmem:[%s335 + $0x28] sm:$0xff] %v631
      %648 = vst [vmem:[%s335 + $0x30] sm:$0xff] %v632
      %649 = vst [vmem:[%s335 + $0x38] sm:$0xff] %v633
      %650 = vst [vmem:[%s335 + $0x40] sm:$0xff] %v634
      %651 = vst [vmem:[%s335 + $0x48] sm:$0xff] %v635
      %652 = vst [vmem:[%s335 + $0x50] sm:$0xff] %v636
      %653 = vst [vmem:[%s335 + $0x58] sm:$0xff] %v637
      %654 = vst [vmem:[%s335 + $0x60] sm:$0xff] %v638
      %655 = vst [vmem:[%s335 + $0x68] sm:$0xff] %v639
      %656 = vst [vmem:[%s335 + $0x70] sm:$0xff] %v640
      %657 = vst [vmem:[%s335 + $0x78] sm:$0xff] %v641
      %s658 = smul.u32 8, %s20
      %s659 = smul.u32 2, %s21
      %p660 = scmp.lt.s32.totalorder %s658, 15
      %s661 = scalar_select %p660, %s658, 15
      %p662 = scmp.lt.s32.totalorder %s659, 1
      %s663 = scalar_select %p662, %s659, 1
      %s664 = smul.addr %s661, 2
      %s665 = sadd.s32 %s663, %s664
      %s666 = smul.addr %s665, 8
      %s667 = scalar_lea.vmem %s5, %s666
      // Predicated region
      $region41: #{sequence_classifier_forward.7} parent=39 // pred_check
        %p668 = pneg %p178
      $region42: #{sequence_classifier_forward.7} parent=39 // pred_check_branch
        %670 = sbr.rel (%p668) target = $region44
      $region43: #{sequence_classifier_forward.7} parent=39 // pred_region
        %s671 = smul.u32 8, %s20
        %s672 = smul.u32 2, %s21
      $region44: #{sequence_classifier_forward.7} parent=39 // pred_fallthru
        _
    $region40: #{sequence_classifier_forward.7} parent=5 // pred_fallthru
      _
    %p673 = scmp.le.s32.totalorder 2, %s11
    // Predicated region
    $region45: #{sequence_classifier_forward.7} parent=5 // pred_check
      %p674 = pneg %p673
    $region46: #{sequence_classifier_forward.7} parent=5 // pred_check_branch
      %676 = sbr.rel (%p674) target = $region48
    $region47: #{sequence_classifier_forward.7} parent=5 // pred_region
      %s677 = ssub.s32 %s11, 2
      // Predicated region
      $region49: #{sequence_classifier_forward.7} parent=47 // pred_check
        %p678 = pneg %p184
      $region50: #{sequence_classifier_forward.7} parent=47 // pred_check_branch
        %680 = sbr.rel (%p678) target = $region52
      $region51: #{sequence_classifier_forward.7} parent=47 // pred_region
        %s681 = smul.u32 8, %s22
        %s682 = smul.u32 2, %s23
        %p683 = scmp.lt.s32.totalorder %s681, 15
        %s684 = scalar_select %p683, %s681, 15
        %p685 = scmp.lt.s32.totalorder %s682, 1
        %s686 = scalar_select %p685, %s682, 1
        %s687 = smul.addr %s684, 2
        %s688 = sadd.s32 %s686, %s687
        %s689 = smul.addr %s688, 8
        %s690 = scalar_lea.vmem %s5, %s689
      $region52: #{sequence_classifier_forward.7} parent=47 // pred_fallthru
        _
    $region48: #{sequence_classifier_forward.7} parent=5 // pred_fallthru
      _
  $region6: #{sequence_classifier_forward.7} parent=0 // loop_footer
    %s15 = sadd.s32 1, %s11
  $region7: #{sequence_classifier_forward.7} parent=0 // loop_footer_branch
    %10 = sbr.rel target = $region3
  $region8: #{sequence_classifier_forward.7} parent=0 // loop_exit
    _

// kernel: sequence_classifier_forward.9
$region0: #{sequence_classifier_forward.9}
  #allocation0 [shape = 'u32[]', space=smem, size = 0x4, offset = 0x4, fixed_abs, tag = 'smem constant byte address 0x4 - core index']
  #allocation1 [shape = 'u32[144,128]{1,0:T(1,128)}', space=vmem, size = 0x12000, scoped, tag = 'internal scratch']
  #allocation2 [shape = 'f32[1,1]{1,0:T(1,128)S(1)}', space=vmem, size = 0x200, scoped, tag = 'scoped memory for sequence_classifier_forward.9']
  %s0 = inlined_call_operand.vmem [shape: bf16[8,16,32], index: 0, kind: input, shape index: {}]
  %s1 = inlined_call_operand.vmem [shape: bf16[8,16,32], index: 1, kind: input, shape index: {}]
  %s2 = inlined_call_operand.vmem [shape: f32[1,32], index: 2, kind: input, shape index: {}]
  %s3 = inlined_call_operand.vmem [shape: f32[1,32], index: 3, kind: input, shape index: {}]
  %s4 = inlined_call_operand.<no memory space> [shape: f32[1,1], index: 4, kind: input, shape index: {}]
  %s5 = inlined_call_operand.vmem [shape: bf16[32,5], index: 5, kind: input, shape index: {}]
  %s6 = inlined_call_operand.vmem [shape: bf16[32,5], index: 6, kind: input, shape index: {}]
  %s7 = inlined_call_operand.vmem [shape: f32[1,5], index: 7, kind: input, shape index: {}]
  %s8 = inlined_call_operand.vmem [shape: f32[16,5], index: 8, kind: output, shape index: {}]
  %s9 = sld [smem:[#allocation0]]
  $region42: #{sequence_classifier_forward.9} parent=0
    _
  %s11 = ssub.s32 1, %s9
  %s12 = scalar_select 0, %s11, %s9
  %v13 = vstv %s4
  %14 = vst [vmem:[#allocation2] sm:$0x1] %v13
  // Predicated region
  $region2: #{sequence_classifier_forward.9} parent=0 // pred_check
    _
  $region3: #{sequence_classifier_forward.9} parent=0 // pred_check_branch
    %16 = sbr.rel (0) target = $region5
  $region4: #{sequence_classifier_forward.9} parent=0 // pred_region
    _
  $region5: #{sequence_classifier_forward.9} parent=0 // pred_fallthru
    _
  // Predicated region
  $region6: #{sequence_classifier_forward.9} parent=0 // pred_check
    _
  $region7: #{sequence_classifier_forward.9} parent=0 // pred_check_branch
    %18 = sbr.rel (0) target = $region9
  $region8: #{sequence_classifier_forward.9} parent=0 // pred_region
    _
  $region9: #{sequence_classifier_forward.9} parent=0 // pred_fallthru
    _
  // Predicated region
  $region10: #{sequence_classifier_forward.9} parent=0 // pred_check
    _
  $region11: #{sequence_classifier_forward.9} parent=0 // pred_check_branch
    %20 = sbr.rel (0) target = $region13
  $region12: #{sequence_classifier_forward.9} parent=0 // pred_region
    _
  $region13: #{sequence_classifier_forward.9} parent=0 // pred_fallthru
    _
  // Predicated region
  $region14: #{sequence_classifier_forward.9} parent=0 // pred_check
    _
  $region15: #{sequence_classifier_forward.9} parent=0 // pred_check_branch
    %22 = sbr.rel (0) target = $region17
  $region16: #{sequence_classifier_forward.9} parent=0 // pred_region
    _
  $region17: #{sequence_classifier_forward.9} parent=0 // pred_fallthru
    _
  // Predicated region
  $region18: #{sequence_classifier_forward.9} parent=0 // pred_check
    _
  $region19: #{sequence_classifier_forward.9} parent=0 // pred_check_branch
    %24 = sbr.rel (0) target = $region21
  $region20: #{sequence_classifier_forward.9} parent=0 // pred_region
    _
  $region21: #{sequence_classifier_forward.9} parent=0 // pred_fallthru
    _
  // Predicated region
  $region22: #{sequence_classifier_forward.9} parent=0 // pred_check
    _
  $region23: #{sequence_classifier_forward.9} parent=0 // pred_check_branch
    %26 = sbr.rel (0) target = $region25
  $region24: #{sequence_classifier_forward.9} parent=0 // pred_region
    _
  $region25: #{sequence_classifier_forward.9} parent=0 // pred_fallthru
    _
  // Predicated region
  $region26: #{sequence_classifier_forward.9} parent=0 // pred_check
    _
  $region27: #{sequence_classifier_forward.9} parent=0 // pred_check_branch
    %28 = sbr.rel (0) target = $region29
  $region28: #{sequence_classifier_forward.9} parent=0 // pred_region
    _
  $region29: #{sequence_classifier_forward.9} parent=0 // pred_fallthru
    _
  // Predicated region
  $region30: #{sequence_classifier_forward.9} parent=0 // pred_check
    _
  $region31: #{sequence_classifier_forward.9} parent=0 // pred_check_branch
    %30 = sbr.rel (0) target = $region33
  $region32: #{sequence_classifier_forward.9} parent=0 // pred_region
    _
  $region33: #{sequence_classifier_forward.9} parent=0 // pred_fallthru
    _
  %v32 = vld [vmem:[%s0] sm:$0xf]
  %v33 = vld [vmem:[%s0 + $0x4] sm:$0xf]
  %v34 = vld [vmem:[%s0 + $0x8] sm:$0xf]
  %v35 = vld [vmem:[%s0 + $0xc] sm:$0xf]
  %v36 = vld [vmem:[%s0 + $0x10] sm:$0xf]
  %v37 = vld [vmem:[%s0 + $0x14] sm:$0xf]
  %v38 = vld [vmem:[%s0 + $0x18] sm:$0xf]
  %v39 = vld [vmem:[%s0 + $0x1c] sm:$0xf]
  %v40 = vld [vmem:[%s0 + $0x20] sm:$0xf]
  %v41 = vld [vmem:[%s0 + $0x24] sm:$0xf]
  %v42 = vld [vmem:[%s0 + $0x28] sm:$0xf]
  %v43 = vld [vmem:[%s0 + $0x2c] sm:$0xf]
  %v44 = vld [vmem:[%s0 + $0x30] sm:$0xf]
  %v45 = vld [vmem:[%s0 + $0x34] sm:$0xf]
  %v46 = vld [vmem:[%s0 + $0x38] sm:$0xf]
  %v47 = vld [vmem:[%s0 + $0x3c] sm:$0xf]
  %v48 = vunpack.c.l.bf16 %v32
  %v49 = vunpack.c.l.bf16 %v33
  %v50 = vunpack.c.l.bf16 %v34
  %v51 = vunpack.c.l.bf16 %v35
  %v52 = vunpack.c.l.bf16 %v36
  %v53 = vunpack.c.l.bf16 %v37
  %v54 = vunpack.c.l.bf16 %v38
  %v55 = vunpack.c.l.bf16 %v39
  %v56 = vunpack.c.l.bf16 %v40
  %v57 = vunpack.c.l.bf16 %v41
  %v58 = vunpack.c.l.bf16 %v42
  %v59 = vunpack.c.l.bf16 %v43
  %v60 = vunpack.c.l.bf16 %v44
  %v61 = vunpack.c.l.bf16 %v45
  %v62 = vunpack.c.l.bf16 %v46
  %v63 = vunpack.c.l.bf16 %v47
  %v64 = vld [vmem:[%s1] sm:$0xf]
  %v65 = vld [vmem:[%s1 + $0x4] sm:$0xf]
  %v66 = vld [vmem:[%s1 + $0x8] sm:$0xf]
  %v67 = vld [vmem:[%s1 + $0xc] sm:$0xf]
  %v68 = vld [vmem:[%s1 + $0x10] sm:$0xf]
  %v69 = vld [vmem:[%s1 + $0x14] sm:$0xf]
  %v70 = vld [vmem:[%s1 + $0x18] sm:$0xf]
  %v71 = vld [vmem:[%s1 + $0x1c] sm:$0xf]
  %v72 = vld [vmem:[%s1 + $0x20] sm:$0xf]
  %v73 = vld [vmem:[%s1 + $0x24] sm:$0xf]
  %v74 = vld [vmem:[%s1 + $0x28] sm:$0xf]
  %v75 = vld [vmem:[%s1 + $0x2c] sm:$0xf]
  %v76 = vld [vmem:[%s1 + $0x30] sm:$0xf]
  %v77 = vld [vmem:[%s1 + $0x34] sm:$0xf]
  %v78 = vld [vmem:[%s1 + $0x38] sm:$0xf]
  %v79 = vld [vmem:[%s1 + $0x3c] sm:$0xf]
  %v80 = vunpack.c.l.bf16 %v64
  %v81 = vunpack.c.l.bf16 %v65
  %v82 = vunpack.c.l.bf16 %v66
  %v83 = vunpack.c.l.bf16 %v67
  %v84 = vunpack.c.l.bf16 %v68
  %v85 = vunpack.c.l.bf16 %v69
  %v86 = vunpack.c.l.bf16 %v70
  %v87 = vunpack.c.l.bf16 %v71
  %v88 = vunpack.c.l.bf16 %v72
  %v89 = vunpack.c.l.bf16 %v73
  %v90 = vunpack.c.l.bf16 %v74
  %v91 = vunpack.c.l.bf16 %v75
  %v92 = vunpack.c.l.bf16 %v76
  %v93 = vunpack.c.l.bf16 %v77
  %v94 = vunpack.c.l.bf16 %v78
  %v95 = vunpack.c.l.bf16 %v79
  %v96 = vld [vmem:[%s2] sm:$0x1]
  %v98 = vlaneseq
  %v99 = vshrl.u32 %v98, 7
  %v100 = vsub.s32 0, %v99
  %v101 = vrot.slane %v96, %v100
  %v103 = vmul.f32 %v48, %v101
  %v104 = vmul.f32 %v49, %v101
  %v105 = vmul.f32 %v50, %v101
  %v106 = vmul.f32 %v51, %v101
  %v107 = vmul.f32 %v52, %v101
  %v108 = vmul.f32 %v53, %v101
  %v109 = vmul.f32 %v54, %v101
  %v110 = vmul.f32 %v55, %v101
  %v111 = vmul.f32 %v56, %v101
  %v112 = vmul.f32 %v57, %v101
  %v113 = vmul.f32 %v58, %v101
  %v114 = vmul.f32 %v59, %v101
  %v115 = vmul.f32 %v60, %v101
  %v116 = vmul.f32 %v61, %v101
  %v117 = vmul.f32 %v62, %v101
  %v118 = vmul.f32 %v63, %v101
  %vm119 = vcmask 261120
  %v120 = vsel %vm119, %v103, 0.0
  %121 = vadd.xlane.f32.xlu0 %v120
  %v122 = vpop.xlane.xlu0 %121
  %v123 = vsel %vm119, %v104, 0.0
  %124 = vadd.xlane.f32.xlu0 %v123
  %v125 = vpop.xlane.xlu0 %124
  %v126 = vsel %vm119, %v105, 0.0
  %127 = vadd.xlane.f32.xlu0 %v126
  %v128 = vpop.xlane.xlu0 %127
  %v129 = vsel %vm119, %v106, 0.0
  %130 = vadd.xlane.f32.xlu0 %v129
  %v131 = vpop.xlane.xlu0 %130
  %v132 = vsel %vm119, %v107, 0.0
  %133 = vadd.xlane.f32.xlu0 %v132
  %v134 = vpop.xlane.xlu0 %133
  %v135 = vsel %vm119, %v108, 0.0
  %136 = vadd.xlane.f32.xlu0 %v135
  %v137 = vpop.xlane.xlu0 %136
  %v138 = vsel %vm119, %v109, 0.0
  %139 = vadd.xlane.f32.xlu0 %v138
  %v140 = vpop.xlane.xlu0 %139
  %v141 = vsel %vm119, %v110, 0.0
  %142 = vadd.xlane.f32.xlu0 %v141
  %v143 = vpop.xlane.xlu0 %142
  %v144 = vsel %vm119, %v111, 0.0
  %145 = vadd.xlane.f32.xlu0 %v144
  %v146 = vpop.xlane.xlu0 %145
  %v147 = vsel %vm119, %v112, 0.0
  %148 = vadd.xlane.f32.xlu0 %v147
  %v149 = vpop.xlane.xlu0 %148
  %v150 = vsel %vm119, %v113, 0.0
  %151 = vadd.xlane.f32.xlu0 %v150
  %v152 = vpop.xlane.xlu0 %151
  %v153 = vsel %vm119, %v114, 0.0
  %154 = vadd.xlane.f32.xlu0 %v153
  %v155 = vpop.xlane.xlu0 %154
  %v156 = vsel %vm119, %v115, 0.0
  %157 = vadd.xlane.f32.xlu0 %v156
  %v158 = vpop.xlane.xlu0 %157
  %v159 = vsel %vm119, %v116, 0.0
  %160 = vadd.xlane.f32.xlu0 %v159
  %v161 = vpop.xlane.xlu0 %160
  %v162 = vsel %vm119, %v117, 0.0
  %163 = vadd.xlane.f32.xlu0 %v162
  %v164 = vpop.xlane.xlu0 %163
  %v165 = vsel %vm119, %v118, 0.0
  %166 = vadd.xlane.f32.xlu0 %v165
  %v167 = vpop.xlane.xlu0 %166
  %v168 = vld [vmem:[%s3] sm:$0x1]
  %v170 = vlaneseq
  %v171 = vshrl.u32 %v170, 7
  %v172 = vsub.s32 0, %v171
  %v173 = vrot.slane %v168, %v172
  %v175 = vmul.f32 %v80, %v173
  %v176 = vmul.f32 %v81, %v173
  %v177 = vmul.f32 %v82, %v173
  %v178 = vmul.f32 %v83, %v173
  %v179 = vmul.f32 %v84, %v173
  %v180 = vmul.f32 %v85, %v173
  %v181 = vmul.f32 %v86, %v173
  %v182 = vmul.f32 %v87, %v173
  %v183 = vmul.f32 %v88, %v173
  %v184 = vmul.f32 %v89, %v173
  %v185 = vmul.f32 %v90, %v173
  %v186 = vmul.f32 %v91, %v173
  %v187 = vmul.f32 %v92, %v173
  %v188 = vmul.f32 %v93, %v173
  %v189 = vmul.f32 %v94, %v173
  %v190 = vmul.f32 %v95, %v173
  %v191 = vsel %vm119, %v175, 0.0
  %192 = vadd.xlane.f32.xlu0 %v191
  %v193 = vpop.xlane.xlu0 %192
  %v194 = vsel %vm119, %v176, 0.0
  %195 = vadd.xlane.f32.xlu0 %v194
  %v196 = vpop.xlane.xlu0 %195
  %v197 = vsel %vm119, %v177, 0.0
  %198 = vadd.xlane.f32.xlu0 %v197
  %v199 = vpop.xlane.xlu0 %198
  %v200 = vsel %vm119, %v178, 0.0
  %201 = vadd.xlane.f32.xlu0 %v200
  %v202 = vpop.xlane.xlu0 %201
  %v203 = vsel %vm119, %v179, 0.0
  %204 = vadd.xlane.f32.xlu0 %v203
  %v205 = vpop.xlane.xlu0 %204
  %v206 = vsel %vm119, %v180, 0.0
  %207 = vadd.xlane.f32.xlu0 %v206
  %v208 = vpop.xlane.xlu0 %207
  %v209 = vsel %vm119, %v181, 0.0
  %210 = vadd.xlane.f32.xlu0 %v209
  %v211 = vpop.xlane.xlu0 %210
  %v212 = vsel %vm119, %v182, 0.0
  %213 = vadd.xlane.f32.xlu0 %v212
  %v214 = vpop.xlane.xlu0 %213
  %v215 = vsel %vm119, %v183, 0.0
  %216 = vadd.xlane.f32.xlu0 %v215
  %v217 = vpop.xlane.xlu0 %216
  %v218 = vsel %vm119, %v184, 0.0
  %219 = vadd.xlane.f32.xlu0 %v218
  %v220 = vpop.xlane.xlu0 %219
  %v221 = vsel %vm119, %v185, 0.0
  %222 = vadd.xlane.f32.xlu0 %v221
  %v223 = vpop.xlane.xlu0 %222
  %v224 = vsel %vm119, %v186, 0.0
  %225 = vadd.xlane.f32.xlu0 %v224
  %v226 = vpop.xlane.xlu0 %225
  %v227 = vsel %vm119, %v187, 0.0
  %228 = vadd.xlane.f32.xlu0 %v227
  %v229 = vpop.xlane.xlu0 %228
  %v230 = vsel %vm119, %v188, 0.0
  %231 = vadd.xlane.f32.xlu0 %v230
  %v232 = vpop.xlane.xlu0 %231
  %v233 = vsel %vm119, %v189, 0.0
  %234 = vadd.xlane.f32.xlu0 %v233
  %v235 = vpop.xlane.xlu0 %234
  %v236 = vsel %vm119, %v190, 0.0
  %237 = vadd.xlane.f32.xlu0 %v236
  %v238 = vpop.xlane.xlu0 %237
  %v239 = vadd.f32 %v122, %v193
  %v240 = vadd.f32 %v125, %v196
  %v241 = vadd.f32 %v128, %v199
  %v242 = vadd.f32 %v131, %v202
  %v243 = vadd.f32 %v134, %v205
  %v244 = vadd.f32 %v137, %v208
  %v245 = vadd.f32 %v140, %v211
  %v246 = vadd.f32 %v143, %v214
  %v247 = vadd.f32 %v146, %v217
  %v248 = vadd.f32 %v149, %v220
  %v249 = vadd.f32 %v152, %v223
  %v250 = vadd.f32 %v155, %v226
  %v251 = vadd.f32 %v158, %v229
  %v252 = vadd.f32 %v161, %v232
  %v253 = vadd.f32 %v164, %v235
  %v254 = vadd.f32 %v167, %v238
  %v255 = vld [vmem:[#allocation2] sm:$0x1]
  %s256 = vtos %v255
  %v257 = vstv %s256
  %v258 = vadd.f32 %v239, %v257
  %v259 = vadd.f32 %v240, %v257
  %v260 = vadd.f32 %v241, %v257
  %v261 = vadd.f32 %v242, %v257
  %v262 = vadd.f32 %v243, %v257
  %v263 = vadd.f32 %v244, %v257
  %v264 = vadd.f32 %v245, %v257
  %v265 = vadd.f32 %v246, %v257
  %v266 = vadd.f32 %v247, %v257
  %v267 = vadd.f32 %v248, %v257
  %v268 = vadd.f32 %v249, %v257
  %v269 = vadd.f32 %v250, %v257
  %v270 = vadd.f32 %v251, %v257
  %v271 = vadd.f32 %v252, %v257
  %v272 = vadd.f32 %v253, %v257
  %v273 = vadd.f32 %v254, %v257
  %v274 = vmax.f32 %v258, %v262
  %v275 = vmax.f32 %v260, %v264
  %v276 = vmax.f32 %v274, %v266
  %v277 = vmax.f32 %v275, %v268
  %v278 = vmax.f32 %v276, %v270
  %v279 = vmax.f32 %v277, %v272
  %v280 = vmax.f32 %v278, %v279
  %v281 = vmax.f32 %v259, %v263
  %v282 = vmax.f32 %v261, %v265
  %v283 = vmax.f32 %v281, %v267
  %v284 = vmax.f32 %v282, %v269
  %v285 = vmax.f32 %v283, %v271
  %v286 = vmax.f32 %v284, %v273
  %v287 = vmax.f32 %v285, %v286
  %v288 = vsub.f32 %v258, %v280
  %v289 = vsub.f32 %v259, %v287
  %v290 = vsub.f32 %v260, %v280
  %v291 = vsub.f32 %v261, %v287
  %v292 = vsub.f32 %v262, %v280
  %v293 = vsub.f32 %v263, %v287
  %v294 = vsub.f32 %v264, %v280
  %v295 = vsub.f32 %v265, %v287
  %v296 = vsub.f32 %v266, %v280
  %v297 = vsub.f32 %v267, %v287
  %v298 = vsub.f32 %v268, %v280
  %v299 = vsub.f32 %v269, %v287
  %v300 = vsub.f32 %v270, %v280
  %v301 = vsub.f32 %v271, %v287
  %v302 = vsub.f32 %v272, %v280
  %v303 = vsub.f32 %v273, %v287
  %v304 = vmul.f32 %v288, 1.442695
  %v305 = vpow.pop %v304
  %v306 = vmul.f32 %v289, 1.442695
  %v307 = vpow.pop %v306
  %v308 = vmul.f32 %v290, 1.442695
  %v309 = vpow.pop %v308
  %v310 = vmul.f32 %v291, 1.442695
  %v311 = vpow.pop %v310
  %v312 = vmul.f32 %v292, 1.442695
  %v313 = vpow.pop %v312
  %v314 = vmul.f32 %v293, 1.442695
  %v315 = vpow.pop %v314
  %v316 = vmul.f32 %v294, 1.442695
  %v317 = vpow.pop %v316
  %v318 = vmul.f32 %v295, 1.442695
  %v319 = vpow.pop %v318
  %v320 = vmul.f32 %v296, 1.442695
  %v321 = vpow.pop %v320
  %v322 = vmul.f32 %v297, 1.442695
  %v323 = vpow.pop %v322
  %v324 = vmul.f32 %v298, 1.442695
  %v325 = vpow.pop %v324
  %v326 = vmul.f32 %v299, 1.442695
  %v327 = vpow.pop %v326
  %v328 = vmul.f32 %v300, 1.442695
  %v329 = vpow.pop %v328
  %v330 = vmul.f32 %v301, 1.442695
  %v331 = vpow.pop %v330
  %v332 = vmul.f32 %v302, 1.442695
  %v333 = vpow.pop %v332
  %v334 = vmul.f32 %v303, 1.442695
  %v335 = vpow.pop %v334
  %v336 = vadd.f32 %v305, %v309
  %v337 = vadd.f32 %v336, %v313
  %v338 = vadd.f32 %v337, %v317
  %v339 = vadd.f32 %v338, %v321
  %v340 = vadd.f32 %v339, %v325
  %v341 = vadd.f32 %v340, %v329
  %v342 = vadd.f32 %v341, %v333
  %v343 = vadd.f32 %v307, %v311
  %v344 = vadd.f32 %v343, %v315
  %v345 = vadd.f32 %v344, %v319
  %v346 = vadd.f32 %v345, %v323
  %v347 = vadd.f32 %v346, %v327
  %v348 = vadd.f32 %v347, %v331
  %v349 = vadd.f32 %v348, %v335
  %v350 = vrcp.pop %v342
  %v351 = vrcp.pop %v349
  %v352 = vmul.f32 %v305, %v350
  %v353 = vmul.f32 %v307, %v351
  %v354 = vmul.f32 %v309, %v350
  %v355 = vmul.f32 %v311, %v351
  %v356 = vmul.f32 %v313, %v350
  %v357 = vmul.f32 %v315, %v351
  %v358 = vmul.f32 %v317, %v350
  %v359 = vmul.f32 %v319, %v351
  %v360 = vmul.f32 %v321, %v350
  %v361 = vmul.f32 %v323, %v351
  %v362 = vmul.f32 %v325, %v350
  %v363 = vmul.f32 %v327, %v351
  %v364 = vmul.f32 %v329, %v350
  %v365 = vmul.f32 %v331, %v351
  %v366 = vmul.f32 %v333, %v350
  %v367 = vmul.f32 %v335, %v351
  %v368 = vmul.f32 %v352, %v48
  %v369 = vmul.f32 %v353, %v49
  %v370 = vmul.f32 %v354, %v50
  %v371 = vmul.f32 %v355, %v51
  %v372 = vmul.f32 %v356, %v52
  %v373 = vmul.f32 %v357, %v53
  %v374 = vmul.f32 %v358, %v54
  %v375 = vmul.f32 %v359, %v55
  %v376 = vmul.f32 %v360, %v56
  %v377 = vmul.f32 %v361, %v57
  %v378 = vmul.f32 %v362, %v58
  %v379 = vmul.f32 %v363, %v59
  %v380 = vmul.f32 %v364, %v60
  %v381 = vmul.f32 %v365, %v61
  %v382 = vmul.f32 %v366, %v62
  %v383 = vmul.f32 %v367, %v63
  %v384 = vsel %vm119, %v368, 0.0
  %v385 = vsel %vm119, %v370, 0.0
  %v386 = vadd.f32 %v384, %v385
  %v387 = vsel %vm119, %v372, 0.0
  %v388 = vadd.f32 %v386, %v387
  %v389 = vsel %vm119, %v374, 0.0
  %v390 = vadd.f32 %v388, %v389
  %v391 = vsel %vm119, %v376, 0.0
  %v392 = vadd.f32 %v390, %v391
  %v393 = vsel %vm119, %v378, 0.0
  %v394 = vadd.f32 %v392, %v393
  %v395 = vsel %vm119, %v380, 0.0
  %v396 = vadd.f32 %v394, %v395
  %v397 = vsel %vm119, %v382, 0.0
  %v398 = vadd.f32 %v396, %v397
  %v399 = vsel %vm119, %v369, 0.0
  %v400 = vsel %vm119, %v371, 0.0
  %v401 = vadd.f32 %v399, %v400
  %v402 = vsel %vm119, %v373, 0.0
  %v403 = vadd.f32 %v401, %v402
  %v404 = vsel %vm119, %v375, 0.0
  %v405 = vadd.f32 %v403, %v404
  %v406 = vsel %vm119, %v377, 0.0
  %v407 = vadd.f32 %v405, %v406
  %v408 = vsel %vm119, %v379, 0.0
  %v409 = vadd.f32 %v407, %v408
  %v410 = vsel %vm119, %v381, 0.0
  %v411 = vadd.f32 %v409, %v410
  %v412 = vsel %vm119, %v383, 0.0
  %v413 = vadd.f32 %v411, %v412
  %v414 = vmul.f32 %v352, %v80
  %v415 = vmul.f32 %v353, %v81
  %v416 = vmul.f32 %v354, %v82
  %v417 = vmul.f32 %v355, %v83
  %v418 = vmul.f32 %v356, %v84
  %v419 = vmul.f32 %v357, %v85
  %v420 = vmul.f32 %v358, %v86
  %v421 = vmul.f32 %v359, %v87
  %v422 = vmul.f32 %v360, %v88
  %v423 = vmul.f32 %v361, %v89
  %v424 = vmul.f32 %v362, %v90
  %v425 = vmul.f32 %v363, %v91
  %v426 = vmul.f32 %v364, %v92
  %v427 = vmul.f32 %v365, %v93
  %v428 = vmul.f32 %v366, %v94
  %v429 = vmul.f32 %v367, %v95
  %v430 = vsel %vm119, %v414, 0.0
  %v431 = vsel %vm119, %v416, 0.0
  %v432 = vadd.f32 %v430, %v431
  %v433 = vsel %vm119, %v418, 0.0
  %v434 = vadd.f32 %v432, %v433
  %v435 = vsel %vm119, %v420, 0.0
  %v436 = vadd.f32 %v434, %v435
  %v437 = vsel %vm119, %v422, 0.0
  %v438 = vadd.f32 %v436, %v437
  %v439 = vsel %vm119, %v424, 0.0
  %v440 = vadd.f32 %v438, %v439
  %v441 = vsel %vm119, %v426, 0.0
  %v442 = vadd.f32 %v440, %v441
  %v443 = vsel %vm119, %v428, 0.0
  %v444 = vadd.f32 %v442, %v443
  %v445 = vsel %vm119, %v415, 0.0
  %v446 = vsel %vm119, %v417, 0.0
  %v447 = vadd.f32 %v445, %v446
  %v448 = vsel %vm119, %v419, 0.0
  %v449 = vadd.f32 %v447, %v448
  %v450 = vsel %vm119, %v421, 0.0
  %v451 = vadd.f32 %v449, %v450
  %v452 = vsel %vm119, %v423, 0.0
  %v453 = vadd.f32 %v451, %v452
  %v454 = vsel %vm119, %v425, 0.0
  %v455 = vadd.f32 %v453, %v454
  %v456 = vsel %vm119, %v427, 0.0
  %v457 = vadd.f32 %v455, %v456
  %v458 = vsel %vm119, %v429, 0.0
  %v459 = vadd.f32 %v457, %v458
  %v460 = vpack.c.bf16 %v413, %v398
  %v461 = vld [vmem:[%s5] sm:$0xf]
  %v462 = vld [vmem:[%s5 + $0x4] sm:$0xf]
  %v463 = vld [vmem:[%s5 + $0x8] sm:$0xf]
  %v464 = vld [vmem:[%s5 + $0xc] sm:$0xf]
  %v465 = vpack.c.bf16 %v459, %v444
  %v466 = vld [vmem:[%s6] sm:$0xf]
  %v467 = vld [vmem:[%s6 + $0x4] sm:$0xf]
  %v468 = vld [vmem:[%s6 + $0x8] sm:$0xf]
  %v469 = vld [vmem:[%s6 + $0xc] sm:$0xf]
  %v474 = vunpack.c.l.b16 %v466
  %v475 = vunpack.c.l.b16 %v467
  %v476 = vunpack.c.l.b16 %v468
  %v477 = vunpack.c.l.b16 %v469
  %v478 = vpack.c.b16 %v475, %v474
  %v479 = vpack.c.b16 %v477, %v476
  %v483 = vsel %vm119, %v465, 0
  %485 = vmatprep.subr.bf16.mxu0 0
  %486 = vmatpush1.bf16.msra.mxu0 %v478
  %487 = vmatprep.subr.bf16.mxu0 0
  %488 = vmatpush1.bf16.msra.mxu0 %v479
  %489 = vmatprep.subr.bf16.mxu0 0
  %490 = vmatpush1.bf16.msra.mxu0 0
  %491 = vmatprep.subr.bf16.mxu0 0
  %492 = vmatpush1.bf16.msra.mxu0 0
  %493 = vmatprep.subr.bf16.mxu0 0
  %494 = vmatpush1.bf16.msra.mxu0 0
  %495 = vmatprep.subr.bf16.mxu0 0
  %496 = vmatpush1.bf16.msra.mxu0 0
  %497 = vmatprep.subr.bf16.mxu0 0
  %498 = vmatpush1.bf16.msra.mxu0 0
  %499 = vmatprep.subr.bf16.mxu0 0
  %500 = vmatpush1.bf16.msra.mxu0 0
  %501 = vmatprep.subr.bf16.mxu0 0
  %502 = vmatpush1.bf16.msra.mxu0 0
  %503 = vmatprep.subr.bf16.mxu0 0
  %504 = vmatpush1.bf16.msra.mxu0 0
  %505 = vmatprep.subr.bf16.mxu0 0
  %506 = vmatpush1.bf16.msra.mxu0 0
  %507 = vmatprep.subr.bf16.mxu0 0
  %508 = vmatpush1.bf16.msra.mxu0 0
  %509 = vmatprep.subr.bf16.mxu0 0
  %510 = vmatpush1.bf16.msra.mxu0 0
  %511 = vmatprep.subr.bf16.mxu0 0
  %512 = vmatpush1.bf16.msra.mxu0 0
  %513 = vmatprep.subr.bf16.mxu0 0
  %514 = vmatpush1.bf16.msra.mxu0 0
  %515 = vmatprep.subr.bf16.mxu0 0
  %516 = vmatpush1.bf16.msra.mxu0 0
  %517 = vmatprep.mubr.bf16.mxu0 0
  %518 = vmatmul.mubr.bf16.gmra.mrb[0].mxu0 %v483
  %v519 = vpop.f32.mrb[0].mxu0
  %v520 = vadd.f32 0.0, %v519
  %v521 = vpop.f32.mrb[0].mxu0
  %v522 = vpop.f32.mrb[0].mxu0
  %v523 = vadd.f32 0.0, %v522
  %v524 = vpop.f32.mrb[0].mxu0
  %525 = vdwg.mxu0
  %v530 = vunpack.c.l.b16 %v461
  %v531 = vunpack.c.l.b16 %v462
  %v532 = vunpack.c.l.b16 %v463
  %v533 = vunpack.c.l.b16 %v464
  %v534 = vpack.c.b16 %v531, %v530
  %v535 = vpack.c.b16 %v533, %v532
  %v539 = vsel %vm119, %v460, 0
  %541 = vmatprep.subr.bf16.mxu0 0
  %542 = vmatpush1.bf16.msra.mxu0 %v534
  %543 = vmatprep.subr.bf16.mxu0 0
  %544 = vmatpush1.bf16.msra.mxu0 %v535
  %545 = vmatprep.subr.bf16.mxu0 0
  %546 = vmatpush1.bf16.msra.mxu0 0
  %547 = vmatprep.subr.bf16.mxu0 0
  %548 = vmatpush1.bf16.msra.mxu0 0
  %549 = vmatprep.subr.bf16.mxu0 0
  %550 = vmatpush1.bf16.msra.mxu0 0
  %551 = vmatprep.subr.bf16.mxu0 0
  %552 = vmatpush1.bf16.msra.mxu0 0
  %553 = vmatprep.subr.bf16.mxu0 0
  %554 = vmatpush1.bf16.msra.mxu0 0
  %555 = vmatprep.subr.bf16.mxu0 0
  %556 = vmatpush1.bf16.msra.mxu0 0
  %557 = vmatprep.subr.bf16.mxu0 0
  %558 = vmatpush1.bf16.msra.mxu0 0
  %559 = vmatprep.subr.bf16.mxu0 0
  %560 = vmatpush1.bf16.msra.mxu0 0
  %561 = vmatprep.subr.bf16.mxu0 0
  %562 = vmatpush1.bf16.msra.mxu0 0
  %563 = vmatprep.subr.bf16.mxu0 0
  %564 = vmatpush1.bf16.msra.mxu0 0
  %565 = vmatprep.subr.bf16.mxu0 0
  %566 = vmatpush1.bf16.msra.mxu0 0
  %567 = vmatprep.subr.bf16.mxu0 0
  %568 = vmatpush1.bf16.msra.mxu0 0
  %569 = vmatprep.subr.bf16.mxu0 0
  %570 = vmatpush1.bf16.msra.mxu0 0
  %571 = vmatprep.subr.bf16.mxu0 0
  %572 = vmatpush1.bf16.msra.mxu0 0
  %573 = vmatprep.mubr.bf16.mxu0 0
  %574 = vmatmul.mubr.bf16.gmra.mrb[0].mxu0 %v539
  %v575 = vpop.f32.mrb[0].mxu0
  %v576 = vadd.f32 %v520, %v575
  %v577 = vpop.f32.mrb[0].mxu0
  %v578 = vpop.f32.mrb[0].mxu0
  %v579 = vadd.f32 %v523, %v578
  %v580 = vpop.f32.mrb[0].mxu0
  %581 = vdwg.mxu0
  %v582 = vld [vmem:[%s7] sm:$0x1]
  %v584 = vlaneseq
  %v585 = vshrl.u32 %v584, 7
  %v586 = vsub.s32 0, %v585
  %v587 = vrot.slane %v582, %v586
  %v589 = vadd.f32 %v576, %v587
  %v590 = vadd.f32 %v579, %v587
  %vm591 = vcmask 39936
  %592 = vst.msk [vmem:[%s8] sm:$0xff] %vm591, %v589
  %593 = vst.msk [vmem:[%s8 + $0x8] sm:$0xff] %vm591, %v590
  // Predicated region
  $region34: #{sequence_classifier_forward.9} parent=0 // pred_check
    _
  $region35: #{sequence_classifier_forward.9} parent=0 // pred_check_branch
    %595 = sbr.rel (0) target = $region37
  $region36: #{sequence_classifier_forward.9} parent=0 // pred_region
    _
  $region37: #{sequence_classifier_forward.9} parent=0 // pred_fallthru
    _
  // Predicated region
  $region38: #{sequence_classifier_forward.9} parent=0 // pred_check
    _
  $region39: #{sequence_classifier_forward.9} parent=0 // pred_check_branch
    %597 = sbr.rel (0) target = $region41
  $region40: #{sequence_classifier_forward.9} parent=0 // pred_region
    _
  $region41: #{sequence_classifier_forward.9} parent=0 // pred_fallthru
    _

// kernel: sequence_classifier_forward.6
$region0: #{sequence_classifier_forward.6}
  #allocation0 [shape = 'u32[]', space=smem, size = 0x4, offset = 0x4, fixed_abs, tag = 'smem constant byte address 0x4 - core index']
  #allocation1 [shape = 'u32[144,128]{1,0:T(1,128)}', space=vmem, size = 0x12000, scoped, tag = 'internal scratch']
  #allocation2 [shape = 'f32[16,32]{1,0:T(8,128)}', space=vmem, size = 0x2000, scoped, tag = 'scratch operand']
  #allocation3 [shape = 'f32[16,32]{1,0:T(8,128)}', space=vmem, size = 0x2000, scoped, tag = 'scratch operand']
  #allocation4 [shape = 'f32[16,32]{1,0:T(8,128)}', space=vmem, size = 0x2000, scoped, tag = 'scratch operand']
  #allocation5 [shape = 'f32[16,32]{1,0:T(8,128)}', space=vmem, size = 0x2000, scoped, tag = 'scratch operand']
  %s0 = inlined_call_operand.vmem [shape: f32[8,16,256], index: 0, kind: input, shape index: {}, may-alias: {0,1}]
  %s1 = inlined_call_operand.vmem [shape: f32[8,16,256], index: 1, kind: input, shape index: {}, may-alias: {0,1}]
  %s2 = inlined_call_operand.vmem [shape: bf16[32,128], index: 2, kind: input, shape index: {}]
  %s3 = inlined_call_operand.vmem [shape: bf16[32,128], index: 3, kind: input, shape index: {}]
  %s4 = inlined_call_operand.vmem [shape: bf16[8,16,32], index: 4, kind: output, shape index: {0}]
  %s5 = inlined_call_operand.vmem [shape: bf16[8,16,32], index: 5, kind: output, shape index: {1}]
  %6 = xla_tuple %s4, %s5
  %s7 = sld [smem:[#allocation0]]
  $region114: #{sequence_classifier_forward.6} parent=0
    _
  %s9 = ssub.s32 1, %s7
  %s10 = scalar_select 0, %s9, %s7
  $region1: #{sequence_classifier_forward.6} parent=0
    #allocation6 [shape = 'u8[65536]{0}', space=vmem, size = 0x10000, scoped, tag = 'input window, operand 0, single buffered']
    #allocation7 [shape = 'u8[65536]{0}', space=vmem, size = 0x10000, scoped, tag = 'input window, operand 1, single buffered']
    // Predicated region
    $region2: #{sequence_classifier_forward.6} parent=1 // pred_check
      _
    $region3: #{sequence_classifier_forward.6} parent=1 // pred_check_branch
      %12 = sbr.rel (0) target = $region5
    $region4: #{sequence_classifier_forward.6} parent=1 // pred_region
      // Predicated region
      $region6: #{sequence_classifier_forward.6} parent=4 // pred_check
        _
      $region7: #{sequence_classifier_forward.6} parent=4 // pred_check_branch
        %14 = sbr.rel (0) target = $region9
      $region8: #{sequence_classifier_forward.6} parent=4 // pred_region
        // Predicated region
        $region10: #{sequence_classifier_forward.6} parent=8 // pred_check
          _
        $region11: #{sequence_classifier_forward.6} parent=8 // pred_check_branch
          %16 = sbr.rel (0) target = $region13
        $region12: #{sequence_classifier_forward.6} parent=8 // pred_region
          // Predicated region
          $region25: #{sequence_classifier_forward.6} parent=12 // pred_check
            _
          $region26: #{sequence_classifier_forward.6} parent=12 // pred_check_branch
            %61 = sbr.rel (0) target = $region28
          $region27: #{sequence_classifier_forward.6} parent=12 // pred_region
            loop: start=0, step=1, limit=1
            $region29: #{sequence_classifier_forward.6} parent=27 // loop_pre_header
              _
            $region30: #{sequence_classifier_forward.6} parent=27 // loop_header
              %s63 = sphi 0, %s67
              %p64 = scmp.ge.s32.totalorder %s63, 1
              %s68 = sphi %s0, %s0
              %s69 = sphi [#allocation6], [#allocation6]
            $region31: #{sequence_classifier_forward.6} parent=27 // loop_header_branch
              %66 = sbr.rel (%p64) target = $region35
            $region32: #{sequence_classifier_forward.6} parent=27 // loop_body
              %v70 = vld [vmem:[%s68] sm:$0xff]
              %71 = vst [vmem:[%s69] sm:$0xff] %v70
              %v72 = vld [vmem:[%s68 + $0x10] sm:$0xff]
              %73 = vst [vmem:[%s69 + $0x8] sm:$0xff] %v72
              %v74 = vld [vmem:[%s68 + $0x20] sm:$0xff]
              %75 = vst [vmem:[%s69 + $0x10] sm:$0xff] %v74
              %v76 = vld [vmem:[%s68 + $0x30] sm:$0xff]
              %77 = vst [vmem:[%s69 + $0x18] sm:$0xff] %v76
              %v78 = vld [vmem:[%s68 + $0x40] sm:$0xff]
              %79 = vst [vmem:[%s69 + $0x20] sm:$0xff] %v78
              %v80 = vld [vmem:[%s68 + $0x50] sm:$0xff]
              %81 = vst [vmem:[%s69 + $0x28] sm:$0xff] %v80
              %v82 = vld [vmem:[%s68 + $0x60] sm:$0xff]
              %83 = vst [vmem:[%s69 + $0x30] sm:$0xff] %v82
              %v84 = vld [vmem:[%s68 + $0x70] sm:$0xff]
              %85 = vst [vmem:[%s69 + $0x38] sm:$0xff] %v84
              %v86 = vld [vmem:[%s68 + $0x80] sm:$0xff]
              %87 = vst [vmem:[%s69 + $0x40] sm:$0xff] %v86
              %v88 = vld [vmem:[%s68 + $0x90] sm:$0xff]
              %89 = vst [vmem:[%s69 + $0x48] sm:$0xff] %v88
              %v90 = vld [vmem:[%s68 + $0xa0] sm:$0xff]
              %91 = vst [vmem:[%s69 + $0x50] sm:$0xff] %v90
              %v92 = vld [vmem:[%s68 + $0xb0] sm:$0xff]
              %93 = vst [vmem:[%s69 + $0x58] sm:$0xff] %v92
              %v94 = vld [vmem:[%s68 + $0xc0] sm:$0xff]
              %95 = vst [vmem:[%s69 + $0x60] sm:$0xff] %v94
              %v96 = vld [vmem:[%s68 + $0xd0] sm:$0xff]
              %97 = vst [vmem:[%s69 + $0x68] sm:$0xff] %v96
              %v98 = vld [vmem:[%s68 + $0xe0] sm:$0xff]
              %99 = vst [vmem:[%s69 + $0x70] sm:$0xff] %v98
              %v100 = vld [vmem:[%s68 + $0xf0] sm:$0xff]
              %101 = vst [vmem:[%s69 + $0x78] sm:$0xff] %v100
            $region33: #{sequence_classifier_forward.6} parent=27 // loop_footer
              %s67 = sadd.s32 1, %s63
            $region34: #{sequence_classifier_forward.6} parent=27 // loop_footer_branch
              %62 = sbr.rel target = $region30
            $region35: #{sequence_classifier_forward.6} parent=27 // loop_exit
              _
          $region28: #{sequence_classifier_forward.6} parent=12 // pred_fallthru
            _
          // Predicated region
          $region36: #{sequence_classifier_forward.6} parent=12 // pred_check
            _
          $region37: #{sequence_classifier_forward.6} parent=12 // pred_check_branch
            %103 = sbr.rel target = $region39
          $region38: #{sequence_classifier_forward.6} parent=12 // pred_region
            _
          $region39: #{sequence_classifier_forward.6} parent=12 // pred_fallthru
            _
        $region13: #{sequence_classifier_forward.6} parent=8 // pred_fallthru
          _
        // Predicated region
        $region14: #{sequence_classifier_forward.6} parent=8 // pred_check
          _
        $region15: #{sequence_classifier_forward.6} parent=8 // pred_check_branch
          %18 = sbr.rel target = $region17
        $region16: #{sequence_classifier_forward.6} parent=8 // pred_region
          loop: start=0, step=1, limit=1
          $region18: #{sequence_classifier_forward.6} parent=16 // loop_pre_header
            _
          $region19: #{sequence_classifier_forward.6} parent=16 // loop_header
            %s21 = sphi 0, %s25
            %p22 = scmp.ge.s32.totalorder %s21, 1
            %s26 = sphi %s0, %s0
            %s27 = sphi [#allocation6], [#allocation6]
          $region20: #{sequence_classifier_forward.6} parent=16 // loop_header_branch
            %24 = sbr.rel (%p22) target = $region24
          $region21: #{sequence_classifier_forward.6} parent=16 // loop_body
            %v28 = vld [vmem:[%s26] sm:$0xff]
            %29 = vst [vmem:[%s27] sm:$0xff] %v28
            %v30 = vld [vmem:[%s26 + $0x10] sm:$0xff]
            %31 = vst [vmem:[%s27 + $0x8] sm:$0xff] %v30
            %v32 = vld [vmem:[%s26 + $0x20] sm:$0xff]
            %33 = vst [vmem:[%s27 + $0x10] sm:$0xff] %v32
            %v34 = vld [vmem:[%s26 + $0x30] sm:$0xff]
            %35 = vst [vmem:[%s27 + $0x18] sm:$0xff] %v34
            %v36 = vld [vmem:[%s26 + $0x40] sm:$0xff]
            %37 = vst [vmem:[%s27 + $0x20] sm:$0xff] %v36
            %v38 = vld [vmem:[%s26 + $0x50] sm:$0xff]
            %39 = vst [vmem:[%s27 + $0x28] sm:$0xff] %v38
            %v40 = vld [vmem:[%s26 + $0x60] sm:$0xff]
            %41 = vst [vmem:[%s27 + $0x30] sm:$0xff] %v40
            %v42 = vld [vmem:[%s26 + $0x70] sm:$0xff]
            %43 = vst [vmem:[%s27 + $0x38] sm:$0xff] %v42
            %v44 = vld [vmem:[%s26 + $0x80] sm:$0xff]
            %45 = vst [vmem:[%s27 + $0x40] sm:$0xff] %v44
            %v46 = vld [vmem:[%s26 + $0x90] sm:$0xff]
            %47 = vst [vmem:[%s27 + $0x48] sm:$0xff] %v46
            %v48 = vld [vmem:[%s26 + $0xa0] sm:$0xff]
            %49 = vst [vmem:[%s27 + $0x50] sm:$0xff] %v48
            %v50 = vld [vmem:[%s26 + $0xb0] sm:$0xff]
            %51 = vst [vmem:[%s27 + $0x58] sm:$0xff] %v50
            %v52 = vld [vmem:[%s26 + $0xc0] sm:$0xff]
            %53 = vst [vmem:[%s27 + $0x60] sm:$0xff] %v52
            %v54 = vld [vmem:[%s26 + $0xd0] sm:$0xff]
            %55 = vst [vmem:[%s27 + $0x68] sm:$0xff] %v54
            %v56 = vld [vmem:[%s26 + $0xe0] sm:$0xff]
            %57 = vst [vmem:[%s27 + $0x70] sm:$0xff] %v56
            %v58 = vld [vmem:[%s26 + $0xf0] sm:$0xff]
            %59 = vst [vmem:[%s27 + $0x78] sm:$0xff] %v58
          $region22: #{sequence_classifier_forward.6} parent=16 // loop_footer
            %s25 = sadd.s32 1, %s21
          $region23: #{sequence_classifier_forward.6} parent=16 // loop_footer_branch
            %20 = sbr.rel target = $region19
          $region24: #{sequence_classifier_forward.6} parent=16 // loop_exit
            _
        $region17: #{sequence_classifier_forward.6} parent=8 // pred_fallthru
          _
      $region9: #{sequence_classifier_forward.6} parent=4 // pred_fallthru
        _
      %104 = vnop
    $region5: #{sequence_classifier_forward.6} parent=1 // pred_fallthru
      _
    // Predicated region
    $region40: #{sequence_classifier_forward.6} parent=1 // pred_check
      _
    $region41: #{sequence_classifier_forward.6} parent=1 // pred_check_branch
      %106 = sbr.rel (0) target = $region43
    $region42: #{sequence_classifier_forward.6} parent=1 // pred_region
      %s107 = ssub.s32 0, 0
      %s108 = smul.u32 8, %s107
      %s109 = smul.addr %s108, 4
      %s110 = sadd.s32 1, %s109
      %s111 = smul.addr %s110, 8
      %s112 = scalar_lea.vmem %s1, %s111
      // Predicated region
      $region44: #{sequence_classifier_forward.6} parent=42 // pred_check
        _
      $region45: #{sequence_classifier_forward.6} parent=42 // pred_check_branch
        %114 = sbr.rel (0) target = $region47
      $region46: #{sequence_classifier_forward.6} parent=42 // pred_region
        // Predicated region
        $region48: #{sequence_classifier_forward.6} parent=46 // pred_check
          _
        $region49: #{sequence_classifier_forward.6} parent=46 // pred_check_branch
          %116 = sbr.rel (0) target = $region51
        $region50: #{sequence_classifier_forward.6} parent=46 // pred_region
          // Predicated region
          $region63: #{sequence_classifier_forward.6} parent=50 // pred_check
            _
          $region64: #{sequence_classifier_forward.6} parent=50 // pred_check_branch
            %161 = sbr.rel (0) target = $region66
          $region65: #{sequence_classifier_forward.6} parent=50 // pred_region
            loop: start=0, step=1, limit=1
            $region67: #{sequence_classifier_forward.6} parent=65 // loop_pre_header
              _
            $region68: #{sequence_classifier_forward.6} parent=65 // loop_header
              %s163 = sphi 0, %s167
              %p164 = scmp.ge.s32.totalorder %s163, 1
              %s168 = sphi %s112, %s112
              %s169 = sphi [#allocation7], [#allocation7]
            $region69: #{sequence_classifier_forward.6} parent=65 // loop_header_branch
              %166 = sbr.rel (%p164) target = $region73
            $region70: #{sequence_classifier_forward.6} parent=65 // loop_body
              %v170 = vld [vmem:[%s168] sm:$0xff]
              %171 = vst [vmem:[%s169] sm:$0xff] %v170
              %v172 = vld [vmem:[%s168 + $0x10] sm:$0xff]
              %173 = vst [vmem:[%s169 + $0x8] sm:$0xff] %v172
              %v174 = vld [vmem:[%s168 + $0x20] sm:$0xff]
              %175 = vst [vmem:[%s169 + $0x10] sm:$0xff] %v174
              %v176 = vld [vmem:[%s168 + $0x30] sm:$0xff]
              %177 = vst [vmem:[%s169 + $0x18] sm:$0xff] %v176
              %v178 = vld [vmem:[%s168 + $0x40] sm:$0xff]
              %179 = vst [vmem:[%s169 + $0x20] sm:$0xff] %v178
              %v180 = vld [vmem:[%s168 + $0x50] sm:$0xff]
              %181 = vst [vmem:[%s169 + $0x28] sm:$0xff] %v180
              %v182 = vld [vmem:[%s168 + $0x60] sm:$0xff]
              %183 = vst [vmem:[%s169 + $0x30] sm:$0xff] %v182
              %v184 = vld [vmem:[%s168 + $0x70] sm:$0xff]
              %185 = vst [vmem:[%s169 + $0x38] sm:$0xff] %v184
              %v186 = vld [vmem:[%s168 + $0x80] sm:$0xff]
              %187 = vst [vmem:[%s169 + $0x40] sm:$0xff] %v186
              %v188 = vld [vmem:[%s168 + $0x90] sm:$0xff]
              %189 = vst [vmem:[%s169 + $0x48] sm:$0xff] %v188
              %v190 = vld [vmem:[%s168 + $0xa0] sm:$0xff]
              %191 = vst [vmem:[%s169 + $0x50] sm:$0xff] %v190
              %v192 = vld [vmem:[%s168 + $0xb0] sm:$0xff]
              %193 = vst [vmem:[%s169 + $0x58] sm:$0xff] %v192
              %v194 = vld [vmem:[%s168 + $0xc0] sm:$0xff]
              %195 = vst [vmem:[%s169 + $0x60] sm:$0xff] %v194
              %v196 = vld [vmem:[%s168 + $0xd0] sm:$0xff]
              %197 = vst [vmem:[%s169 + $0x68] sm:$0xff] %v196
              %v198 = vld [vmem:[%s168 + $0xe0] sm:$0xff]
              %199 = vst [vmem:[%s169 + $0x70] sm:$0xff] %v198
              %v200 = vld [vmem:[%s168 + $0xf0] sm:$0xff]
              %201 = vst [vmem:[%s169 + $0x78] sm:$0xff] %v200
            $region71: #{sequence_classifier_forward.6} parent=65 // loop_footer
              %s167 = sadd.s32 1, %s163
            $region72: #{sequence_classifier_forward.6} parent=65 // loop_footer_branch
              %162 = sbr.rel target = $region68
            $region73: #{sequence_classifier_forward.6} parent=65 // loop_exit
              _
          $region66: #{sequence_classifier_forward.6} parent=50 // pred_fallthru
            _
          // Predicated region
          $region74: #{sequence_classifier_forward.6} parent=50 // pred_check
            _
          $region75: #{sequence_classifier_forward.6} parent=50 // pred_check_branch
            %203 = sbr.rel target = $region77
          $region76: #{sequence_classifier_forward.6} parent=50 // pred_region
            _
          $region77: #{sequence_classifier_forward.6} parent=50 // pred_fallthru
            _
        $region51: #{sequence_classifier_forward.6} parent=46 // pred_fallthru
          _
        // Predicated region
        $region52: #{sequence_classifier_forward.6} parent=46 // pred_check
          _
        $region53: #{sequence_classifier_forward.6} parent=46 // pred_check_branch
          %118 = sbr.rel target = $region55
        $region54: #{sequence_classifier_forward.6} parent=46 // pred_region
          loop: start=0, step=1, limit=1
          $region56: #{sequence_classifier_forward.6} parent=54 // loop_pre_header
            _
          $region57: #{sequence_classifier_forward.6} parent=54 // loop_header
            %s121 = sphi 0, %s125
            %p122 = scmp.ge.s32.totalorder %s121, 1
            %s126 = sphi %s112, %s112
            %s127 = sphi [#allocation7], [#allocation7]
          $region58: #{sequence_classifier_forward.6} parent=54 // loop_header_branch
            %124 = sbr.rel (%p122) target = $region62
          $region59: #{sequence_classifier_forward.6} parent=54 // loop_body
            %v128 = vld [vmem:[%s126] sm:$0xff]
            %129 = vst [vmem:[%s127] sm:$0xff] %v128
            %v130 = vld [vmem:[%s126 + $0x10] sm:$0xff]
            %131 = vst [vmem:[%s127 + $0x8] sm:$0xff] %v130
            %v132 = vld [vmem:[%s126 + $0x20] sm:$0xff]
            %133 = vst [vmem:[%s127 + $0x10] sm:$0xff] %v132
            %v134 = vld [vmem:[%s126 + $0x30] sm:$0xff]
            %135 = vst [vmem:[%s127 + $0x18] sm:$0xff] %v134
            %v136 = vld [vmem:[%s126 + $0x40] sm:$0xff]
            %137 = vst [vmem:[%s127 + $0x20] sm:$0xff] %v136
            %v138 = vld [vmem:[%s126 + $0x50] sm:$0xff]
            %139 = vst [vmem:[%s127 + $0x28] sm:$0xff] %v138
            %v140 = vld [vmem:[%s126 + $0x60] sm:$0xff]
            %141 = vst [vmem:[%s127 + $0x30] sm:$0xff] %v140
            %v142 = vld [vmem:[%s126 + $0x70] sm:$0xff]
            %143 = vst [vmem:[%s127 + $0x38] sm:$0xff] %v142
            %v144 = vld [vmem:[%s126 + $0x80] sm:$0xff]
            %145 = vst [vmem:[%s127 + $0x40] sm:$0xff] %v144
            %v146 = vld [vmem:[%s126 + $0x90] sm:$0xff]
            %147 = vst [vmem:[%s127 + $0x48] sm:$0xff] %v146
            %v148 = vld [vmem:[%s126 + $0xa0] sm:$0xff]
            %149 = vst [vmem:[%s127 + $0x50] sm:$0xff] %v148
            %v150 = vld [vmem:[%s126 + $0xb0] sm:$0xff]
            %151 = vst [vmem:[%s127 + $0x58] sm:$0xff] %v150
            %v152 = vld [vmem:[%s126 + $0xc0] sm:$0xff]
            %153 = vst [vmem:[%s127 + $0x60] sm:$0xff] %v152
            %v154 = vld [vmem:[%s126 + $0xd0] sm:$0xff]
            %155 = vst [vmem:[%s127 + $0x68] sm:$0xff] %v154
            %v156 = vld [vmem:[%s126 + $0xe0] sm:$0xff]
            %157 = vst [vmem:[%s127 + $0x70] sm:$0xff] %v156
            %v158 = vld [vmem:[%s126 + $0xf0] sm:$0xff]
            %159 = vst [vmem:[%s127 + $0x78] sm:$0xff] %v158
          $region60: #{sequence_classifier_forward.6} parent=54 // loop_footer
            %s125 = sadd.s32 1, %s121
          $region61: #{sequence_classifier_forward.6} parent=54 // loop_footer_branch
            %120 = sbr.rel target = $region57
          $region62: #{sequence_classifier_forward.6} parent=54 // loop_exit
            _
        $region55: #{sequence_classifier_forward.6} parent=46 // pred_fallthru
          _
      $region47: #{sequence_classifier_forward.6} parent=42 // pred_fallthru
        _
      %204 = vnop
    $region43: #{sequence_classifier_forward.6} parent=1 // pred_fallthru
      _
    // Predicated region
    $region78: #{sequence_classifier_forward.6} parent=1 // pred_check
      _
    $region79: #{sequence_classifier_forward.6} parent=1 // pred_check_branch
      %206 = sbr.rel (0) target = $region81
    $region80: #{sequence_classifier_forward.6} parent=1 // pred_region
      _
    $region81: #{sequence_classifier_forward.6} parent=1 // pred_fallthru
      _
    // Predicated region
    $region82: #{sequence_classifier_forward.6} parent=1 // pred_check
      _
    $region83: #{sequence_classifier_forward.6} parent=1 // pred_check_branch
      %208 = sbr.rel (0) target = $region85
    $region84: #{sequence_classifier_forward.6} parent=1 // pred_region
      _
    $region85: #{sequence_classifier_forward.6} parent=1 // pred_fallthru
      _
    // Predicated region
    $region86: #{sequence_classifier_forward.6} parent=1 // pred_check
      _
    $region87: #{sequence_classifier_forward.6} parent=1 // pred_check_branch
      %210 = sbr.rel (0) target = $region89
    $region88: #{sequence_classifier_forward.6} parent=1 // pred_region
      _
    $region89: #{sequence_classifier_forward.6} parent=1 // pred_fallthru
      _
    // Predicated region
    $region90: #{sequence_classifier_forward.6} parent=1 // pred_check
      _
    $region91: #{sequence_classifier_forward.6} parent=1 // pred_check_branch
      %212 = sbr.rel (0) target = $region93
    $region92: #{sequence_classifier_forward.6} parent=1 // pred_region
      _
    $region93: #{sequence_classifier_forward.6} parent=1 // pred_fallthru
      _
    %s213 = ssub.s32 0, 0
    %s214 = smul.u32 8, %s213
    %p215 = scmp.lt.s32.totalorder %s214, 7
    %s216 = scalar_select %p215, %s214, 7
    %s217 = smul.addr %s216, 2
    %s218 = smul.addr %s217, 4
    %s219 = scalar_lea.vmem %s5, %s218
    %s220 = ssub.s32 0, 0
    %s221 = smul.u32 8, %s220
    %s222 = ssub.s32 0, 0
    %s223 = smul.u32 8, %s222
    %p224 = scmp.lt.s32.totalorder %s223, 7
    %s225 = scalar_select %p224, %s223, 7
    %s226 = smul.addr %s225, 2
    %s227 = smul.addr %s226, 4
    %s228 = scalar_lea.vmem %s5, %s227
    %s229 = ssub.s32 0, 0
    %s230 = smul.u32 8, %s229
    %p232 = scmp.eq.s32.totalorder 0, 0
    // Predicated region
    $region94: #{sequence_classifier_forward.6} parent=1 // pred_check
      %p233 = pneg %p232
    $region95: #{sequence_classifier_forward.6} parent=1 // pred_check_branch
      %235 = sbr.rel (%p233) target = $region97
    $region96: #{sequence_classifier_forward.6} parent=1 // pred_region
      %vm236 = vcmask 261120
      %237 = vst.msk [vmem:[#allocation2] sm:$0xff] %vm236, 0.0
      %238 = vst.msk [vmem:[#allocation2 + $0x8] sm:$0xff] %vm236, 0.0
      %239 = vst.msk [vmem:[#allocation3] sm:$0xff] %vm236, 0.0
      %240 = vst.msk [vmem:[#allocation3 + $0x8] sm:$0xff] %vm236, 0.0
      %241 = vst.msk [vmem:[#allocation4] sm:$0xff] %vm236, 0.0
      %242 = vst.msk [vmem:[#allocation4 + $0x8] sm:$0xff] %vm236, 0.0
      %243 = vst.msk [vmem:[#allocation5] sm:$0xff] %vm236, 0.0
      %244 = vst.msk [vmem:[#allocation5 + $0x8] sm:$0xff] %vm236, 0.0
    $region97: #{sequence_classifier_forward.6} parent=1 // pred_fallthru
      _
    %v245 = vld [vmem:[%s2] sm:$0xf]
    %v246 = vld [vmem:[%s2 + $0x4] sm:$0xf]
    %v247 = vld [vmem:[%s2 + $0x8] sm:$0xf]
    %v248 = vld [vmem:[%s2 + $0xc] sm:$0xf]
    %v249 = vld [vmem:[%s3] sm:$0xf]
    %v250 = vld [vmem:[%s3 + $0x4] sm:$0xf]
    %v251 = vld [vmem:[%s3 + $0x8] sm:$0xf]
    %v252 = vld [vmem:[%s3 + $0xc] sm:$0xf]
    %v253 = vld [vmem:[#allocation2] sm:$0xff]
    %v254 = vld [vmem:[#allocation2 + $0x8] sm:$0xff]
    %v255 = vld [vmem:[#allocation3] sm:$0xff]
    %v256 = vld [vmem:[#allocation3 + $0x8] sm:$0xff]
    %v257 = vld [vmem:[#allocation4] sm:$0xff]
    %v258 = vld [vmem:[#allocation4 + $0x8] sm:$0xff]
    %v259 = vld [vmem:[#allocation5] sm:$0xff]
    %v260 = vld [vmem:[#allocation5 + $0x8] sm:$0xff]
    %v261 = vld [vmem:[#allocation6] sm:$0xff]
    %v262 = vld [vmem:[#allocation6 + $0x8] sm:$0xff]
    %v263 = vpack.c.bf16 %v254, %v253
    %v268 = vunpack.c.l.b16 %v245
    %v269 = vunpack.c.l.b16 %v246
    %v270 = vunpack.c.l.b16 %v247
    %v271 = vunpack.c.l.b16 %v248
    %v272 = vpack.c.b16 %v269, %v268
    %v273 = vpack.c.b16 %v271, %v270
    %vm276 = vcmask 261120
    %v278 = vsel %vm276, %v263, 0
    %280 = vmatprep.subr.bf16.mxu0 0
    %281 = vmatpush1.bf16.msra.mxu0 %v272
    %282 = vmatprep.subr.bf16.mxu0 0
    %283 = vmatpush1.bf16.msra.mxu0 %v273
    %284 = vmatprep.subr.bf16.mxu0 0
    %285 = vmatpush1.bf16.msra.mxu0 0
    %286 = vmatprep.subr.bf16.mxu0 0
    %287 = vmatpush1.bf16.msra.mxu0 0
    %288 = vmatprep.subr.bf16.mxu0 0
    %289 = vmatpush1.bf16.msra.mxu0 0
    %290 = vmatprep.subr.bf16.mxu0 0
    %291 = vmatpush1.bf16.msra.mxu0 0
    %292 = vmatprep.subr.bf16.mxu0 0
    %293 = vmatpush1.bf16.msra.mxu0 0
    %294 = vmatprep.subr.bf16.mxu0 0
    %295 = vmatpush1.bf16.msra.mxu0 0
    %296 = vmatprep.subr.bf16.mxu0 0
    %297 = vmatpush1.bf16.msra.mxu0 0
    %298 = vmatprep.subr.bf16.mxu0 0
    %299 = vmatpush1.bf16.msra.mxu0 0
    %300 = vmatprep.subr.bf16.mxu0 0
    %301 = vmatpush1.bf16.msra.mxu0 0
    %302 = vmatprep.subr.bf16.mxu0 0
    %303 = vmatpush1.bf16.msra.mxu0 0
    %304 = vmatprep.subr.bf16.mxu0 0
    %305 = vmatpush1.bf16.msra.mxu0 0
    %306 = vmatprep.subr.bf16.mxu0 0
    %307 = vmatpush1.bf16.msra.mxu0 0
    %308 = vmatprep.subr.bf16.mxu0 0
    %309 = vmatpush1.bf16.msra.mxu0 0
    %310 = vmatprep.subr.bf16.mxu0 0
    %311 = vmatpush1.bf16.msra.mxu0 0
    %312 = vmatprep.mubr.bf16.mxu0 0
    %313 = vmatmul.mubr.bf16.gmra.mrb[0].mxu0 %v278
    %v314 = vpop.f32.mrb[0].mxu0
    %v315 = vadd.f32 0.0, %v314
    %v316 = vpop.f32.mrb[0].mxu0
    %v317 = vpop.f32.mrb[0].mxu0
    %v318 = vadd.f32 0.0, %v317
    %v319 = vpop.f32.mrb[0].mxu0
    %320 = vdwg.mxu0
    %v321 = vadd.f32 %v261, %v315
    %v322 = vadd.f32 %v262, %v318
    %v323 = vxor.u32 %v321, 2147483648
    %v324 = vxor.u32 %v322, 2147483648
    %v325 = vmul.f32 %v323, 1.442695
    %v326 = vpow.pop %v325
    %v327 = vmul.f32 %v324, 1.442695
    %v328 = vpow.pop %v327
    %v329 = vadd.f32 %v326, 1.0
    %v330 = vadd.f32 %v328, 1.0
    %v331 = vrcp.pop %v329
    %v332 = vmul.f32 1.0, %v331
    %v333 = vrcp.pop %v330
    %v334 = vmul.f32 1.0, %v333
    %v335 = vtanh.pop %v321
    %v336 = vtanh.pop %v322
    %339 = vrot.lane.b32.xlu0 %v255, 32
    %v340 = vpop.permute.xlu0 %339
    %341 = vrot.lane.b32.xlu0 %v256, 32
    %v342 = vpop.permute.xlu0 %341
    %v345 = vmul.f32 %v332, %v340
    %v346 = vmul.f32 %v334, %v342
    %349 = vrot.lane.b32.xlu0 %v335, 64
    %v350 = vpop.permute.xlu0 %349
    %351 = vrot.lane.b32.xlu0 %v336, 64
    %v352 = vpop.permute.xlu0 %351
    %v355 = vmul.f32 %v332, %v350
    %v356 = vmul.f32 %v334, %v352
    %359 = vrot.lane.b32.xlu0 %v355, 32
    %v360 = vpop.permute.xlu0 %359
    %361 = vrot.lane.b32.xlu0 %v356, 32
    %v362 = vpop.permute.xlu0 %361
    %v365 = vadd.f32 %v345, %v360
    %v366 = vadd.f32 %v346, %v362
    %v367 = vtanh.pop %v365
    %v368 = vtanh.pop %v366
    %371 = vrot.lane.b32.xlu0 %v367, 64
    %v372 = vpop.permute.xlu0 %371
    %373 = vrot.lane.b32.xlu0 %v368, 64
    %v374 = vpop.permute.xlu0 %373
    %v377 = vmul.f32 %v332, %v372
    %v378 = vmul.f32 %v334, %v374
    %v379 = vpack.c.bf16 %v378, %v377
    %v381 = vunpack.c.l.b16 %v379
    %v382 = vunpack.c.h.b16 %v379
    %v383 = vpack.c.b16 %v381, %v381
    %v384 = vpack.c.b16 %v382, %v382
    %385 = vrot.lane.b32.xlu0 %v383, 32
    %v386 = vpop.permute.xlu0 %385
    %387 = vrot.lane.b32.xlu0 %v384, 32
    %v388 = vpop.permute.xlu0 %387
    %vm391 = vcmask 257024
    %392 = vst.msk [vmem:[%s4] sm:$0xf] %vm391, %v386
    %393 = vst.msk [vmem:[%s4 + $0x4] sm:$0xf] %vm391, %v388
    %s394 = scalar_lea.vmem [#allocation7], 112
    %v395 = vld [vmem:[%s394] sm:$0xff]
    %v396 = vld [vmem:[%s394 + $0x8] sm:$0xff]
    %v397 = vpack.c.bf16 %v258, %v257
    %v402 = vunpack.c.l.b16 %v249
    %v403 = vunpack.c.l.b16 %v250
    %v404 = vunpack.c.l.b16 %v251
    %v405 = vunpack.c.l.b16 %v252
    %v406 = vpack.c.b16 %v403, %v402
    %v407 = vpack.c.b16 %v405, %v404
    %v411 = vsel %vm276, %v397, 0
    %413 = vmatprep.subr.bf16.mxu0 0
    %414 = vmatpush1.bf16.msra.mxu0 %v406
    %415 = vmatprep.subr.bf16.mxu0 0
    %416 = vmatpush1.bf16.msra.mxu0 %v407
    %417 = vmatprep.subr.bf16.mxu0 0
    %418 = vmatpush1.bf16.msra.mxu0 0
    %419 = vmatprep.subr.bf16.mxu0 0
    %420 = vmatpush1.bf16.msra.mxu0 0
    %421 = vmatprep.subr.bf16.mxu0 0
    %422 = vmatpush1.bf16.msra.mxu0 0
    %423 = vmatprep.subr.bf16.mxu0 0
    %424 = vmatpush1.bf16.msra.mxu0 0
    %425 = vmatprep.subr.bf16.mxu0 0
    %426 = vmatpush1.bf16.msra.mxu0 0
    %427 = vmatprep.subr.bf16.mxu0 0
    %428 = vmatpush1.bf16.msra.mxu0 0
    %429 = vmatprep.subr.bf16.mxu0 0
    %430 = vmatpush1.bf16.msra.mxu0 0
    %431 = vmatprep.subr.bf16.mxu0 0
    %432 = vmatpush1.bf16.msra.mxu0 0
    %433 = vmatprep.subr.bf16.mxu0 0
    %434 = vmatpush1.bf16.msra.mxu0 0
    %435 = vmatprep.subr.bf16.mxu0 0
    %436 = vmatpush1.bf16.msra.mxu0 0
    %437 = vmatprep.subr.bf16.mxu0 0
    %438 = vmatpush1.bf16.msra.mxu0 0
    %439 = vmatprep.subr.bf16.mxu0 0
    %440 = vmatpush1.bf16.msra.mxu0 0
    %441 = vmatprep.subr.bf16.mxu0 0
    %442 = vmatpush1.bf16.msra.mxu0 0
    %443 = vmatprep.subr.bf16.mxu0 0
    %444 = vmatpush1.bf16.msra.mxu0 0
    %445 = vmatprep.mubr.bf16.mxu0 0
    %446 = vmatmul.mubr.bf16.gmra.mrb[0].mxu0 %v411
    %v447 = vpop.f32.mrb[0].mxu0
    %v448 = vadd.f32 0.0, %v447
    %v449 = vpop.f32.mrb[0].mxu0
    %v450 = vpop.f32.mrb[0].mxu0
    %v451 = vadd.f32 0.0, %v450
    %v452 = vpop.f32.mrb[0].mxu0
    %453 = vdwg.mxu0
    %v454 = vadd.f32 %v395, %v448
    %v455 = vadd.f32 %v396, %v451
    %v456 = vxor.u32 %v454, 2147483648
    %v457 = vxor.u32 %v455, 2147483648
    %v458 = vmul.f32 %v456, 1.442695
    %v459 = vpow.pop %v458
    %v460 = vmul.f32 %v457, 1.442695
    %v461 = vpow.pop %v460
    %v462 = vadd.f32 %v459, 1.0
    %v463 = vadd.f32 %v461, 1.0
    %v464 = vrcp.pop %v462
    %v465 = vmul.f32 1.0, %v464
    %v466 = vrcp.pop %v463
    %v467 = vmul.f32 1.0, %v466
    %v468 = vtanh.pop %v454
    %v469 = vtanh.pop %v455
    %472 = vrot.lane.b32.xlu0 %v259, 32
    %v473 = vpop.permute.xlu0 %472
    %474 = vrot.lane.b32.xlu0 %v260, 32
    %v475 = vpop.permute.xlu0 %474
    %v478 = vmul.f32 %v465, %v473
    %v479 = vmul.f32 %v467, %v475
    %482 = vrot.lane.b32.xlu0 %v468, 64
    %v483 = vpop.permute.xlu0 %482
    %484 = vrot.lane.b32.xlu0 %v469, 64
    %v485 = vpop.permute.xlu0 %484
    %v488 = vmul.f32 %v465, %v483
    %v489 = vmul.f32 %v467, %v485
    %492 = vrot.lane.b32.xlu0 %v488, 32
    %v493 = vpop.permute.xlu0 %492
    %494 = vrot.lane.b32.xlu0 %v489, 32
    %v495 = vpop.permute.xlu0 %494
    %v498 = vadd.f32 %v478, %v493
    %v499 = vadd.f32 %v479, %v495
    %v500 = vtanh.pop %v498
    %v501 = vtanh.pop %v499
    %504 = vrot.lane.b32.xlu0 %v500, 64
    %v505 = vpop.permute.xlu0 %504
    %506 = vrot.lane.b32.xlu0 %v501, 64
    %v507 = vpop.permute.xlu0 %506
    %v510 = vmul.f32 %v465, %v505
    %v511 = vmul.f32 %v467, %v507
    %v512 = vpack.c.bf16 %v511, %v510
    %v514 = vunpack.c.l.b16 %v512
    %v515 = vunpack.c.h.b16 %v512
    %v516 = vpack.c.b16 %v514, %v514
    %v517 = vpack.c.b16 %v515, %v515
    %518 = vrot.lane.b32.xlu0 %v516, 32
    %v519 = vpop.permute.xlu0 %518
    %520 = vrot.lane.b32.xlu0 %v517, 32
    %v521 = vpop.permute.xlu0 %520
    %s524 = scalar_lea.vmem %s228, 56
    %525 = vst.msk [vmem:[%s524] sm:$0xf] %vm391, %v519
    %526 = vst.msk [vmem:[%s524 + $0x4] sm:$0xf] %vm391, %v521
    %s527 = scalar_lea.vmem [#allocation6], 16
    %v528 = vld [vmem:[%s527] sm:$0xff]
    %v529 = vld [vmem:[%s527 + $0x8] sm:$0xff]
    %530 = vrot.lane.b32.xlu0 %v379, 32
    %v531 = vpop.permute.xlu0 %530
    %v533 = vsel %vm276, %v531, 0
    %535 = vmatprep.subr.bf16.mxu0 0
    %536 = vmatpush1.bf16.msra.mxu0 %v272
    %537 = vmatprep.subr.bf16.mxu0 0
    %538 = vmatpush1.bf16.msra.mxu0 %v273
    %539 = vmatprep.subr.bf16.mxu0 0
    %540 = vmatpush1.bf16.msra.mxu0 0
    %541 = vmatprep.subr.bf16.mxu0 0
    %542 = vmatpush1.bf16.msra.mxu0 0
    %543 = vmatprep.subr.bf16.mxu0 0
    %544 = vmatpush1.bf16.msra.mxu0 0
    %545 = vmatprep.subr.bf16.mxu0 0
    %546 = vmatpush1.bf16.msra.mxu0 0
    %547 = vmatprep.subr.bf16.mxu0 0
    %548 = vmatpush1.bf16.msra.mxu0 0
    %549 = vmatprep.subr.bf16.mxu0 0
    %550 = vmatpush1.bf16.msra.mxu0 0
    %551 = vmatprep.subr.bf16.mxu0 0
    %552 = vmatpush1.bf16.msra.mxu0 0
    %553 = vmatprep.subr.bf16.mxu0 0
    %554 = vmatpush1.bf16.msra.mxu0 0
    %555 = vmatprep.subr.bf16.mxu0 0
    %556 = vmatpush1.bf16.msra.mxu0 0
    %557 = vmatprep.subr.bf16.mxu0 0
    %558 = vmatpush1.bf16.msra.mxu0 0
    %559 = vmatprep.subr.bf16.mxu0 0
    %560 = vmatpush1.bf16.msra.mxu0 0
    %561 = vmatprep.subr.bf16.mxu0 0
    %562 = vmatpush1.bf16.msra.mxu0 0
    %563 = vmatprep.subr.bf16.mxu0 0
    %564 = vmatpush1.bf16.msra.mxu0 0
    %565 = vmatprep.subr.bf16.mxu0 0
    %566 = vmatpush1.bf16.msra.mxu0 0
    %567 = vmatprep.mubr.bf16.mxu0 0
    %568 = vmatmul.mubr.bf16.gmra.mrb[0].mxu0 %v533
    %v569 = vpop.f32.mrb[0].mxu0
    %v570 = vadd.f32 0.0, %v569
    %v571 = vpop.f32.mrb[0].mxu0
    %v572 = vpop.f32.mrb[0].mxu0
    %v573 = vadd.f32 0.0, %v572
    %v574 = vpop.f32.mrb[0].mxu0
    %575 = vdwg.mxu0
    %v576 = vadd.f32 %v528, %v570
    %v577 = vadd.f32 %v529, %v573
    %v578 = vxor.u32 %v576, 2147483648
    %v579 = vxor.u32 %v577, 2147483648
    %v580 = vmul.f32 %v578, 1.442695
    %v581 = vpow.pop %v580
    %v582 = vmul.f32 %v579, 1.442695
    %v583 = vpow.pop %v582
    %v584 = vadd.f32 %v581, 1.0
    %v585 = vadd.f32 %v583, 1.0
    %v586 = vrcp.pop %v584
    %v587 = vmul.f32 1.0, %v586
    %v588 = vrcp.pop %v585
    %v589 = vmul.f32 1.0, %v588
    %v590 = vtanh.pop %v576
    %v591 = vtanh.pop %v577
    %v592 = vmul.f32 %v587, %v365
    %v593 = vmul.f32 %v589, %v366
    %596 = vrot.lane.b32.xlu0 %v590, 64
    %v597 = vpop.permute.xlu0 %596
    %598 = vrot.lane.b32.xlu0 %v591, 64
    %v599 = vpop.permute.xlu0 %598
    %v602 = vmul.f32 %v587, %v597
    %v603 = vmul.f32 %v589, %v599
    %606 = vrot.lane.b32.xlu0 %v602, 32
    %v607 = vpop.permute.xlu0 %606
    %608 = vrot.lane.b32.xlu0 %v603, 32
    %v609 = vpop.permute.xlu0 %608
    %v612 = vadd.f32 %v592, %v607
    %v613 = vadd.f32 %v593, %v609
    %v614 = vtanh.pop %v612
    %v615 = vtanh.pop %v613
    %618 = vrot.lane.b32.xlu0 %v614, 64
    %v619 = vpop.permute.xlu0 %618
    %620 = vrot.lane.b32.xlu0 %v615, 64
    %v621 = vpop.permute.xlu0 %620
    %v624 = vmul.f32 %v587, %v619
    %v625 = vmul.f32 %v589, %v621
    %v626 = vpack.c.bf16 %v625, %v624
    %v628 = vunpack.c.l.b16 %v626
    %v629 = vunpack.c.h.b16 %v626
    %v630 = vpack.c.b16 %v628, %v628
    %v631 = vpack.c.b16 %v629, %v629
    %632 = vrot.lane.b32.xlu0 %v630, 32
    %v633 = vpop.permute.xlu0 %632
    %634 = vrot.lane.b32.xlu0 %v631, 32
    %v635 = vpop.permute.xlu0 %634
    %s638 = scalar_lea.vmem %s4, 8
    %639 = vst.msk [vmem:[%s638] sm:$0xf] %vm391, %v633
    %640 = vst.msk [vmem:[%s638 + $0x4] sm:$0xf] %vm391, %v635
    %s641 = scalar_lea.vmem [#allocation7], 96
    %v642 = vld [vmem:[%s641] sm:$0xff]
    %v643 = vld [vmem:[%s641 + $0x8] sm:$0xff]
    %644 = vrot.lane.b32.xlu0 %v512, 32
    %v645 = vpop.permute.xlu0 %644
    %v647 = vsel %vm276, %v645, 0
    %649 = vmatprep.subr.bf16.mxu0 0
    %650 = vmatpush1.bf16.msra.mxu0 %v406
    %651 = vmatprep.subr.bf16.mxu0 0
    %652 = vmatpush1.bf16.msra.mxu0 %v407
    %653 = vmatprep.subr.bf16.mxu0 0
    %654 = vmatpush1.bf16.msra.mxu0 0
    %655 = vmatprep.subr.bf16.mxu0 0
    %656 = vmatpush1.bf16.msra.mxu0 0
    %657 = vmatprep.subr.bf16.mxu0 0
    %658 = vmatpush1.bf16.msra.mxu0 0
    %659 = vmatprep.subr.bf16.mxu0 0
    %660 = vmatpush1.bf16.msra.mxu0 0
    %661 = vmatprep.subr.bf16.mxu0 0
    %662 = vmatpush1.bf16.msra.mxu0 0
    %663 = vmatprep.subr.bf16.mxu0 0
    %664 = vmatpush1.bf16.msra.mxu0 0
    %665 = vmatprep.subr.bf16.mxu0 0
    %666 = vmatpush1.bf16.msra.mxu0 0
    %667 = vmatprep.subr.bf16.mxu0 0
    %668 = vmatpush1.bf16.msra.mxu0 0
    %669 = vmatprep.subr.bf16.mxu0 0
    %670 = vmatpush1.bf16.msra.mxu0 0
    %671 = vmatprep.subr.bf16.mxu0 0
    %672 = vmatpush1.bf16.msra.mxu0 0
    %673 = vmatprep.subr.bf16.mxu0 0
    %674 = vmatpush1.bf16.msra.mxu0 0
    %675 = vmatprep.subr.bf16.mxu0 0
    %676 = vmatpush1.bf16.msra.mxu0 0
    %677 = vmatprep.subr.bf16.mxu0 0
    %678 = vmatpush1.bf16.msra.mxu0 0
    %679 = vmatprep.subr.bf16.mxu0 0
    %680 = vmatpush1.bf16.msra.mxu0 0
    %681 = vmatprep.mubr.bf16.mxu0 0
    %682 = vmatmul.mubr.bf16.gmra.mrb[0].mxu0 %v647
    %v683 = vpop.f32.mrb[0].mxu0
    %v684 = vadd.f32 0.0, %v683
    %v685 = vpop.f32.mrb[0].mxu0
    %v686 = vpop.f32.mrb[0].mxu0
    %v687 = vadd.f32 0.0, %v686
    %v688 = vpop.f32.mrb[0].mxu0
    %689 = vdwg.mxu0
    %v690 = vadd.f32 %v642, %v684
    %v691 = vadd.f32 %v643, %v687
    %v692 = vxor.u32 %v690, 2147483648
    %v693 = vxor.u32 %v691, 2147483648
    %v694 = vmul.f32 %v692, 1.442695
    %v695 = vpow.pop %v694
    %v696 = vmul.f32 %v693, 1.442695
    %v697 = vpow.pop %v696
    %v698 = vadd.f32 %v695, 1.0
    %v699 = vadd.f32 %v697, 1.0
    %v700 = vrcp.pop %v698
    %v701 = vmul.f32 1.0, %v700
    %v702 = vrcp.pop %v699
    %v703 = vmul.f32 1.0, %v702
    %v704 = vtanh.pop %v690
    %v705 = vtanh.pop %v691
    %v706 = vmul.f32 %v701, %v498
    %v707 = vmul.f32 %v703, %v499
    %710 = vrot.lane.b32.xlu0 %v704, 64
    %v711 = vpop.permute.xlu0 %710
    %712 = vrot.lane.b32.xlu0 %v705, 64
    %v713 = vpop.permute.xlu0 %712
    %v716 = vmul.f32 %v701, %v711
    %v717 = vmul.f32 %v703, %v713
    %720 = vrot.lane.b32.xlu0 %v716, 32
    %v721 = vpop.permute.xlu0 %720
    %722 = vrot.lane.b32.xlu0 %v717, 32
    %v723 = vpop.permute.xlu0 %722
    %v726 = vadd.f32 %v706, %v721
    %v727 = vadd.f32 %v707, %v723
    %v728 = vtanh.pop %v726
    %v729 = vtanh.pop %v727
    %732 = vrot.lane.b32.xlu0 %v728, 64
    %v733 = vpop.permute.xlu0 %732
    %734 = vrot.lane.b32.xlu0 %v729, 64
    %v735 = vpop.permute.xlu0 %734
    %v738 = vmul.f32 %v701, %v733
    %v739 = vmul.f32 %v703, %v735
    %v740 = vpack.c.bf16 %v739, %v738
    %v742 = vunpack.c.l.b16 %v740
    %v743 = vunpack.c.h.b16 %v740
    %v744 = vpack.c.b16 %v742, %v742
    %v745 = vpack.c.b16 %v743, %v743
    %746 = vrot.lane.b32.xlu0 %v744, 32
    %v747 = vpop.permute.xlu0 %746
    %748 = vrot.lane.b32.xlu0 %v745, 32
    %v749 = vpop.permute.xlu0 %748
    %s752 = scalar_lea.vmem %s228, 48
    %753 = vst.msk [vmem:[%s752] sm:$0xf] %vm391, %v747
    %754 = vst.msk [vmem:[%s752 + $0x4] sm:$0xf] %vm391, %v749
    %s755 = scalar_lea.vmem [#allocation6], 32
    %v756 = vld [vmem:[%s755] sm:$0xff]
    %v757 = vld [vmem:[%s755 + $0x8] sm:$0xff]
    %758 = vrot.lane.b32.xlu0 %v626, 32
    %v759 = vpop.permute.xlu0 %758
    %v761 = vsel %vm276, %v759, 0
    %763 = vmatprep.subr.bf16.mxu0 0
    %764 = vmatpush1.bf16.msra.mxu0 %v272
    %765 = vmatprep.subr.bf16.mxu0 0
    %766 = vmatpush1.bf16.msra.mxu0 %v273
    %767 = vmatprep.subr.bf16.mxu0 0
    %768 = vmatpush1.bf16.msra.mxu0 0
    %769 = vmatprep.subr.bf16.mxu0 0
    %770 = vmatpush1.bf16.msra.mxu0 0
    %771 = vmatprep.subr.bf16.mxu0 0
    %772 = vmatpush1.bf16.msra.mxu0 0
    %773 = vmatprep.subr.bf16.mxu0 0
    %774 = vmatpush1.bf16.msra.mxu0 0
    %775 = vmatprep.subr.bf16.mxu0 0
    %776 = vmatpush1.bf16.msra.mxu0 0
    %777 = vmatprep.subr.bf16.mxu0 0
    %778 = vmatpush1.bf16.msra.mxu0 0
    %779 = vmatprep.subr.bf16.mxu0 0
    %780 = vmatpush1.bf16.msra.mxu0 0
    %781 = vmatprep.subr.bf16.mxu0 0
    %782 = vmatpush1.bf16.msra.mxu0 0
    %783 = vmatprep.subr.bf16.mxu0 0
    %784 = vmatpush1.bf16.msra.mxu0 0
    %785 = vmatprep.subr.bf16.mxu0 0
    %786 = vmatpush1.bf16.msra.mxu0 0
    %787 = vmatprep.subr.bf16.mxu0 0
    %788 = vmatpush1.bf16.msra.mxu0 0
    %789 = vmatprep.subr.bf16.mxu0 0
    %790 = vmatpush1.bf16.msra.mxu0 0
    %791 = vmatprep.subr.bf16.mxu0 0
    %792 = vmatpush1.bf16.msra.mxu0 0
    %793 = vmatprep.subr.bf16.mxu0 0
    %794 = vmatpush1.bf16.msra.mxu0 0
    %795 = vmatprep.mubr.bf16.mxu0 0
    %796 = vmatmul.mubr.bf16.gmra.mrb[0].mxu0 %v761
    %v797 = vpop.f32.mrb[0].mxu0
    %v798 = vadd.f32 0.0, %v797
    %v799 = vpop.f32.mrb[0].mxu0
    %v800 = vpop.f32.mrb[0].mxu0
    %v801 = vadd.f32 0.0, %v800
    %v802 = vpop.f32.mrb[0].mxu0
    %803 = vdwg.mxu0
    %v804 = vadd.f32 %v756, %v798
    %v805 = vadd.f32 %v757, %v801
    %v806 = vxor.u32 %v804, 2147483648
    %v807 = vxor.u32 %v805, 2147483648
    %v808 = vmul.f32 %v806, 1.442695
    %v809 = vpow.pop %v808
    %v810 = vmul.f32 %v807, 1.442695
    %v811 = vpow.pop %v810
    %v812 = vadd.f32 %v809, 1.0
    %v813 = vadd.f32 %v811, 1.0
    %v814 = vrcp.pop %v812
    %v815 = vmul.f32 1.0, %v814
    %v816 = vrcp.pop %v813
    %v817 = vmul.f32 1.0, %v816
    %v818 = vtanh.pop %v804
    %v819 = vtanh.pop %v805
    %v820 = vmul.f32 %v815, %v612
    %v821 = vmul.f32 %v817, %v613
    %824 = vrot.lane.b32.xlu0 %v818, 64
    %v825 = vpop.permute.xlu0 %824
    %826 = vrot.lane.b32.xlu0 %v819, 64
    %v827 = vpop.permute.xlu0 %826
    %v830 = vmul.f32 %v815, %v825
    %v831 = vmul.f32 %v817, %v827
    %834 = vrot.lane.b32.xlu0 %v830, 32
    %v835 = vpop.permute.xlu0 %834
    %836 = vrot.lane.b32.xlu0 %v831, 32
    %v837 = vpop.permute.xlu0 %836
    %v840 = vadd.f32 %v820, %v835
    %v841 = vadd.f32 %v821, %v837
    %v842 = vtanh.pop %v840
    %v843 = vtanh.pop %v841
    %846 = vrot.lane.b32.xlu0 %v842, 64
    %v847 = vpop.permute.xlu0 %846
    %848 = vrot.lane.b32.xlu0 %v843, 64
    %v849 = vpop.permute.xlu0 %848
    %v852 = vmul.f32 %v815, %v847
    %v853 = vmul.f32 %v817, %v849
    %v854 = vpack.c.bf16 %v853, %v852
    %v856 = vunpack.c.l.b16 %v854
    %v857 = vunpack.c.h.b16 %v854
    %v858 = vpack.c.b16 %v856, %v856
    %v859 = vpack.c.b16 %v857, %v857
    %860 = vrot.lane.b32.xlu0 %v858, 32
    %v861 = vpop.permute.xlu0 %860
    %862 = vrot.lane.b32.xlu0 %v859, 32
    %v863 = vpop.permute.xlu0 %862
    %s866 = scalar_lea.vmem %s4, 16
    %867 = vst.msk [vmem:[%s866] sm:$0xf] %vm391, %v861
    %868 = vst.msk [vmem:[%s866 + $0x4] sm:$0xf] %vm391, %v863
    %s869 = scalar_lea.vmem [#allocation7], 80
    %v870 = vld [vmem:[%s869] sm:$0xff]
    %v871 = vld [vmem:[%s869 + $0x8] sm:$0xff]
    %872 = vrot.lane.b32.xlu0 %v740, 32
    %v873 = vpop.permute.xlu0 %872
    %v875 = vsel %vm276, %v873, 0
    %877 = vmatprep.subr.bf16.mxu0 0
    %878 = vmatpush1.bf16.msra.mxu0 %v406
    %879 = vmatprep.subr.bf16.mxu0 0
    %880 = vmatpush1.bf16.msra.mxu0 %v407
    %881 = vmatprep.subr.bf16.mxu0 0
    %882 = vmatpush1.bf16.msra.mxu0 0
    %883 = vmatprep.subr.bf16.mxu0 0
    %884 = vmatpush1.bf16.msra.mxu0 0
    %885 = vmatprep.subr.bf16.mxu0 0
    %886 = vmatpush1.bf16.msra.mxu0 0
    %887 = vmatprep.subr.bf16.mxu0 0
    %888 = vmatpush1.bf16.msra.mxu0 0
    %889 = vmatprep.subr.bf16.mxu0 0
    %890 = vmatpush1.bf16.msra.mxu0 0
    %891 = vmatprep.subr.bf16.mxu0 0
    %892 = vmatpush1.bf16.msra.mxu0 0
    %893 = vmatprep.subr.bf16.mxu0 0
    %894 = vmatpush1.bf16.msra.mxu0 0
    %895 = vmatprep.subr.bf16.mxu0 0
    %896 = vmatpush1.bf16.msra.mxu0 0
    %897 = vmatprep.subr.bf16.mxu0 0
    %898 = vmatpush1.bf16.msra.mxu0 0
    %899 = vmatprep.subr.bf16.mxu0 0
    %900 = vmatpush1.bf16.msra.mxu0 0
    %901 = vmatprep.subr.bf16.mxu0 0
    %902 = vmatpush1.bf16.msra.mxu0 0
    %903 = vmatprep.subr.bf16.mxu0 0
    %904 = vmatpush1.bf16.msra.mxu0 0
    %905 = vmatprep.subr.bf16.mxu0 0
    %906 = vmatpush1.bf16.msra.mxu0 0
    %907 = vmatprep.subr.bf16.mxu0 0
    %908 = vmatpush1.bf16.msra.mxu0 0
    %909 = vmatprep.mubr.bf16.mxu0 0
    %910 = vmatmul.mubr.bf16.gmra.mrb[0].mxu0 %v875
    %v911 = vpop.f32.mrb[0].mxu0
    %v912 = vadd.f32 0.0, %v911
    %v913 = vpop.f32.mrb[0].mxu0
    %v914 = vpop.f32.mrb[0].mxu0
    %v915 = vadd.f32 0.0, %v914
    %v916 = vpop.f32.mrb[0].mxu0
    %917 = vdwg.mxu0
    %v918 = vadd.f32 %v870, %v912
    %v919 = vadd.f32 %v871, %v915
    %v920 = vxor.u32 %v918, 2147483648
    %v921 = vxor.u32 %v919, 2147483648
    %v922 = vmul.f32 %v920, 1.442695
    %v923 = vpow.pop %v922
    %v924 = vmul.f32 %v921, 1.442695
    %v925 = vpow.pop %v924
    %v926 = vadd.f32 %v923, 1.0
    %v927 = vadd.f32 %v925, 1.0
    %v928 = vrcp.pop %v926
    %v929 = vmul.f32 1.0, %v928
    %v930 = vrcp.pop %v927
    %v931 = vmul.f32 1.0, %v930
    %v932 = vtanh.pop %v918
    %v933 = vtanh.pop %v919
    %v934 = vmul.f32 %v929, %v726
    %v935 = vmul.f32 %v931, %v727
    %938 = vrot.lane.b32.xlu0 %v932, 64
    %v939 = vpop.permute.xlu0 %938
    %940 = vrot.lane.b32.xlu0 %v933, 64
    %v941 = vpop.permute.xlu0 %940
    %v944 = vmul.f32 %v929, %v939
    %v945 = vmul.f32 %v931, %v941
    %948 = vrot.lane.b32.xlu0 %v944, 32
    %v949 = vpop.permute.xlu0 %948
    %950 = vrot.lane.b32.xlu0 %v945, 32
    %v951 = vpop.permute.xlu0 %950
    %v954 = vadd.f32 %v934, %v949
    %v955 = vadd.f32 %v935, %v951
    %v956 = vtanh.pop %v954
    %v957 = vtanh.pop %v955
    %960 = vrot.lane.b32.xlu0 %v956, 64
    %v961 = vpop.permute.xlu0 %960
    %962 = vrot.lane.b32.xlu0 %v957, 64
    %v963 = vpop.permute.xlu0 %962
    %v966 = vmul.f32 %v929, %v961
    %v967 = vmul.f32 %v931, %v963
    %v968 = vpack.c.bf16 %v967, %v966
    %v970 = vunpack.c.l.b16 %v968
    %v971 = vunpack.c.h.b16 %v968
    %v972 = vpack.c.b16 %v970, %v970
    %v973 = vpack.c.b16 %v971, %v971
    %974 = vrot.lane.b32.xlu0 %v972, 32
    %v975 = vpop.permute.xlu0 %974
    %976 = vrot.lane.b32.xlu0 %v973, 32
    %v977 = vpop.permute.xlu0 %976
    %s980 = scalar_lea.vmem %s228, 40
    %981 = vst.msk [vmem:[%s980] sm:$0xf] %vm391, %v975
    %982 = vst.msk [vmem:[%s980 + $0x4] sm:$0xf] %vm391, %v977
    %s983 = scalar_lea.vmem [#allocation6], 48
    %v984 = vld [vmem:[%s983] sm:$0xff]
    %v985 = vld [vmem:[%s983 + $0x8] sm:$0xff]
    %986 = vrot.lane.b32.xlu0 %v854, 32
    %v987 = vpop.permute.xlu0 %986
    %v989 = vsel %vm276, %v987, 0
    %991 = vmatprep.subr.bf16.mxu0 0
    %992 = vmatpush1.bf16.msra.mxu0 %v272
    %993 = vmatprep.subr.bf16.mxu0 0
    %994 = vmatpush1.bf16.msra.mxu0 %v273
    %995 = vmatprep.subr.bf16.mxu0 0
    %996 = vmatpush1.bf16.msra.mxu0 0
    %997 = vmatprep.subr.bf16.mxu0 0
    %998 = vmatpush1.bf16.msra.mxu0 0
    %999 = vmatprep.subr.bf16.mxu0 0
    %1000 = vmatpush1.bf16.msra.mxu0 0
    %1001 = vmatprep.subr.bf16.mxu0 0
    %1002 = vmatpush1.bf16.msra.mxu0 0
    %1003 = vmatprep.subr.bf16.mxu0 0
    %1004 = vmatpush1.bf16.msra.mxu0 0
    %1005 = vmatprep.subr.bf16.mxu0 0
    %1006 = vmatpush1.bf16.msra.mxu0 0
    %1007 = vmatprep.subr.bf16.mxu0 0
    %1008 = vmatpush1.bf16.msra.mxu0 0
    %1009 = vmatprep.subr.bf16.mxu0 0
    %1010 = vmatpush1.bf16.msra.mxu0 0
    %1011 = vmatprep.subr.bf16.mxu0 0
    %1012 = vmatpush1.bf16.msra.mxu0 0
    %1013 = vmatprep.subr.bf16.mxu0 0
    %1014 = vmatpush1.bf16.msra.mxu0 0
    %1015 = vmatprep.subr.bf16.mxu0 0
    %1016 = vmatpush1.bf16.msra.mxu0 0
    %1017 = vmatprep.subr.bf16.mxu0 0
    %1018 = vmatpush1.bf16.msra.mxu0 0
    %1019 = vmatprep.subr.bf16.mxu0 0
    %1020 = vmatpush1.bf16.msra.mxu0 0
    %1021 = vmatprep.subr.bf16.mxu0 0
    %1022 = vmatpush1.bf16.msra.mxu0 0
    %1023 = vmatprep.mubr.bf16.mxu0 0
    %1024 = vmatmul.mubr.bf16.gmra.mrb[0].mxu0 %v989
    %v1025 = vpop.f32.mrb[0].mxu0
    %v1026 = vadd.f32 0.0, %v1025
    %v1027 = vpop.f32.mrb[0].mxu0
    %v1028 = vpop.f32.mrb[0].mxu0
    %v1029 = vadd.f32 0.0, %v1028
    %v1030 = vpop.f32.mrb[0].mxu0
    %1031 = vdwg.mxu0
    %v1032 = vadd.f32 %v984, %v1026
    %v1033 = vadd.f32 %v985, %v1029
    %v1034 = vxor.u32 %v1032, 2147483648
    %v1035 = vxor.u32 %v1033, 2147483648
    %v1036 = vmul.f32 %v1034, 1.442695
    %v1037 = vpow.pop %v1036
    %v1038 = vmul.f32 %v1035, 1.442695
    %v1039 = vpow.pop %v1038
    %v1040 = vadd.f32 %v1037, 1.0
    %v1041 = vadd.f32 %v1039, 1.0
    %v1042 = vrcp.pop %v1040
    %v1043 = vmul.f32 1.0, %v1042
    %v1044 = vrcp.pop %v1041
    %v1045 = vmul.f32 1.0, %v1044
    %v1046 = vtanh.pop %v1032
    %v1047 = vtanh.pop %v1033
    %v1048 = vmul.f32 %v1043, %v840
    %v1049 = vmul.f32 %v1045, %v841
    %1052 = vrot.lane.b32.xlu0 %v1046, 64
    %v1053 = vpop.permute.xlu0 %1052
    %1054 = vrot.lane.b32.xlu0 %v1047, 64
    %v1055 = vpop.permute.xlu0 %1054
    %v1058 = vmul.f32 %v1043, %v1053
    %v1059 = vmul.f32 %v1045, %v1055
    %1062 = vrot.lane.b32.xlu0 %v1058, 32
    %v1063 = vpop.permute.xlu0 %1062
    %1064 = vrot.lane.b32.xlu0 %v1059, 32
    %v1065 = vpop.permute.xlu0 %1064
    %v1068 = vadd.f32 %v1048, %v1063
    %v1069 = vadd.f32 %v1049, %v1065
    %v1070 = vtanh.pop %v1068
    %v1071 = vtanh.pop %v1069
    %1074 = vrot.lane.b32.xlu0 %v1070, 64
    %v1075 = vpop.permute.xlu0 %1074
    %1076 = vrot.lane.b32.xlu0 %v1071, 64
    %v1077 = vpop.permute.xlu0 %1076
    %v1080 = vmul.f32 %v1043, %v1075
    %v1081 = vmul.f32 %v1045, %v1077
    %v1082 = vpack.c.bf16 %v1081, %v1080
    %v1084 = vunpack.c.l.b16 %v1082
    %v1085 = vunpack.c.h.b16 %v1082
    %v1086 = vpack.c.b16 %v1084, %v1084
    %v1087 = vpack.c.b16 %v1085, %v1085
    %1088 = vrot.lane.b32.xlu0 %v1086, 32
    %v1089 = vpop.permute.xlu0 %1088
    %1090 = vrot.lane.b32.xlu0 %v1087, 32
    %v1091 = vpop.permute.xlu0 %1090
    %s1094 = scalar_lea.vmem %s4, 24
    %1095 = vst.msk [vmem:[%s1094] sm:$0xf] %vm391, %v1089
    %1096 = vst.msk [vmem:[%s1094 + $0x4] sm:$0xf] %vm391, %v1091
    %s1097 = scalar_lea.vmem [#allocation7], 64
    %v1098 = vld [vmem:[%s1097] sm:$0xff]
    %v1099 = vld [vmem:[%s1097 + $0x8] sm:$0xff]
    %1100 = vrot.lane.b32.xlu0 %v968, 32
    %v1101 = vpop.permute.xlu0 %1100
    %v1103 = vsel %vm276, %v1101, 0
    %1105 = vmatprep.subr.bf16.mxu0 0
    %1106 = vmatpush1.bf16.msra.mxu0 %v406
    %1107 = vmatprep.subr.bf16.mxu0 0
    %1108 = vmatpush1.bf16.msra.mxu0 %v407
    %1109 = vmatprep.subr.bf16.mxu0 0
    %1110 = vmatpush1.bf16.msra.mxu0 0
    %1111 = vmatprep.subr.bf16.mxu0 0
    %1112 = vmatpush1.bf16.msra.mxu0 0
    %1113 = vmatprep.subr.bf16.mxu0 0
    %1114 = vmatpush1.bf16.msra.mxu0 0
    %1115 = vmatprep.subr.bf16.mxu0 0
    %1116 = vmatpush1.bf16.msra.mxu0 0
    %1117 = vmatprep.subr.bf16.mxu0 0
    %1118 = vmatpush1.bf16.msra.mxu0 0
    %1119 = vmatprep.subr.bf16.mxu0 0
    %1120 = vmatpush1.bf16.msra.mxu0 0
    %1121 = vmatprep.subr.bf16.mxu0 0
    %1122 = vmatpush1.bf16.msra.mxu0 0
    %1123 = vmatprep.subr.bf16.mxu0 0
    %1124 = vmatpush1.bf16.msra.mxu0 0
    %1125 = vmatprep.subr.bf16.mxu0 0
    %1126 = vmatpush1.bf16.msra.mxu0 0
    %1127 = vmatprep.subr.bf16.mxu0 0
    %1128 = vmatpush1.bf16.msra.mxu0 0
    %1129 = vmatprep.subr.bf16.mxu0 0
    %1130 = vmatpush1.bf16.msra.mxu0 0
    %1131 = vmatprep.subr.bf16.mxu0 0
    %1132 = vmatpush1.bf16.msra.mxu0 0
    %1133 = vmatprep.subr.bf16.mxu0 0
    %1134 = vmatpush1.bf16.msra.mxu0 0
    %1135 = vmatprep.subr.bf16.mxu0 0
    %1136 = vmatpush1.bf16.msra.mxu0 0
    %1137 = vmatprep.mubr.bf16.mxu0 0
    %1138 = vmatmul.mubr.bf16.gmra.mrb[0].mxu0 %v1103
    %v1139 = vpop.f32.mrb[0].mxu0
    %v1140 = vadd.f32 0.0, %v1139
    %v1141 = vpop.f32.mrb[0].mxu0
    %v1142 = vpop.f32.mrb[0].mxu0
    %v1143 = vadd.f32 0.0, %v1142
    %v1144 = vpop.f32.mrb[0].mxu0
    %1145 = vdwg.mxu0
    %v1146 = vadd.f32 %v1098, %v1140
    %v1147 = vadd.f32 %v1099, %v1143
    %v1148 = vxor.u32 %v1146, 2147483648
    %v1149 = vxor.u32 %v1147, 2147483648
    %v1150 = vmul.f32 %v1148, 1.442695
    %v1151 = vpow.pop %v1150
    %v1152 = vmul.f32 %v1149, 1.442695
    %v1153 = vpow.pop %v1152
    %v1154 = vadd.f32 %v1151, 1.0
    %v1155 = vadd.f32 %v1153, 1.0
    %v1156 = vrcp.pop %v1154
    %v1157 = vmul.f32 1.0, %v1156
    %v1158 = vrcp.pop %v1155
    %v1159 = vmul.f32 1.0, %v1158
    %v1160 = vtanh.pop %v1146
    %v1161 = vtanh.pop %v1147
    %v1162 = vmul.f32 %v1157, %v954
    %v1163 = vmul.f32 %v1159, %v955
    %1166 = vrot.lane.b32.xlu0 %v1160, 64
    %v1167 = vpop.permute.xlu0 %1166
    %1168 = vrot.lane.b32.xlu0 %v1161, 64
    %v1169 = vpop.permute.xlu0 %1168
    %v1172 = vmul.f32 %v1157, %v1167
    %v1173 = vmul.f32 %v1159, %v1169
    %1176 = vrot.lane.b32.xlu0 %v1172, 32
    %v1177 = vpop.permute.xlu0 %1176
    %1178 = vrot.lane.b32.xlu0 %v1173, 32
    %v1179 = vpop.permute.xlu0 %1178
    %v1182 = vadd.f32 %v1162, %v1177
    %v1183 = vadd.f32 %v1163, %v1179
    %v1184 = vtanh.pop %v1182
    %v1185 = vtanh.pop %v1183
    %1188 = vrot.lane.b32.xlu0 %v1184, 64
    %v1189 = vpop.permute.xlu0 %1188
    %1190 = vrot.lane.b32.xlu0 %v1185, 64
    %v1191 = vpop.permute.xlu0 %1190
    %v1194 = vmul.f32 %v1157, %v1189
    %v1195 = vmul.f32 %v1159, %v1191
    %v1196 = vpack.c.bf16 %v1195, %v1194
    %v1198 = vunpack.c.l.b16 %v1196
    %v1199 = vunpack.c.h.b16 %v1196
    %v1200 = vpack.c.b16 %v1198, %v1198
    %v1201 = vpack.c.b16 %v1199, %v1199
    %1202 = vrot.lane.b32.xlu0 %v1200, 32
    %v1203 = vpop.permute.xlu0 %1202
    %1204 = vrot.lane.b32.xlu0 %v1201, 32
    %v1205 = vpop.permute.xlu0 %1204
    %s1208 = scalar_lea.vmem %s228, 32
    %1209 = vst.msk [vmem:[%s1208] sm:$0xf] %vm391, %v1203
    %1210 = vst.msk [vmem:[%s1208 + $0x4] sm:$0xf] %vm391, %v1205
    %s1211 = scalar_lea.vmem [#allocation6], 64
    %v1212 = vld [vmem:[%s1211] sm:$0xff]
    %v1213 = vld [vmem:[%s1211 + $0x8] sm:$0xff]
    %1214 = vrot.lane.b32.xlu0 %v1082, 32
    %v1215 = vpop.permute.xlu0 %1214
    %v1217 = vsel %vm276, %v1215, 0
    %1219 = vmatprep.subr.bf16.mxu0 0
    %1220 = vmatpush1.bf16.msra.mxu0 %v272
    %1221 = vmatprep.subr.bf16.mxu0 0
    %1222 = vmatpush1.bf16.msra.mxu0 %v273
    %1223 = vmatprep.subr.bf16.mxu0 0
    %1224 = vmatpush1.bf16.msra.mxu0 0
    %1225 = vmatprep.subr.bf16.mxu0 0
    %1226 = vmatpush1.bf16.msra.mxu0 0
    %1227 = vmatprep.subr.bf16.mxu0 0
    %1228 = vmatpush1.bf16.msra.mxu0 0
    %1229 = vmatprep.subr.bf16.mxu0 0
    %1230 = vmatpush1.bf16.msra.mxu0 0
    %1231 = vmatprep.subr.bf16.mxu0 0
    %1232 = vmatpush1.bf16.msra.mxu0 0
    %1233 = vmatprep.subr.bf16.mxu0 0
    %1234 = vmatpush1.bf16.msra.mxu0 0
    %1235 = vmatprep.subr.bf16.mxu0 0
    %1236 = vmatpush1.bf16.msra.mxu0 0
    %1237 = vmatprep.subr.bf16.mxu0 0
    %1238 = vmatpush1.bf16.msra.mxu0 0
    %1239 = vmatprep.subr.bf16.mxu0 0
    %1240 = vmatpush1.bf16.msra.mxu0 0
    %1241 = vmatprep.subr.bf16.mxu0 0
    %1242 = vmatpush1.bf16.msra.mxu0 0
    %1243 = vmatprep.subr.bf16.mxu0 0
    %1244 = vmatpush1.bf16.msra.mxu0 0
    %1245 = vmatprep.subr.bf16.mxu0 0
    %1246 = vmatpush1.bf16.msra.mxu0 0
    %1247 = vmatprep.subr.bf16.mxu0 0
    %1248 = vmatpush1.bf16.msra.mxu0 0
    %1249 = vmatprep.subr.bf16.mxu0 0
    %1250 = vmatpush1.bf16.msra.mxu0 0
    %1251 = vmatprep.mubr.bf16.mxu0 0
    %1252 = vmatmul.mubr.bf16.gmra.mrb[0].mxu0 %v1217
    %v1253 = vpop.f32.mrb[0].mxu0
    %v1254 = vadd.f32 0.0, %v1253
    %v1255 = vpop.f32.mrb[0].mxu0
    %v1256 = vpop.f32.mrb[0].mxu0
    %v1257 = vadd.f32 0.0, %v1256
    %v1258 = vpop.f32.mrb[0].mxu0
    %1259 = vdwg.mxu0
    %v1260 = vadd.f32 %v1212, %v1254
    %v1261 = vadd.f32 %v1213, %v1257
    %v1262 = vxor.u32 %v1260, 2147483648
    %v1263 = vxor.u32 %v1261, 2147483648
    %v1264 = vmul.f32 %v1262, 1.442695
    %v1265 = vpow.pop %v1264
    %v1266 = vmul.f32 %v1263, 1.442695
    %v1267 = vpow.pop %v1266
    %v1268 = vadd.f32 %v1265, 1.0
    %v1269 = vadd.f32 %v1267, 1.0
    %v1270 = vrcp.pop %v1268
    %v1271 = vmul.f32 1.0, %v1270
    %v1272 = vrcp.pop %v1269
    %v1273 = vmul.f32 1.0, %v1272
    %v1274 = vtanh.pop %v1260
    %v1275 = vtanh.pop %v1261
    %v1276 = vmul.f32 %v1271, %v1068
    %v1277 = vmul.f32 %v1273, %v1069
    %1280 = vrot.lane.b32.xlu0 %v1274, 64
    %v1281 = vpop.permute.xlu0 %1280
    %1282 = vrot.lane.b32.xlu0 %v1275, 64
    %v1283 = vpop.permute.xlu0 %1282
    %v1286 = vmul.f32 %v1271, %v1281
    %v1287 = vmul.f32 %v1273, %v1283
    %1290 = vrot.lane.b32.xlu0 %v1286, 32
    %v1291 = vpop.permute.xlu0 %1290
    %1292 = vrot.lane.b32.xlu0 %v1287, 32
    %v1293 = vpop.permute.xlu0 %1292
    %v1296 = vadd.f32 %v1276, %v1291
    %v1297 = vadd.f32 %v1277, %v1293
    %v1298 = vtanh.pop %v1296
    %v1299 = vtanh.pop %v1297
    %1302 = vrot.lane.b32.xlu0 %v1298, 64
    %v1303 = vpop.permute.xlu0 %1302
    %1304 = vrot.lane.b32.xlu0 %v1299, 64
    %v1305 = vpop.permute.xlu0 %1304
    %v1308 = vmul.f32 %v1271, %v1303
    %v1309 = vmul.f32 %v1273, %v1305
    %v1310 = vpack.c.bf16 %v1309, %v1308
    %v1312 = vunpack.c.l.b16 %v1310
    %v1313 = vunpack.c.h.b16 %v1310
    %v1314 = vpack.c.b16 %v1312, %v1312
    %v1315 = vpack.c.b16 %v1313, %v1313
    %1316 = vrot.lane.b32.xlu0 %v1314, 32
    %v1317 = vpop.permute.xlu0 %1316
    %1318 = vrot.lane.b32.xlu0 %v1315, 32
    %v1319 = vpop.permute.xlu0 %1318
    %s1322 = scalar_lea.vmem %s4, 32
    %1323 = vst.msk [vmem:[%s1322] sm:$0xf] %vm391, %v1317
    %1324 = vst.msk [vmem:[%s1322 + $0x4] sm:$0xf] %vm391, %v1319
    %s1325 = scalar_lea.vmem [#allocation7], 48
    %v1326 = vld [vmem:[%s1325] sm:$0xff]
    %v1327 = vld [vmem:[%s1325 + $0x8] sm:$0xff]
    %1328 = vrot.lane.b32.xlu0 %v1196, 32
    %v1329 = vpop.permute.xlu0 %1328
    %v1331 = vsel %vm276, %v1329, 0
    %1333 = vmatprep.subr.bf16.mxu0 0
    %1334 = vmatpush1.bf16.msra.mxu0 %v406
    %1335 = vmatprep.subr.bf16.mxu0 0
    %1336 = vmatpush1.bf16.msra.mxu0 %v407
    %1337 = vmatprep.subr.bf16.mxu0 0
    %1338 = vmatpush1.bf16.msra.mxu0 0
    %1339 = vmatprep.subr.bf16.mxu0 0
    %1340 = vmatpush1.bf16.msra.mxu0 0
    %1341 = vmatprep.subr.bf16.mxu0 0
    %1342 = vmatpush1.bf16.msra.mxu0 0
    %1343 = vmatprep.subr.bf16.mxu0 0
    %1344 = vmatpush1.bf16.msra.mxu0 0
    %1345 = vmatprep.subr.bf16.mxu0 0
    %1346 = vmatpush1.bf16.msra.mxu0 0
    %1347 = vmatprep.subr.bf16.mxu0 0
    %1348 = vmatpush1.bf16.msra.mxu0 0
    %1349 = vmatprep.subr.bf16.mxu0 0
    %1350 = vmatpush1.bf16.msra.mxu0 0
    %1351 = vmatprep.subr.bf16.mxu0 0
    %1352 = vmatpush1.bf16.msra.mxu0 0
    %1353 = vmatprep.subr.bf16.mxu0 0
    %1354 = vmatpush1.bf16.msra.mxu0 0
    %1355 = vmatprep.subr.bf16.mxu0 0
    %1356 = vmatpush1.bf16.msra.mxu0 0
    %1357 = vmatprep.subr.bf16.mxu0 0
    %1358 = vmatpush1.bf16.msra.mxu0 0
    %1359 = vmatprep.subr.bf16.mxu0 0
    %1360 = vmatpush1.bf16.msra.mxu0 0
    %1361 = vmatprep.subr.bf16.mxu0 0
    %1362 = vmatpush1.bf16.msra.mxu0 0
    %1363 = vmatprep.subr.bf16.mxu0 0
    %1364 = vmatpush1.bf16.msra.mxu0 0
    %1365 = vmatprep.mubr.bf16.mxu0 0
    %1366 = vmatmul.mubr.bf16.gmra.mrb[0].mxu0 %v1331
    %v1367 = vpop.f32.mrb[0].mxu0
    %v1368 = vadd.f32 0.0, %v1367
    %v1369 = vpop.f32.mrb[0].mxu0
    %v1370 = vpop.f32.mrb[0].mxu0
    %v1371 = vadd.f32 0.0, %v1370
    %v1372 = vpop.f32.mrb[0].mxu0
    %1373 = vdwg.mxu0
    %v1374 = vadd.f32 %v1326, %v1368
    %v1375 = vadd.f32 %v1327, %v1371
    %v1376 = vxor.u32 %v1374, 2147483648
    %v1377 = vxor.u32 %v1375, 2147483648
    %v1378 = vmul.f32 %v1376, 1.442695
    %v1379 = vpow.pop %v1378
    %v1380 = vmul.f32 %v1377, 1.442695
    %v1381 = vpow.pop %v1380
    %v1382 = vadd.f32 %v1379, 1.0
    %v1383 = vadd.f32 %v1381, 1.0
    %v1384 = vrcp.pop %v1382
    %v1385 = vmul.f32 1.0, %v1384
    %v1386 = vrcp.pop %v1383
    %v1387 = vmul.f32 1.0, %v1386
    %v1388 = vtanh.pop %v1374
    %v1389 = vtanh.pop %v1375
    %v1390 = vmul.f32 %v1385, %v1182
    %v1391 = vmul.f32 %v1387, %v1183
    %1394 = vrot.lane.b32.xlu0 %v1388, 64
    %v1395 = vpop.permute.xlu0 %1394
    %1396 = vrot.lane.b32.xlu0 %v1389, 64
    %v1397 = vpop.permute.xlu0 %1396
    %v1400 = vmul.f32 %v1385, %v1395
    %v1401 = vmul.f32 %v1387, %v1397
    %1404 = vrot.lane.b32.xlu0 %v1400, 32
    %v1405 = vpop.permute.xlu0 %1404
    %1406 = vrot.lane.b32.xlu0 %v1401, 32
    %v1407 = vpop.permute.xlu0 %1406
    %v1410 = vadd.f32 %v1390, %v1405
    %v1411 = vadd.f32 %v1391, %v1407
    %v1412 = vtanh.pop %v1410
    %v1413 = vtanh.pop %v1411
    %1416 = vrot.lane.b32.xlu0 %v1412, 64
    %v1417 = vpop.permute.xlu0 %1416
    %1418 = vrot.lane.b32.xlu0 %v1413, 64
    %v1419 = vpop.permute.xlu0 %1418
    %v1422 = vmul.f32 %v1385, %v1417
    %v1423 = vmul.f32 %v1387, %v1419
    %v1424 = vpack.c.bf16 %v1423, %v1422
    %v1426 = vunpack.c.l.b16 %v1424
    %v1427 = vunpack.c.h.b16 %v1424
    %v1428 = vpack.c.b16 %v1426, %v1426
    %v1429 = vpack.c.b16 %v1427, %v1427
    %1430 = vrot.lane.b32.xlu0 %v1428, 32
    %v1431 = vpop.permute.xlu0 %1430
    %1432 = vrot.lane.b32.xlu0 %v1429, 32
    %v1433 = vpop.permute.xlu0 %1432
    %s1436 = scalar_lea.vmem %s228, 24
    %1437 = vst.msk [vmem:[%s1436] sm:$0xf] %vm391, %v1431
    %1438 = vst.msk [vmem:[%s1436 + $0x4] sm:$0xf] %vm391, %v1433
    %s1439 = scalar_lea.vmem [#allocation6], 80
    %v1440 = vld [vmem:[%s1439] sm:$0xff]
    %v1441 = vld [vmem:[%s1439 + $0x8] sm:$0xff]
    %1442 = vrot.lane.b32.xlu0 %v1310, 32
    %v1443 = vpop.permute.xlu0 %1442
    %v1445 = vsel %vm276, %v1443, 0
    %1447 = vmatprep.subr.bf16.mxu0 0
    %1448 = vmatpush1.bf16.msra.mxu0 %v272
    %1449 = vmatprep.subr.bf16.mxu0 0
    %1450 = vmatpush1.bf16.msra.mxu0 %v273
    %1451 = vmatprep.subr.bf16.mxu0 0
    %1452 = vmatpush1.bf16.msra.mxu0 0
    %1453 = vmatprep.subr.bf16.mxu0 0
    %1454 = vmatpush1.bf16.msra.mxu0 0
    %1455 = vmatprep.subr.bf16.mxu0 0
    %1456 = vmatpush1.bf16.msra.mxu0 0
    %1457 = vmatprep.subr.bf16.mxu0 0
    %1458 = vmatpush1.bf16.msra.mxu0 0
    %1459 = vmatprep.subr.bf16.mxu0 0
    %1460 = vmatpush1.bf16.msra.mxu0 0
    %1461 = vmatprep.subr.bf16.mxu0 0
    %1462 = vmatpush1.bf16.msra.mxu0 0
    %1463 = vmatprep.subr.bf16.mxu0 0
    %1464 = vmatpush1.bf16.msra.mxu0 0
    %1465 = vmatprep.subr.bf16.mxu0 0
    %1466 = vmatpush1.bf16.msra.mxu0 0
    %1467 = vmatprep.subr.bf16.mxu0 0
    %1468 = vmatpush1.bf16.msra.mxu0 0
    %1469 = vmatprep.subr.bf16.mxu0 0
    %1470 = vmatpush1.bf16.msra.mxu0 0
    %1471 = vmatprep.subr.bf16.mxu0 0
    %1472 = vmatpush1.bf16.msra.mxu0 0
    %1473 = vmatprep.subr.bf16.mxu0 0
    %1474 = vmatpush1.bf16.msra.mxu0 0
    %1475 = vmatprep.subr.bf16.mxu0 0
    %1476 = vmatpush1.bf16.msra.mxu0 0
    %1477 = vmatprep.subr.bf16.mxu0 0
    %1478 = vmatpush1.bf16.msra.mxu0 0
    %1479 = vmatprep.mubr.bf16.mxu0 0
    %1480 = vmatmul.mubr.bf16.gmra.mrb[0].mxu0 %v1445
    %v1481 = vpop.f32.mrb[0].mxu0
    %v1482 = vadd.f32 0.0, %v1481
    %v1483 = vpop.f32.mrb[0].mxu0
    %v1484 = vpop.f32.mrb[0].mxu0
    %v1485 = vadd.f32 0.0, %v1484
    %v1486 = vpop.f32.mrb[0].mxu0
    %1487 = vdwg.mxu0
    %v1488 = vadd.f32 %v1440, %v1482
    %v1489 = vadd.f32 %v1441, %v1485
    %v1490 = vxor.u32 %v1488, 2147483648
    %v1491 = vxor.u32 %v1489, 2147483648
    %v1492 = vmul.f32 %v1490, 1.442695
    %v1493 = vpow.pop %v1492
    %v1494 = vmul.f32 %v1491, 1.442695
    %v1495 = vpow.pop %v1494
    %v1496 = vadd.f32 %v1493, 1.0
    %v1497 = vadd.f32 %v1495, 1.0
    %v1498 = vrcp.pop %v1496
    %v1499 = vmul.f32 1.0, %v1498
    %v1500 = vrcp.pop %v1497
    %v1501 = vmul.f32 1.0, %v1500
    %v1502 = vtanh.pop %v1488
    %v1503 = vtanh.pop %v1489
    %v1504 = vmul.f32 %v1499, %v1296
    %v1505 = vmul.f32 %v1501, %v1297
    %1508 = vrot.lane.b32.xlu0 %v1502, 64
    %v1509 = vpop.permute.xlu0 %1508
    %1510 = vrot.lane.b32.xlu0 %v1503, 64
    %v1511 = vpop.permute.xlu0 %1510
    %v1514 = vmul.f32 %v1499, %v1509
    %v1515 = vmul.f32 %v1501, %v1511
    %1518 = vrot.lane.b32.xlu0 %v1514, 32
    %v1519 = vpop.permute.xlu0 %1518
    %1520 = vrot.lane.b32.xlu0 %v1515, 32
    %v1521 = vpop.permute.xlu0 %1520
    %v1524 = vadd.f32 %v1504, %v1519
    %v1525 = vadd.f32 %v1505, %v1521
    %v1526 = vtanh.pop %v1524
    %v1527 = vtanh.pop %v1525
    %1530 = vrot.lane.b32.xlu0 %v1526, 64
    %v1531 = vpop.permute.xlu0 %1530
    %1532 = vrot.lane.b32.xlu0 %v1527, 64
    %v1533 = vpop.permute.xlu0 %1532
    %v1536 = vmul.f32 %v1499, %v1531
    %v1537 = vmul.f32 %v1501, %v1533
    %v1538 = vpack.c.bf16 %v1537, %v1536
    %v1540 = vunpack.c.l.b16 %v1538
    %v1541 = vunpack.c.h.b16 %v1538
    %v1542 = vpack.c.b16 %v1540, %v1540
    %v1543 = vpack.c.b16 %v1541, %v1541
    %1544 = vrot.lane.b32.xlu0 %v1542, 32
    %v1545 = vpop.permute.xlu0 %1544
    %1546 = vrot.lane.b32.xlu0 %v1543, 32
    %v1547 = vpop.permute.xlu0 %1546
    %s1550 = scalar_lea.vmem %s4, 40
    %1551 = vst.msk [vmem:[%s1550] sm:$0xf] %vm391, %v1545
    %1552 = vst.msk [vmem:[%s1550 + $0x4] sm:$0xf] %vm391, %v1547
    %s1553 = scalar_lea.vmem [#allocation7], 32
    %v1554 = vld [vmem:[%s1553] sm:$0xff]
    %v1555 = vld [vmem:[%s1553 + $0x8] sm:$0xff]
    %1556 = vrot.lane.b32.xlu0 %v1424, 32
    %v1557 = vpop.permute.xlu0 %1556
    %v1559 = vsel %vm276, %v1557, 0
    %1561 = vmatprep.subr.bf16.mxu0 0
    %1562 = vmatpush1.bf16.msra.mxu0 %v406
    %1563 = vmatprep.subr.bf16.mxu0 0
    %1564 = vmatpush1.bf16.msra.mxu0 %v407
    %1565 = vmatprep.subr.bf16.mxu0 0
    %1566 = vmatpush1.bf16.msra.mxu0 0
    %1567 = vmatprep.subr.bf16.mxu0 0
    %1568 = vmatpush1.bf16.msra.mxu0 0
    %1569 = vmatprep.subr.bf16.mxu0 0
    %1570 = vmatpush1.bf16.msra.mxu0 0
    %1571 = vmatprep.subr.bf16.mxu0 0
    %1572 = vmatpush1.bf16.msra.mxu0 0
    %1573 = vmatprep.subr.bf16.mxu0 0
    %1574 = vmatpush1.bf16.msra.mxu0 0
    %1575 = vmatprep.subr.bf16.mxu0 0
    %1576 = vmatpush1.bf16.msra.mxu0 0
    %1577 = vmatprep.subr.bf16.mxu0 0
    %1578 = vmatpush1.bf16.msra.mxu0 0
    %1579 = vmatprep.subr.bf16.mxu0 0
    %1580 = vmatpush1.bf16.msra.mxu0 0
    %1581 = vmatprep.subr.bf16.mxu0 0
    %1582 = vmatpush1.bf16.msra.mxu0 0
    %1583 = vmatprep.subr.bf16.mxu0 0
    %1584 = vmatpush1.bf16.msra.mxu0 0
    %1585 = vmatprep.subr.bf16.mxu0 0
    %1586 = vmatpush1.bf16.msra.mxu0 0
    %1587 = vmatprep.subr.bf16.mxu0 0
    %1588 = vmatpush1.bf16.msra.mxu0 0
    %1589 = vmatprep.subr.bf16.mxu0 0
    %1590 = vmatpush1.bf16.msra.mxu0 0
    %1591 = vmatprep.subr.bf16.mxu0 0
    %1592 = vmatpush1.bf16.msra.mxu0 0
    %1593 = vmatprep.mubr.bf16.mxu0 0
    %1594 = vmatmul.mubr.bf16.gmra.mrb[0].mxu0 %v1559
    %v1595 = vpop.f32.mrb[0].mxu0
    %v1596 = vadd.f32 0.0, %v1595
    %v1597 = vpop.f32.mrb[0].mxu0
    %v1598 = vpop.f32.mrb[0].mxu0
    %v1599 = vadd.f32 0.0, %v1598
    %v1600 = vpop.f32.mrb[0].mxu0
    %1601 = vdwg.mxu0
    %v1602 = vadd.f32 %v1554, %v1596
    %v1603 = vadd.f32 %v1555, %v1599
    %v1604 = vxor.u32 %v1602, 2147483648
    %v1605 = vxor.u32 %v1603, 2147483648
    %v1606 = vmul.f32 %v1604, 1.442695
    %v1607 = vpow.pop %v1606
    %v1608 = vmul.f32 %v1605, 1.442695
    %v1609 = vpow.pop %v1608
    %v1610 = vadd.f32 %v1607, 1.0
    %v1611 = vadd.f32 %v1609, 1.0
    %v1612 = vrcp.pop %v1610
    %v1613 = vmul.f32 1.0, %v1612
    %v1614 = vrcp.pop %v1611
    %v1615 = vmul.f32 1.0, %v1614
    %v1616 = vtanh.pop %v1602
    %v1617 = vtanh.pop %v1603
    %v1618 = vmul.f32 %v1613, %v1410
    %v1619 = vmul.f32 %v1615, %v1411
    %1622 = vrot.lane.b32.xlu0 %v1616, 64
    %v1623 = vpop.permute.xlu0 %1622
    %1624 = vrot.lane.b32.xlu0 %v1617, 64
    %v1625 = vpop.permute.xlu0 %1624
    %v1628 = vmul.f32 %v1613, %v1623
    %v1629 = vmul.f32 %v1615, %v1625
    %1632 = vrot.lane.b32.xlu0 %v1628, 32
    %v1633 = vpop.permute.xlu0 %1632
    %1634 = vrot.lane.b32.xlu0 %v1629, 32
    %v1635 = vpop.permute.xlu0 %1634
    %v1638 = vadd.f32 %v1618, %v1633
    %v1639 = vadd.f32 %v1619, %v1635
    %v1640 = vtanh.pop %v1638
    %v1641 = vtanh.pop %v1639
    %1644 = vrot.lane.b32.xlu0 %v1640, 64
    %v1645 = vpop.permute.xlu0 %1644
    %1646 = vrot.lane.b32.xlu0 %v1641, 64
    %v1647 = vpop.permute.xlu0 %1646
    %v1650 = vmul.f32 %v1613, %v1645
    %v1651 = vmul.f32 %v1615, %v1647
    %v1652 = vpack.c.bf16 %v1651, %v1650
    %v1654 = vunpack.c.l.b16 %v1652
    %v1655 = vunpack.c.h.b16 %v1652
    %v1656 = vpack.c.b16 %v1654, %v1654
    %v1657 = vpack.c.b16 %v1655, %v1655
    %1658 = vrot.lane.b32.xlu0 %v1656, 32
    %v1659 = vpop.permute.xlu0 %1658
    %1660 = vrot.lane.b32.xlu0 %v1657, 32
    %v1661 = vpop.permute.xlu0 %1660
    %s1664 = scalar_lea.vmem %s228, 16
    %1665 = vst.msk [vmem:[%s1664] sm:$0xf] %vm391, %v1659
    %1666 = vst.msk [vmem:[%s1664 + $0x4] sm:$0xf] %vm391, %v1661
    %s1667 = scalar_lea.vmem [#allocation6], 96
    %v1668 = vld [vmem:[%s1667] sm:$0xff]
    %v1669 = vld [vmem:[%s1667 + $0x8] sm:$0xff]
    %1670 = vrot.lane.b32.xlu0 %v1538, 32
    %v1671 = vpop.permute.xlu0 %1670
    %v1673 = vsel %vm276, %v1671, 0
    %1675 = vmatprep.subr.bf16.mxu0 0
    %1676 = vmatpush1.bf16.msra.mxu0 %v272
    %1677 = vmatprep.subr.bf16.mxu0 0
    %1678 = vmatpush1.bf16.msra.mxu0 %v273
    %1679 = vmatprep.subr.bf16.mxu0 0
    %1680 = vmatpush1.bf16.msra.mxu0 0
    %1681 = vmatprep.subr.bf16.mxu0 0
    %1682 = vmatpush1.bf16.msra.mxu0 0
    %1683 = vmatprep.subr.bf16.mxu0 0
    %1684 = vmatpush1.bf16.msra.mxu0 0
    %1685 = vmatprep.subr.bf16.mxu0 0
    %1686 = vmatpush1.bf16.msra.mxu0 0
    %1687 = vmatprep.subr.bf16.mxu0 0
    %1688 = vmatpush1.bf16.msra.mxu0 0
    %1689 = vmatprep.subr.bf16.mxu0 0
    %1690 = vmatpush1.bf16.msra.mxu0 0
    %1691 = vmatprep.subr.bf16.mxu0 0
    %1692 = vmatpush1.bf16.msra.mxu0 0
    %1693 = vmatprep.subr.bf16.mxu0 0
    %1694 = vmatpush1.bf16.msra.mxu0 0
    %1695 = vmatprep.subr.bf16.mxu0 0
    %1696 = vmatpush1.bf16.msra.mxu0 0
    %1697 = vmatprep.subr.bf16.mxu0 0
    %1698 = vmatpush1.bf16.msra.mxu0 0
    %1699 = vmatprep.subr.bf16.mxu0 0
    %1700 = vmatpush1.bf16.msra.mxu0 0
    %1701 = vmatprep.subr.bf16.mxu0 0
    %1702 = vmatpush1.bf16.msra.mxu0 0
    %1703 = vmatprep.subr.bf16.mxu0 0
    %1704 = vmatpush1.bf16.msra.mxu0 0
    %1705 = vmatprep.subr.bf16.mxu0 0
    %1706 = vmatpush1.bf16.msra.mxu0 0
    %1707 = vmatprep.mubr.bf16.mxu0 0
    %1708 = vmatmul.mubr.bf16.gmra.mrb[0].mxu0 %v1673
    %v1709 = vpop.f32.mrb[0].mxu0
    %v1710 = vadd.f32 0.0, %v1709
    %v1711 = vpop.f32.mrb[0].mxu0
    %v1712 = vpop.f32.mrb[0].mxu0
    %v1713 = vadd.f32 0.0, %v1712
    %v1714 = vpop.f32.mrb[0].mxu0
    %1715 = vdwg.mxu0
    %v1716 = vadd.f32 %v1668, %v1710
    %v1717 = vadd.f32 %v1669, %v1713
    %v1718 = vxor.u32 %v1716, 2147483648
    %v1719 = vxor.u32 %v1717, 2147483648
    %v1720 = vmul.f32 %v1718, 1.442695
    %v1721 = vpow.pop %v1720
    %v1722 = vmul.f32 %v1719, 1.442695
    %v1723 = vpow.pop %v1722
    %v1724 = vadd.f32 %v1721, 1.0
    %v1725 = vadd.f32 %v1723, 1.0
    %v1726 = vrcp.pop %v1724
    %v1727 = vmul.f32 1.0, %v1726
    %v1728 = vrcp.pop %v1725
    %v1729 = vmul.f32 1.0, %v1728
    %v1730 = vtanh.pop %v1716
    %v1731 = vtanh.pop %v1717
    %v1732 = vmul.f32 %v1727, %v1524
    %v1733 = vmul.f32 %v1729, %v1525
    %1736 = vrot.lane.b32.xlu0 %v1730, 64
    %v1737 = vpop.permute.xlu0 %1736
    %1738 = vrot.lane.b32.xlu0 %v1731, 64
    %v1739 = vpop.permute.xlu0 %1738
    %v1742 = vmul.f32 %v1727, %v1737
    %v1743 = vmul.f32 %v1729, %v1739
    %1746 = vrot.lane.b32.xlu0 %v1742, 32
    %v1747 = vpop.permute.xlu0 %1746
    %1748 = vrot.lane.b32.xlu0 %v1743, 32
    %v1749 = vpop.permute.xlu0 %1748
    %v1752 = vadd.f32 %v1732, %v1747
    %v1753 = vadd.f32 %v1733, %v1749
    %v1754 = vtanh.pop %v1752
    %v1755 = vtanh.pop %v1753
    %1758 = vrot.lane.b32.xlu0 %v1754, 64
    %v1759 = vpop.permute.xlu0 %1758
    %1760 = vrot.lane.b32.xlu0 %v1755, 64
    %v1761 = vpop.permute.xlu0 %1760
    %v1764 = vmul.f32 %v1727, %v1759
    %v1765 = vmul.f32 %v1729, %v1761
    %v1766 = vpack.c.bf16 %v1765, %v1764
    %v1768 = vunpack.c.l.b16 %v1766
    %v1769 = vunpack.c.h.b16 %v1766
    %v1770 = vpack.c.b16 %v1768, %v1768
    %v1771 = vpack.c.b16 %v1769, %v1769
    %1772 = vrot.lane.b32.xlu0 %v1770, 32
    %v1773 = vpop.permute.xlu0 %1772
    %1774 = vrot.lane.b32.xlu0 %v1771, 32
    %v1775 = vpop.permute.xlu0 %1774
    %s1778 = scalar_lea.vmem %s4, 48
    %1779 = vst.msk [vmem:[%s1778] sm:$0xf] %vm391, %v1773
    %1780 = vst.msk [vmem:[%s1778 + $0x4] sm:$0xf] %vm391, %v1775
    %s1781 = scalar_lea.vmem [#allocation7], 16
    %v1782 = vld [vmem:[%s1781] sm:$0xff]
    %v1783 = vld [vmem:[%s1781 + $0x8] sm:$0xff]
    %1784 = vrot.lane.b32.xlu0 %v1652, 32
    %v1785 = vpop.permute.xlu0 %1784
    %v1787 = vsel %vm276, %v1785, 0
    %1789 = vmatprep.subr.bf16.mxu0 0
    %1790 = vmatpush1.bf16.msra.mxu0 %v406
    %1791 = vmatprep.subr.bf16.mxu0 0
    %1792 = vmatpush1.bf16.msra.mxu0 %v407
    %1793 = vmatprep.subr.bf16.mxu0 0
    %1794 = vmatpush1.bf16.msra.mxu0 0
    %1795 = vmatprep.subr.bf16.mxu0 0
    %1796 = vmatpush1.bf16.msra.mxu0 0
    %1797 = vmatprep.subr.bf16.mxu0 0
    %1798 = vmatpush1.bf16.msra.mxu0 0
    %1799 = vmatprep.subr.bf16.mxu0 0
    %1800 = vmatpush1.bf16.msra.mxu0 0
    %1801 = vmatprep.subr.bf16.mxu0 0
    %1802 = vmatpush1.bf16.msra.mxu0 0
    %1803 = vmatprep.subr.bf16.mxu0 0
    %1804 = vmatpush1.bf16.msra.mxu0 0
    %1805 = vmatprep.subr.bf16.mxu0 0
    %1806 = vmatpush1.bf16.msra.mxu0 0
    %1807 = vmatprep.subr.bf16.mxu0 0
    %1808 = vmatpush1.bf16.msra.mxu0 0
    %1809 = vmatprep.subr.bf16.mxu0 0
    %1810 = vmatpush1.bf16.msra.mxu0 0
    %1811 = vmatprep.subr.bf16.mxu0 0
    %1812 = vmatpush1.bf16.msra.mxu0 0
    %1813 = vmatprep.subr.bf16.mxu0 0
    %1814 = vmatpush1.bf16.msra.mxu0 0
    %1815 = vmatprep.subr.bf16.mxu0 0
    %1816 = vmatpush1.bf16.msra.mxu0 0
    %1817 = vmatprep.subr.bf16.mxu0 0
    %1818 = vmatpush1.bf16.msra.mxu0 0
    %1819 = vmatprep.subr.bf16.mxu0 0
    %1820 = vmatpush1.bf16.msra.mxu0 0
    %1821 = vmatprep.mubr.bf16.mxu0 0
    %1822 = vmatmul.mubr.bf16.gmra.mrb[0].mxu0 %v1787
    %v1823 = vpop.f32.mrb[0].mxu0
    %v1824 = vadd.f32 0.0, %v1823
    %v1825 = vpop.f32.mrb[0].mxu0
    %v1826 = vpop.f32.mrb[0].mxu0
    %v1827 = vadd.f32 0.0, %v1826
    %v1828 = vpop.f32.mrb[0].mxu0
    %1829 = vdwg.mxu0
    %v1830 = vadd.f32 %v1782, %v1824
    %v1831 = vadd.f32 %v1783, %v1827
    %v1832 = vxor.u32 %v1830, 2147483648
    %v1833 = vxor.u32 %v1831, 2147483648
    %v1834 = vmul.f32 %v1832, 1.442695
    %v1835 = vpow.pop %v1834
    %v1836 = vmul.f32 %v1833, 1.442695
    %v1837 = vpow.pop %v1836
    %v1838 = vadd.f32 %v1835, 1.0
    %v1839 = vadd.f32 %v1837, 1.0
    %v1840 = vrcp.pop %v1838
    %v1841 = vmul.f32 1.0, %v1840
    %v1842 = vrcp.pop %v1839
    %v1843 = vmul.f32 1.0, %v1842
    %v1844 = vtanh.pop %v1830
    %v1845 = vtanh.pop %v1831
    %v1846 = vmul.f32 %v1841, %v1638
    %v1847 = vmul.f32 %v1843, %v1639
    %1850 = vrot.lane.b32.xlu0 %v1844, 64
    %v1851 = vpop.permute.xlu0 %1850
    %1852 = vrot.lane.b32.xlu0 %v1845, 64
    %v1853 = vpop.permute.xlu0 %1852
    %v1856 = vmul.f32 %v1841, %v1851
    %v1857 = vmul.f32 %v1843, %v1853
    %1860 = vrot.lane.b32.xlu0 %v1856, 32
    %v1861 = vpop.permute.xlu0 %1860
    %1862 = vrot.lane.b32.xlu0 %v1857, 32
    %v1863 = vpop.permute.xlu0 %1862
    %v1866 = vadd.f32 %v1846, %v1861
    %v1867 = vadd.f32 %v1847, %v1863
    %v1868 = vtanh.pop %v1866
    %v1869 = vtanh.pop %v1867
    %1872 = vrot.lane.b32.xlu0 %v1868, 64
    %v1873 = vpop.permute.xlu0 %1872
    %1874 = vrot.lane.b32.xlu0 %v1869, 64
    %v1875 = vpop.permute.xlu0 %1874
    %v1878 = vmul.f32 %v1841, %v1873
    %v1879 = vmul.f32 %v1843, %v1875
    %v1880 = vpack.c.bf16 %v1879, %v1878
    %v1882 = vunpack.c.l.b16 %v1880
    %v1883 = vunpack.c.h.b16 %v1880
    %v1884 = vpack.c.b16 %v1882, %v1882
    %v1885 = vpack.c.b16 %v1883, %v1883
    %1886 = vrot.lane.b32.xlu0 %v1884, 32
    %v1887 = vpop.permute.xlu0 %1886
    %1888 = vrot.lane.b32.xlu0 %v1885, 32
    %v1889 = vpop.permute.xlu0 %1888
    %s1892 = scalar_lea.vmem %s228, 8
    %1893 = vst.msk [vmem:[%s1892] sm:$0xf] %vm391, %v1887
    %1894 = vst.msk [vmem:[%s1892 + $0x4] sm:$0xf] %vm391, %v1889
    %s1895 = scalar_lea.vmem [#allocation6], 112
    %v1896 = vld [vmem:[%s1895] sm:$0xff]
    %v1897 = vld [vmem:[%s1895 + $0x8] sm:$0xff]
    %1898 = vrot.lane.b32.xlu0 %v1766, 32
    %v1899 = vpop.permute.xlu0 %1898
    %v1901 = vsel %vm276, %v1899, 0
    %1903 = vmatprep.subr.bf16.mxu0 0
    %1904 = vmatpush1.bf16.msra.mxu0 %v272
    %1905 = vmatprep.subr.bf16.mxu0 0
    %1906 = vmatpush1.bf16.msra.mxu0 %v273
    %1907 = vmatprep.subr.bf16.mxu0 0
    %1908 = vmatpush1.bf16.msra.mxu0 0
    %1909 = vmatprep.subr.bf16.mxu0 0
    %1910 = vmatpush1.bf16.msra.mxu0 0
    %1911 = vmatprep.subr.bf16.mxu0 0
    %1912 = vmatpush1.bf16.msra.mxu0 0
    %1913 = vmatprep.subr.bf16.mxu0 0
    %1914 = vmatpush1.bf16.msra.mxu0 0
    %1915 = vmatprep.subr.bf16.mxu0 0
    %1916 = vmatpush1.bf16.msra.mxu0 0
    %1917 = vmatprep.subr.bf16.mxu0 0
    %1918 = vmatpush1.bf16.msra.mxu0 0
    %1919 = vmatprep.subr.bf16.mxu0 0
    %1920 = vmatpush1.bf16.msra.mxu0 0
    %1921 = vmatprep.subr.bf16.mxu0 0
    %1922 = vmatpush1.bf16.msra.mxu0 0
    %1923 = vmatprep.subr.bf16.mxu0 0
    %1924 = vmatpush1.bf16.msra.mxu0 0
    %1925 = vmatprep.subr.bf16.mxu0 0
    %1926 = vmatpush1.bf16.msra.mxu0 0
    %1927 = vmatprep.subr.bf16.mxu0 0
    %1928 = vmatpush1.bf16.msra.mxu0 0
    %1929 = vmatprep.subr.bf16.mxu0 0
    %1930 = vmatpush1.bf16.msra.mxu0 0
    %1931 = vmatprep.subr.bf16.mxu0 0
    %1932 = vmatpush1.bf16.msra.mxu0 0
    %1933 = vmatprep.subr.bf16.mxu0 0
    %1934 = vmatpush1.bf16.msra.mxu0 0
    %1935 = vmatprep.mubr.bf16.mxu0 0
    %1936 = vmatmul.mubr.bf16.gmra.mrb[0].mxu0 %v1901
    %v1937 = vpop.f32.mrb[0].mxu0
    %v1938 = vadd.f32 0.0, %v1937
    %v1939 = vpop.f32.mrb[0].mxu0
    %v1940 = vpop.f32.mrb[0].mxu0
    %v1941 = vadd.f32 0.0, %v1940
    %v1942 = vpop.f32.mrb[0].mxu0
    %1943 = vdwg.mxu0
    %v1944 = vadd.f32 %v1896, %v1938
    %v1945 = vadd.f32 %v1897, %v1941
    %v1946 = vxor.u32 %v1944, 2147483648
    %v1947 = vxor.u32 %v1945, 2147483648
    %v1948 = vmul.f32 %v1946, 1.442695
    %v1949 = vpow.pop %v1948
    %v1950 = vmul.f32 %v1947, 1.442695
    %v1951 = vpow.pop %v1950
    %v1952 = vadd.f32 %v1949, 1.0
    %v1953 = vadd.f32 %v1951, 1.0
    %v1954 = vrcp.pop %v1952
    %v1955 = vmul.f32 1.0, %v1954
    %v1956 = vrcp.pop %v1953
    %v1957 = vmul.f32 1.0, %v1956
    %v1958 = vtanh.pop %v1944
    %v1959 = vtanh.pop %v1945
    %v1960 = vmul.f32 %v1955, %v1752
    %v1961 = vmul.f32 %v1957, %v1753
    %1964 = vrot.lane.b32.xlu0 %v1958, 64
    %v1965 = vpop.permute.xlu0 %1964
    %1966 = vrot.lane.b32.xlu0 %v1959, 64
    %v1967 = vpop.permute.xlu0 %1966
    %v1970 = vmul.f32 %v1955, %v1965
    %v1971 = vmul.f32 %v1957, %v1967
    %1974 = vrot.lane.b32.xlu0 %v1970, 32
    %v1975 = vpop.permute.xlu0 %1974
    %1976 = vrot.lane.b32.xlu0 %v1971, 32
    %v1977 = vpop.permute.xlu0 %1976
    %v1980 = vadd.f32 %v1960, %v1975
    %v1981 = vadd.f32 %v1961, %v1977
    %v1982 = vtanh.pop %v1980
    %v1983 = vtanh.pop %v1981
    %1986 = vrot.lane.b32.xlu0 %v1982, 64
    %v1987 = vpop.permute.xlu0 %1986
    %1988 = vrot.lane.b32.xlu0 %v1983, 64
    %v1989 = vpop.permute.xlu0 %1988
    %v1992 = vmul.f32 %v1955, %v1987
    %v1993 = vmul.f32 %v1957, %v1989
    %v1994 = vpack.c.bf16 %v1993, %v1992
    %v1996 = vunpack.c.l.b16 %v1994
    %v1997 = vunpack.c.h.b16 %v1994
    %v1998 = vpack.c.b16 %v1996, %v1996
    %v1999 = vpack.c.b16 %v1997, %v1997
    %2000 = vrot.lane.b32.xlu0 %v1998, 32
    %v2001 = vpop.permute.xlu0 %2000
    %2002 = vrot.lane.b32.xlu0 %v1999, 32
    %v2003 = vpop.permute.xlu0 %2002
    %s2006 = scalar_lea.vmem %s4, 56
    %2007 = vst.msk [vmem:[%s2006] sm:$0xf] %vm391, %v2001
    %2008 = vst.msk [vmem:[%s2006 + $0x4] sm:$0xf] %vm391, %v2003
    %v2009 = vld [vmem:[#allocation7] sm:$0xff]
    %v2010 = vld [vmem:[#allocation7 + $0x8] sm:$0xff]
    %2011 = vrot.lane.b32.xlu0 %v1880, 32
    %v2012 = vpop.permute.xlu0 %2011
    %v2014 = vsel %vm276, %v2012, 0
    %2016 = vmatprep.subr.bf16.mxu0 0
    %2017 = vmatpush1.bf16.msra.mxu0 %v406
    %2018 = vmatprep.subr.bf16.mxu0 0
    %2019 = vmatpush1.bf16.msra.mxu0 %v407
    %2020 = vmatprep.subr.bf16.mxu0 0
    %2021 = vmatpush1.bf16.msra.mxu0 0
    %2022 = vmatprep.subr.bf16.mxu0 0
    %2023 = vmatpush1.bf16.msra.mxu0 0
    %2024 = vmatprep.subr.bf16.mxu0 0
    %2025 = vmatpush1.bf16.msra.mxu0 0
    %2026 = vmatprep.subr.bf16.mxu0 0
    %2027 = vmatpush1.bf16.msra.mxu0 0
    %2028 = vmatprep.subr.bf16.mxu0 0
    %2029 = vmatpush1.bf16.msra.mxu0 0
    %2030 = vmatprep.subr.bf16.mxu0 0
    %2031 = vmatpush1.bf16.msra.mxu0 0
    %2032 = vmatprep.subr.bf16.mxu0 0
    %2033 = vmatpush1.bf16.msra.mxu0 0
    %2034 = vmatprep.subr.bf16.mxu0 0
    %2035 = vmatpush1.bf16.msra.mxu0 0
    %2036 = vmatprep.subr.bf16.mxu0 0
    %2037 = vmatpush1.bf16.msra.mxu0 0
    %2038 = vmatprep.subr.bf16.mxu0 0
    %2039 = vmatpush1.bf16.msra.mxu0 0
    %2040 = vmatprep.subr.bf16.mxu0 0
    %2041 = vmatpush1.bf16.msra.mxu0 0
    %2042 = vmatprep.subr.bf16.mxu0 0
    %2043 = vmatpush1.bf16.msra.mxu0 0
    %2044 = vmatprep.subr.bf16.mxu0 0
    %2045 = vmatpush1.bf16.msra.mxu0 0
    %2046 = vmatprep.subr.bf16.mxu0 0
    %2047 = vmatpush1.bf16.msra.mxu0 0
    %2048 = vmatprep.mubr.bf16.mxu0 0
    %2049 = vmatmul.mubr.bf16.gmra.mrb[0].mxu0 %v2014
    %v2050 = vpop.f32.mrb[0].mxu0
    %v2051 = vadd.f32 0.0, %v2050
    %v2052 = vpop.f32.mrb[0].mxu0
    %v2053 = vpop.f32.mrb[0].mxu0
    %v2054 = vadd.f32 0.0, %v2053
    %v2055 = vpop.f32.mrb[0].mxu0
    %2056 = vdwg.mxu0
    %v2057 = vadd.f32 %v2009, %v2051
    %v2058 = vadd.f32 %v2010, %v2054
    %v2059 = vxor.u32 %v2057, 2147483648
    %v2060 = vxor.u32 %v2058, 2147483648
    %v2061 = vmul.f32 %v2059, 1.442695
    %v2062 = vpow.pop %v2061
    %v2063 = vmul.f32 %v2060, 1.442695
    %v2064 = vpow.pop %v2063
    %v2065 = vadd.f32 %v2062, 1.0
    %v2066 = vadd.f32 %v2064, 1.0
    %v2067 = vrcp.pop %v2065
    %v2068 = vmul.f32 1.0, %v2067
    %v2069 = vrcp.pop %v2066
    %v2070 = vmul.f32 1.0, %v2069
    %v2071 = vtanh.pop %v2057
    %v2072 = vtanh.pop %v2058
    %v2073 = vmul.f32 %v2068, %v1866
    %v2074 = vmul.f32 %v2070, %v1867
    %2077 = vrot.lane.b32.xlu0 %v2071, 64
    %v2078 = vpop.permute.xlu0 %2077
    %2079 = vrot.lane.b32.xlu0 %v2072, 64
    %v2080 = vpop.permute.xlu0 %2079
    %v2083 = vmul.f32 %v2068, %v2078
    %v2084 = vmul.f32 %v2070, %v2080
    %2087 = vrot.lane.b32.xlu0 %v2083, 32
    %v2088 = vpop.permute.xlu0 %2087
    %2089 = vrot.lane.b32.xlu0 %v2084, 32
    %v2090 = vpop.permute.xlu0 %2089
    %v2093 = vadd.f32 %v2073, %v2088
    %v2094 = vadd.f32 %v2074, %v2090
    %v2095 = vtanh.pop %v2093
    %v2096 = vtanh.pop %v2094
    %2099 = vrot.lane.b32.xlu0 %v2095, 64
    %v2100 = vpop.permute.xlu0 %2099
    %2101 = vrot.lane.b32.xlu0 %v2096, 64
    %v2102 = vpop.permute.xlu0 %2101
    %v2105 = vmul.f32 %v2068, %v2100
    %v2106 = vmul.f32 %v2070, %v2102
    %v2107 = vpack.c.bf16 %v2106, %v2105
    %v2109 = vunpack.c.l.b16 %v2107
    %v2110 = vunpack.c.h.b16 %v2107
    %v2111 = vpack.c.b16 %v2109, %v2109
    %v2112 = vpack.c.b16 %v2110, %v2110
    %2113 = vrot.lane.b32.xlu0 %v2111, 32
    %v2114 = vpop.permute.xlu0 %2113
    %2115 = vrot.lane.b32.xlu0 %v2112, 32
    %v2116 = vpop.permute.xlu0 %2115
    %2119 = vst.msk [vmem:[%s228] sm:$0xf] %vm391, %v2114
    %2120 = vst.msk [vmem:[%s228 + $0x4] sm:$0xf] %vm391, %v2116
    %2123 = vrot.lane.b32.xlu0 %v1992, 32
    %v2124 = vpop.permute.xlu0 %2123
    %2125 = vrot.lane.b32.xlu0 %v1993, 32
    %v2126 = vpop.permute.xlu0 %2125
    %2129 = vst.msk [vmem:[#allocation2] sm:$0xff] %vm276, %v2124
    %2130 = vst.msk [vmem:[#allocation2 + $0x8] sm:$0xff] %vm276, %v2126
    %2133 = vrot.lane.b32.xlu0 %v1980, 96
    %v2134 = vpop.permute.xlu0 %2133
    %2135 = vrot.lane.b32.xlu0 %v1981, 96
    %v2136 = vpop.permute.xlu0 %2135
    %2139 = vst.msk [vmem:[#allocation3] sm:$0xff] %vm276, %v2134
    %2140 = vst.msk [vmem:[#allocation3 + $0x8] sm:$0xff] %vm276, %v2136
    %2143 = vrot.lane.b32.xlu0 %v2105, 32
    %v2144 = vpop.permute.xlu0 %2143
    %2145 = vrot.lane.b32.xlu0 %v2106, 32
    %v2146 = vpop.permute.xlu0 %2145
    %2149 = vst.msk [vmem:[#allocation4] sm:$0xff] %vm276, %v2144
    %2150 = vst.msk [vmem:[#allocation4 + $0x8] sm:$0xff] %vm276, %v2146
    %2153 = vrot.lane.b32.xlu0 %v2093, 96
    %v2154 = vpop.permute.xlu0 %2153
    %2155 = vrot.lane.b32.xlu0 %v2094, 96
    %v2156 = vpop.permute.xlu0 %2155
    %2159 = vst.msk [vmem:[#allocation5] sm:$0xff] %vm276, %v2154
    %2160 = vst.msk [vmem:[#allocation5 + $0x8] sm:$0xff] %vm276, %v2156
    %s2161 = ssub.s32 0, 0
    %s2162 = smul.u32 8, %s2161
    %p2163 = scmp.lt.s32.totalorder %s2162, 7
    %s2164 = scalar_select %p2163, %s2162, 7
    %s2165 = smul.addr %s2164, 2
    %s2166 = smul.addr %s2165, 4
    %s2167 = scalar_lea.vmem %s5, %s2166
    // Predicated region
    $region98: #{sequence_classifier_forward.6} parent=1 // pred_check
      _
    $region99: #{sequence_classifier_forward.6} parent=1 // pred_check_branch
      %2169 = sbr.rel (0) target = $region101
    $region100: #{sequence_classifier_forward.6} parent=1 // pred_region
      _
    $region101: #{sequence_classifier_forward.6} parent=1 // pred_fallthru
      _
    // Predicated region
    $region102: #{sequence_classifier_forward.6} parent=1 // pred_check
      _
    $region103: #{sequence_classifier_forward.6} parent=1 // pred_check_branch
      %2171 = sbr.rel (0) target = $region105
    $region104: #{sequence_classifier_forward.6} parent=1 // pred_region
      %s2172 = ssub.s32 0, 0
      %s2173 = smul.u32 8, %s2172
    $region105: #{sequence_classifier_forward.6} parent=1 // pred_fallthru
      _
    // Predicated region
    $region106: #{sequence_classifier_forward.6} parent=1 // pred_check
      _
    $region107: #{sequence_classifier_forward.6} parent=1 // pred_check_branch
      %2175 = sbr.rel (0) target = $region109
    $region108: #{sequence_classifier_forward.6} parent=1 // pred_region
      _
    $region109: #{sequence_classifier_forward.6} parent=1 // pred_fallthru
      _
    // Predicated region
    $region110: #{sequence_classifier_forward.6} parent=1 // pred_check
      _
    $region111: #{sequence_classifier_forward.6} parent=1 // pred_check_branch
      %2177 = sbr.rel (0) target = $region113
    $region112: #{sequence_classifier_forward.6} parent=1 // pred_region
      %s2178 = ssub.s32 0, 0
      %s2179 = smul.u32 8, %s2178
      %p2180 = scmp.lt.s32.totalorder %s2179, 7
      %s2181 = scalar_select %p2180, %s2179, 7
      %s2182 = smul.addr %s2181, 2
      %s2183 = smul.addr %s2182, 4
      %s2184 = scalar_lea.vmem %s5, %s2183
    $region113: #{sequence_classifier_forward.6} parent=1 // pred_fallthru
      _

</llo_original>
